<compile_context>
chip_gen: v7x
topology: tpu7x:2x2x1
jax: 0.10.0
libtpu: 0.0.40
codegen_flags: <defaults>
</compile_context>

<pallas_src>
import jax
import jax.numpy as jnp
from jax.experimental import pallas as pl
from jax.experimental.pallas import tpu as pltpu

K7 = 7
PAD = 3
NACC = 4          # independent partial accumulators for the 7x7 conv


def _round_up(a, b):
    return -(-a // b) * b


def _tree_reduce(vals, op):
    vals = list(vals)
    while len(vals) > 1:
        nxt = [op(vals[i], vals[i + 1]) for i in range(0, len(vals) - 1, 2)]
        if len(vals) % 2 == 1:
            nxt.append(vals[-1])
        vals = nxt
    return vals[0]


def _vmem_capacity_bytes():
    try:
        return int(pltpu.get_tpu_info().vmem_capacity_bytes)
    except Exception:
        return 64 * 1024 * 1024            # v7x worst case


def _is_dual_tensorcore():
    try:
        kind = jax.devices()[0].device_kind.lower()
    except Exception:
        return True                        # conservative: keep >=2 grid steps
    return any(tag in kind for tag in ("v7", "v4", "v3"))


def _spatial_attention_kernel(w1_ref, w7_ref, x_ref, out_ref, pad_ref):
    # w1_ref : (C,)            SMEM  - 1x1 conv weights
    # w7_ref : (3*7*7,)        SMEM  - 7x7 conv weights, flattened (c, kh, kw)
    # x_ref  : (C, Hp, Lb)     VMEM  - Nb zero-padded images packed along lanes
    # out_ref: (H, Lb)         VMEM  - packed output (bias-free, f32)
    # pad_ref: (3, Hp, Lb+128) VMEM  - the 3 concat planes + aligned lane tail
    C, Hp, Lb = x_ref.shape
    H = out_ref.shape[0]
    SW = pad_ref.shape[-1]

    # ---------- phase 1: streamed channel reductions (lane-dense) ----------
    zero = jnp.zeros((Hp, Lb), jnp.float32)

    def body(c, carry):
        s, m, cv = carry
        xc = x_ref[c].astype(jnp.float32)          # one channel slab, then dead
        return (s + xc, jnp.maximum(m, xc), cv + w1_ref[c] * xc)

    s, m, cv = jax.lax.fori_loop(
        0, C, body,
        (zero, jnp.full((Hp, Lb), -jnp.inf, jnp.float32), zero),
        unroll=(C <= 8))

    # The wrapper delivered x with a zero halo, so these ARE the padded planes
    # (conv1 bias is added outside the kernel so the halo stays exactly zero).
    pad_ref[0, :, 0:Lb] = s * (1.0 / C)             # avg plane
    pad_ref[1, :, 0:Lb] = m                         # max plane
    pad_ref[2, :, 0:Lb] = cv                        # 1x1-conv plane (no bias)
    # Extra lane tile only feeds discarded pad-output lanes; zero it anyway
    # (single aligned store, per-step because the grid axis is "parallel").
    pad_ref[:, :, Lb:SW] = jnp.zeros((3, Hp, SW - Lb), jnp.float32)

    # ---------- phase 2: 7x7 conv (3 -> 1), shifts in load addressing ----------
    accs = [jnp.zeros((H, Lb), jnp.float32) for _ in range(NACC)]
    t = 0
    for c in range(3):
        for kh in range(K7):
            for kw in range(K7):
                wv = w7_ref[(c * K7 + kh) * K7 + kw]
                accs[t % NACC] = accs[t % NACC] + wv * pad_ref[c, kh:kh + H,
                                                               kw:kw + Lb]
                t += 1
    out_ref[...] = _tree_reduce(accs, jnp.add).astype(out_ref.dtype)


def _choose_block_images(N, C, Hp, Wpi, ipt, in_itemsize, dual_tc, vmem_cap):
    # Per-image VMEM footprint: double-buffered input block, output block and
    # the f32 padded-plane scratch (not just raw input bytes).
    per_img = (2 * C * Hp * Wpi * in_itemsize
               + 2 * Hp * Wpi * 4
               + 3 * Hp * Wpi * 4)
    budget = min(vmem_cap // 3, 40 * 1024 * 1024)
    n = max(ipt, (budget // max(per_img, 1)) // ipt * ipt)
    n = min(n, _round_up(N, ipt))
    if dual_tc and N > ipt:
        # keep >= 2 grid steps so both TensorCores get work (dual-TC parts only)
        half = max(_round_up((N + 1) // 2, ipt), ipt)
        n = min(n, half)
    return max(n, ipt), per_img


def spatial_attention(x, w1, b1, w7, b7):
    """x: (N, C, H, W); w1: (C,); b1: (1,); w7: (1,3,7,7); b7: (1,)."""
    N, C, H, W = x.shape

    # Per-image padded width: power of two >= W+6 (so it divides 128), or a
    # multiple of 128 for very wide images.
    wpad = W + 2 * PAD
    if wpad <= 128:
        Wpi = 8
        while Wpi < wpad:
            Wpi *= 2
    else:
        Wpi = _round_up(wpad, 128)
    ipt = max(1, 128 // Wpi)                      # images per 128-lane tile
    Hp = _round_up(H + 2 * PAD, 8)                # sublane-aligned padded height

    vmem_cap = _vmem_capacity_bytes()
    dual_tc = _is_dual_tensorcore()
    block_n, per_img = _choose_block_images(
        N, C, Hp, Wpi, ipt, x.dtype.itemsize, dual_tc, vmem_cap)
    N_pad = _round_up(N, block_n)                 # pad batch -> blocks divide
    Lb = block_n * Wpi                            # lane width per grid step
    grid_n = N_pad // block_n

    need = block_n * per_img + 3 * Hp * 128 * 4 + (1 << 20)
    vmem_limit = min(max(2 * need, 48 * 1024 * 1024), vmem_cap * 3 // 4)
    vmem_limit = max(vmem_limit, need + (1 << 20))

    # Pack + zero-pad wrapper-side (layout plumbing, fused into one XLA copy):
    # (N,C,H,W) -> (C, Hp, N_pad*Wpi), padded image b occupies lanes
    # [b*Wpi, (b+1)*Wpi), valid pixels at rows [3,3+H), cols [3,3+W).
    xp = jnp.pad(x, ((0, N_pad - N), (0, 0),
                     (PAD, Hp - H - PAD), (PAD, Wpi - W - PAD)))
    xp = jnp.transpose(xp, (1, 2, 0, 3)).reshape(C, Hp, N_pad * Wpi)

    w1_flat = w1.reshape(-1).astype(jnp.float32)          # (C,)
    w7_flat = w7.reshape(-1).astype(jnp.float32)          # (3*7*7,)

    smem = pl.BlockSpec(memory_space=pltpu.MemorySpace.SMEM)
    out_packed = pl.pallas_call(
        _spatial_attention_kernel,
        out_shape=jax.ShapeDtypeStruct((H, N_pad * Wpi), jnp.float32),
        grid=(grid_n,),
        in_specs=[
            smem,                                               # w1
            smem,                                               # w7
            pl.BlockSpec((C, Hp, Lb), lambda n: (0, 0, n)),     # packed x
        ],
        out_specs=pl.BlockSpec((H, Lb), lambda n: (0, n)),
        scratch_shapes=[pltpu.VMEM((3, Hp, Lb + 128), jnp.float32)],
        compiler_params=pltpu.CompilerParams(
            dimension_semantics=("parallel",),
            vmem_limit_bytes=int(vmem_limit)),
    )(w1_flat, w7_flat, xp)

    # Bias correction (kept out of the kernel):
    #   b7 everywhere + b1 * (sum of w7[:,2] taps landing inside the image).
    ones = jnp.ones((1, 1, H, W), jnp.float32)
    s_map = jax.lax.conv_general_dilated(
        ones, w7[:, 2:3].astype(jnp.float32), (1, 1),
        ((PAD, PAD), (PAD, PAD)),
        dimension_numbers=("NCHW", "OIHW", "NCHW"),
        precision=jax.lax.Precision.HIGHEST)[0, 0]              # (H, W)
    bias_map = (b7.astype(jnp.float32).reshape(())
                + b1.astype(jnp.float32).reshape(()) * s_map)

    psi = out_packed.reshape(H, N_pad, Wpi)[:, :N, :W]          # (H, N, W)
    psi = jnp.transpose(psi, (1, 0, 2)) + bias_map[None]        # (N, H, W)
    return psi[:, None, :, :].astype(x.dtype)                   # (N, 1, H, W)


def _reference(x, w1, b1, w7, b7):
    avg_out = jnp.mean(x, axis=1, keepdims=True)
    max_out = jnp.max(x, axis=1, keepdims=True)
    x_conv1 = jax.lax.conv_general_dilated(
        x, w1.reshape(1, -1, 1, 1), window_strides=(1, 1), padding="VALID",
        dimension_numbers=("NCHW", "OIHW", "NCHW"),
        precision=jax.lax.Precision.HIGHEST) + b1.reshape(1, 1, 1, 1)
    cat = jnp.concatenate([avg_out, max_out, x_conv1], axis=1)
    psi = jax.lax.conv_general_dilated(
        cat, w7, window_strides=(1, 1), padding=((PAD, PAD), (PAD, PAD)),
        dimension_numbers=("NCHW", "OIHW", "NCHW"),
        precision=jax.lax.Precision.HIGHEST) + b7.reshape(1, 1, 1, 1)
    return psi


if __name__ == "__main__":
    N, C, H, W = 2, 4, 16, 16
    key = jax.random.PRNGKey(0)
    kx, k1w, k1b, k7w, k7b = jax.random.split(key, 5)

    x = jax.random.normal(kx, (N, C, H, W), dtype=jnp.float32)
    # deterministic synthetic parameters (shapes match nn.Conv2d in __init__)
    w1 = jax.random.normal(k1w, (C,), dtype=jnp.float32) * 0.5            # conv1: (1,C,1,1)
    b1 = jax.random.normal(k1b, (1,), dtype=jnp.float32) * 0.1
    w7 = jax.random.normal(k7w, (1, 3, K7, K7), dtype=jnp.float32) * 0.1  # conv: (1,3,7,7)
    b7 = jax.random.normal(k7b, (1,), dtype=jnp.float32) * 0.1

    psi = spatial_attention(x, w1, b1, w7, b7)
    psi = jax.block_until_ready(psi)

    ref = _reference(x, w1, b1, w7, b7)
    assert psi.shape == (N, 1, H, W)
    assert jnp.allclose(psi, ref, atol=1e-4, rtol=1e-4), float(
        jnp.max(jnp.abs(psi - ref)))
    print("KERNEL_OK")
</pallas_src>

<mosaic_0001>
module attributes {stable_mosaic.version = 11 : i64} {
  func.func @_spatial_attention_kernel(%arg0: i32, %arg1: memref<4xf32, #tpu.memory_space<smem>>, %arg2: memref<147xf32, #tpu.memory_space<smem>>, %arg3: memref<4x24x128xf32, #tpu.memory_space<vmem>>, %arg4: memref<16x128xf32, #tpu.memory_space<vmem>>, %arg5: memref<3x24x256xf32, #tpu.memory_space<vmem>>) attributes {dimension_semantics = [#tpu.dimension_semantics<parallel>], iteration_bounds = array<i64: 1>, scalar_prefetch = 0 : i64, scratch_operands = 1 : i64, tpu.core_type = #tpu.core_type<tc>, window_params = [{transform_indices = @transform_0, window_bounds = array<i64: 4>}, {transform_indices = @transform_1, window_bounds = array<i64: 147>}, {transform_indices = @transform_2, window_bounds = array<i64: 4, 24, 128>}, {transform_indices = @transform_3, window_bounds = array<i64: 16, 128>}]} {
    %cst = arith.constant 0.000000e+00 : f32
    %0 = vector.broadcast %cst : f32 to vector<24x128xf32>
    %cst_0 = arith.constant 0xFF800000 : f32
    %1 = vector.broadcast %cst_0 : f32 to vector<24x128xf32>
    %c0_i32 = arith.constant 0 : i32
    %2 = arith.index_cast %c0_i32 : i32 to index
    %c0 = arith.constant 0 : index
    %c0_1 = arith.constant 0 : index
    %3 = vector.load %arg3[%2, %c0, %c0_1] : memref<4x24x128xf32, #tpu.memory_space<vmem>>, vector<1x24x128xf32>
    %4 = vector.shape_cast %3 : vector<1x24x128xf32> to vector<24x128xf32>
    %5 = arith.addf %0, %4 : vector<24x128xf32>
    %6 = arith.maximumf %1, %4 : vector<24x128xf32>
    %7 = arith.index_cast %c0_i32 : i32 to index
    %8 = memref.load %arg1[%7] : memref<4xf32, #tpu.memory_space<smem>>
    %9 = vector.broadcast %8 : f32 to vector<24x128xf32>
    %10 = arith.mulf %9, %4 : vector<24x128xf32>
    %11 = arith.addf %0, %10 : vector<24x128xf32>
    %c1_i32 = arith.constant 1 : i32
    %12 = arith.index_cast %c1_i32 : i32 to index
    %c0_2 = arith.constant 0 : index
    %c0_3 = arith.constant 0 : index
    %13 = vector.load %arg3[%12, %c0_2, %c0_3] : memref<4x24x128xf32, #tpu.memory_space<vmem>>, vector<1x24x128xf32>
    %14 = vector.shape_cast %13 : vector<1x24x128xf32> to vector<24x128xf32>
    %15 = arith.addf %5, %14 : vector<24x128xf32>
    %16 = arith.maximumf %6, %14 : vector<24x128xf32>
    %17 = arith.index_cast %c1_i32 : i32 to index
    %18 = memref.load %arg1[%17] : memref<4xf32, #tpu.memory_space<smem>>
    %19 = vector.broadcast %18 : f32 to vector<24x128xf32>
    %20 = arith.mulf %19, %14 : vector<24x128xf32>
    %21 = arith.addf %11, %20 : vector<24x128xf32>
    %c2_i32 = arith.constant 2 : i32
    %22 = arith.index_cast %c2_i32 : i32 to index
    %c0_4 = arith.constant 0 : index
    %c0_5 = arith.constant 0 : index
    %23 = vector.load %arg3[%22, %c0_4, %c0_5] : memref<4x24x128xf32, #tpu.memory_space<vmem>>, vector<1x24x128xf32>
    %24 = vector.shape_cast %23 : vector<1x24x128xf32> to vector<24x128xf32>
    %25 = arith.addf %15, %24 : vector<24x128xf32>
    %26 = arith.maximumf %16, %24 : vector<24x128xf32>
    %27 = arith.index_cast %c2_i32 : i32 to index
    %28 = memref.load %arg1[%27] : memref<4xf32, #tpu.memory_space<smem>>
    %29 = vector.broadcast %28 : f32 to vector<24x128xf32>
    %30 = arith.mulf %29, %24 : vector<24x128xf32>
    %31 = arith.addf %21, %30 : vector<24x128xf32>
    %c3_i32 = arith.constant 3 : i32
    %32 = arith.index_cast %c3_i32 : i32 to index
    %c0_6 = arith.constant 0 : index
    %c0_7 = arith.constant 0 : index
    %33 = vector.load %arg3[%32, %c0_6, %c0_7] : memref<4x24x128xf32, #tpu.memory_space<vmem>>, vector<1x24x128xf32>
    %34 = vector.shape_cast %33 : vector<1x24x128xf32> to vector<24x128xf32>
    %35 = arith.addf %25, %34 : vector<24x128xf32>
    %36 = arith.maximumf %26, %34 : vector<24x128xf32>
    %37 = arith.index_cast %c3_i32 : i32 to index
    %38 = memref.load %arg1[%37] : memref<4xf32, #tpu.memory_space<smem>>
    %39 = vector.broadcast %38 : f32 to vector<24x128xf32>
    %40 = arith.mulf %39, %34 : vector<24x128xf32>
    %41 = arith.addf %31, %40 : vector<24x128xf32>
    %c4_i32 = arith.constant 4 : i32
    %cst_8 = arith.constant 2.500000e-01 : f32
    %42 = vector.broadcast %cst_8 : f32 to vector<24x128xf32>
    %43 = arith.mulf %35, %42 : vector<24x128xf32>
    %c0_9 = arith.constant 0 : index
    %c0_10 = arith.constant 0 : index
    %c0_11 = arith.constant 0 : index
    %44 = vector.load %arg5[%c0_9, %c0_10, %c0_11] : memref<3x24x256xf32, #tpu.memory_space<vmem>>, vector<1x24x128xf32>
    %45 = vector.shape_cast %44 : vector<1x24x128xf32> to vector<24x128xf32>
    %46 = vector.shape_cast %43 : vector<24x128xf32> to vector<1x24x128xf32>
    tpu.vector_store %arg5[%c0_9, %c0_10, %c0_11], %46 {strides = array<i32>} : memref<3x24x256xf32, #tpu.memory_space<vmem>>, vector<1x24x128xf32>,
    %c1 = arith.constant 1 : index
    %c0_12 = arith.constant 0 : index
    %c0_13 = arith.constant 0 : index
    %47 = vector.load %arg5[%c1, %c0_12, %c0_13] : memref<3x24x256xf32, #tpu.memory_space<vmem>>, vector<1x24x128xf32>
    %48 = vector.shape_cast %47 : vector<1x24x128xf32> to vector<24x128xf32>
    %49 = vector.shape_cast %36 : vector<24x128xf32> to vector<1x24x128xf32>
    tpu.vector_store %arg5[%c1, %c0_12, %c0_13], %49 {strides = array<i32>} : memref<3x24x256xf32, #tpu.memory_space<vmem>>, vector<1x24x128xf32>,
    %c2 = arith.constant 2 : index
    %c0_14 = arith.constant 0 : index
    %c0_15 = arith.constant 0 : index
    %50 = vector.load %arg5[%c2, %c0_14, %c0_15] : memref<3x24x256xf32, #tpu.memory_space<vmem>>, vector<1x24x128xf32>
    %51 = vector.shape_cast %50 : vector<1x24x128xf32> to vector<24x128xf32>
    %52 = vector.shape_cast %41 : vector<24x128xf32> to vector<1x24x128xf32>
    tpu.vector_store %arg5[%c2, %c0_14, %c0_15], %52 {strides = array<i32>} : memref<3x24x256xf32, #tpu.memory_space<vmem>>, vector<1x24x128xf32>,
    %cst_16 = arith.constant 0.000000e+00 : f32
    %53 = vector.broadcast %cst_16 : f32 to vector<3x24x128xf32>
    %c0_17 = arith.constant 0 : index
    %c0_18 = arith.constant 0 : index
    %c128 = arith.constant 128 : index
    %54 = vector.load %arg5[%c0_17, %c0_18, %c128] : memref<3x24x256xf32, #tpu.memory_space<vmem>>, vector<3x24x128xf32>
    tpu.vector_store %arg5[%c0_17, %c0_18, %c128], %53 {strides = array<i32>} : memref<3x24x256xf32, #tpu.memory_space<vmem>>, vector<3x24x128xf32>,
    %cst_19 = arith.constant 0.000000e+00 : f32
    %55 = vector.broadcast %cst_19 : f32 to vector<16x128xf32>
    %cst_20 = arith.constant 0.000000e+00 : f32
    %56 = vector.broadcast %cst_20 : f32 to vector<16x128xf32>
    %cst_21 = arith.constant 0.000000e+00 : f32
    %57 = vector.broadcast %cst_21 : f32 to vector<16x128xf32>
    %cst_22 = arith.constant 0.000000e+00 : f32
    %58 = vector.broadcast %cst_22 : f32 to vector<16x128xf32>
    %c0_23 = arith.constant 0 : index
    %59 = memref.load %arg2[%c0_23] : memref<147xf32, #tpu.memory_space<smem>>
    %c0_24 = arith.constant 0 : index
    %c0_25 = arith.constant 0 : index
    %c0_26 = arith.constant 0 : index
    %60 = vector.load %arg5[%c0_24, %c0_25, %c0_26] : memref<3x24x256xf32, #tpu.memory_space<vmem>>, vector<1x16x128xf32>
    %61 = vector.shape_cast %60 : vector<1x16x128xf32> to vector<16x128xf32>
    %62 = vector.broadcast %59 : f32 to vector<16x128xf32>
    %63 = arith.mulf %62, %61 : vector<16x128xf32>
    %64 = arith.addf %55, %63 : vector<16x128xf32>
    %c1_27 = arith.constant 1 : index
    %65 = memref.load %arg2[%c1_27] : memref<147xf32, #tpu.memory_space<smem>>
    %c0_28 = arith.constant 0 : index
    %c0_29 = arith.constant 0 : index
    %c1_30 = arith.constant 1 : index
    %66 = vector.load %arg5[%c0_28, %c0_29, %c1_30] : memref<3x24x256xf32, #tpu.memory_space<vmem>>, vector<1x16x128xf32>
    %67 = vector.shape_cast %66 : vector<1x16x128xf32> to vector<16x128xf32>
    %68 = vector.broadcast %65 : f32 to vector<16x128xf32>
    %69 = arith.mulf %68, %67 : vector<16x128xf32>
    %70 = arith.addf %56, %69 : vector<16x128xf32>
    %c2_31 = arith.constant 2 : index
    %71 = memref.load %arg2[%c2_31] : memref<147xf32, #tpu.memory_space<smem>>
    %c0_32 = arith.constant 0 : index
    %c0_33 = arith.constant 0 : index
    %c2_34 = arith.constant 2 : index
    %72 = vector.load %arg5[%c0_32, %c0_33, %c2_34] : memref<3x24x256xf32, #tpu.memory_space<vmem>>, vector<1x16x128xf32>
    %73 = vector.shape_cast %72 : vector<1x16x128xf32> to vector<16x128xf32>
    %74 = vector.broadcast %71 : f32 to vector<16x128xf32>
    %75 = arith.mulf %74, %73 : vector<16x128xf32>
    %76 = arith.addf %57, %75 : vector<16x128xf32>
    %c3 = arith.constant 3 : index
    %77 = memref.load %arg2[%c3] : memref<147xf32, #tpu.memory_space<smem>>
    %c0_35 = arith.constant 0 : index
    %c0_36 = arith.constant 0 : index
    %c3_37 = arith.constant 3 : index
    %78 = vector.load %arg5[%c0_35, %c0_36, %c3_37] : memref<3x24x256xf32, #tpu.memory_space<vmem>>, vector<1x16x128xf32>
    %79 = vector.shape_cast %78 : vector<1x16x128xf32> to vector<16x128xf32>
    %80 = vector.broadcast %77 : f32 to vector<16x128xf32>
    %81 = arith.mulf %80, %79 : vector<16x128xf32>
    %82 = arith.addf %58, %81 : vector<16x128xf32>
    %c4 = arith.constant 4 : index
    %83 = memref.load %arg2[%c4] : memref<147xf32, #tpu.memory_space<smem>>
    %c0_38 = arith.constant 0 : index
    %c0_39 = arith.constant 0 : index
    %c4_40 = arith.constant 4 : index
    %84 = vector.load %arg5[%c0_38, %c0_39, %c4_40] : memref<3x24x256xf32, #tpu.memory_space<vmem>>, vector<1x16x128xf32>
    %85 = vector.shape_cast %84 : vector<1x16x128xf32> to vector<16x128xf32>
    %86 = vector.broadcast %83 : f32 to vector<16x128xf32>
    %87 = arith.mulf %86, %85 : vector<16x128xf32>
    %88 = arith.addf %64, %87 : vector<16x128xf32>
    %c5 = arith.constant 5 : index
    %89 = memref.load %arg2[%c5] : memref<147xf32, #tpu.memory_space<smem>>
    %c0_41 = arith.constant 0 : index
    %c0_42 = arith.constant 0 : index
    %c5_43 = arith.constant 5 : index
    %90 = vector.load %arg5[%c0_41, %c0_42, %c5_43] : memref<3x24x256xf32, #tpu.memory_space<vmem>>, vector<1x16x128xf32>
    %91 = vector.shape_cast %90 : vector<1x16x128xf32> to vector<16x128xf32>
    %92 = vector.broadcast %89 : f32 to vector<16x128xf32>
    %93 = arith.mulf %92, %91 : vector<16x128xf32>
    %94 = arith.addf %70, %93 : vector<16x128xf32>
    %c6 = arith.constant 6 : index
    %95 = memref.load %arg2[%c6] : memref<147xf32, #tpu.memory_space<smem>>
    %c0_44 = arith.constant 0 : index
    %c0_45 = arith.constant 0 : index
    %c6_46 = arith.constant 6 : index
    %96 = vector.load %arg5[%c0_44, %c0_45, %c6_46] : memref<3x24x256xf32, #tpu.memory_space<vmem>>, vector<1x16x128xf32>
    %97 = vector.shape_cast %96 : vector<1x16x128xf32> to vector<16x128xf32>
    %98 = vector.broadcast %95 : f32 to vector<16x128xf32>
    %99 = arith.mulf %98, %97 : vector<16x128xf32>
    %100 = arith.addf %76, %99 : vector<16x128xf32>
    %c7 = arith.constant 7 : index
    %101 = memref.load %arg2[%c7] : memref<147xf32, #tpu.memory_space<smem>>
    %c0_47 = arith.constant 0 : index
    %c1_48 = arith.constant 1 : index
    %c0_49 = arith.constant 0 : index
    %102 = vector.load %arg5[%c0_47, %c1_48, %c0_49] : memref<3x24x256xf32, #tpu.memory_space<vmem>>, vector<1x16x128xf32>
    %103 = vector.shape_cast %102 : vector<1x16x128xf32> to vector<16x128xf32>
    %104 = vector.broadcast %101 : f32 to vector<16x128xf32>
    %105 = arith.mulf %104, %103 : vector<16x128xf32>
    %106 = arith.addf %82, %105 : vector<16x128xf32>
    %c8 = arith.constant 8 : index
    %107 = memref.load %arg2[%c8] : memref<147xf32, #tpu.memory_space<smem>>
    %c0_50 = arith.constant 0 : index
    %c1_51 = arith.constant 1 : index
    %c1_52 = arith.constant 1 : index
    %108 = vector.load %arg5[%c0_50, %c1_51, %c1_52] : memref<3x24x256xf32, #tpu.memory_space<vmem>>, vector<1x16x128xf32>
    %109 = vector.shape_cast %108 : vector<1x16x128xf32> to vector<16x128xf32>
    %110 = vector.broadcast %107 : f32 to vector<16x128xf32>
    %111 = arith.mulf %110, %109 : vector<16x128xf32>
    %112 = arith.addf %88, %111 : vector<16x128xf32>
    %c9 = arith.constant 9 : index
    %113 = memref.load %arg2[%c9] : memref<147xf32, #tpu.memory_space<smem>>
    %c0_53 = arith.constant 0 : index
    %c1_54 = arith.constant 1 : index
    %c2_55 = arith.constant 2 : index
    %114 = vector.load %arg5[%c0_53, %c1_54, %c2_55] : memref<3x24x256xf32, #tpu.memory_space<vmem>>, vector<1x16x128xf32>
    %115 = vector.shape_cast %114 : vector<1x16x128xf32> to vector<16x128xf32>
    %116 = vector.broadcast %113 : f32 to vector<16x128xf32>
    %117 = arith.mulf %116, %115 : vector<16x128xf32>
    %118 = arith.addf %94, %117 : vector<16x128xf32>
    %c10 = arith.constant 10 : index
    %119 = memref.load %arg2[%c10] : memref<147xf32, #tpu.memory_space<smem>>
    %c0_56 = arith.constant 0 : index
    %c1_57 = arith.constant 1 : index
    %c3_58 = arith.constant 3 : index
    %120 = vector.load %arg5[%c0_56, %c1_57, %c3_58] : memref<3x24x256xf32, #tpu.memory_space<vmem>>, vector<1x16x128xf32>
    %121 = vector.shape_cast %120 : vector<1x16x128xf32> to vector<16x128xf32>
    %122 = vector.broadcast %119 : f32 to vector<16x128xf32>
    %123 = arith.mulf %122, %121 : vector<16x128xf32>
    %124 = arith.addf %100, %123 : vector<16x128xf32>
    %c11 = arith.constant 11 : index
    %125 = memref.load %arg2[%c11] : memref<147xf32, #tpu.memory_space<smem>>
    %c0_59 = arith.constant 0 : index
    %c1_60 = arith.constant 1 : index
    %c4_61 = arith.constant 4 : index
    %126 = vector.load %arg5[%c0_59, %c1_60, %c4_61] : memref<3x24x256xf32, #tpu.memory_space<vmem>>, vector<1x16x128xf32>
    %127 = vector.shape_cast %126 : vector<1x16x128xf32> to vector<16x128xf32>
    %128 = vector.broadcast %125 : f32 to vector<16x128xf32>
    %129 = arith.mulf %128, %127 : vector<16x128xf32>
    %130 = arith.addf %106, %129 : vector<16x128xf32>
    %c12 = arith.constant 12 : index
    %131 = memref.load %arg2[%c12] : memref<147xf32, #tpu.memory_space<smem>>
    %c0_62 = arith.constant 0 : index
    %c1_63 = arith.constant 1 : index
    %c5_64 = arith.constant 5 : index
    %132 = vector.load %arg5[%c0_62, %c1_63, %c5_64] : memref<3x24x256xf32, #tpu.memory_space<vmem>>, vector<1x16x128xf32>
    %133 = vector.shape_cast %132 : vector<1x16x128xf32> to vector<16x128xf32>
    %134 = vector.broadcast %131 : f32 to vector<16x128xf32>
    %135 = arith.mulf %134, %133 : vector<16x128xf32>
    %136 = arith.addf %112, %135 : vector<16x128xf32>
    %c13 = arith.constant 13 : index
    %137 = memref.load %arg2[%c13] : memref<147xf32, #tpu.memory_space<smem>>
    %c0_65 = arith.constant 0 : index
    %c1_66 = arith.constant 1 : index
    %c6_67 = arith.constant 6 : index
    %138 = vector.load %arg5[%c0_65, %c1_66, %c6_67] : memref<3x24x256xf32, #tpu.memory_space<vmem>>, vector<1x16x128xf32>
    %139 = vector.shape_cast %138 : vector<1x16x128xf32> to vector<16x128xf32>
    %140 = vector.broadcast %137 : f32 to vector<16x128xf32>
    %141 = arith.mulf %140, %139 : vector<16x128xf32>
    %142 = arith.addf %118, %141 : vector<16x128xf32>
    %c14 = arith.constant 14 : index
    %143 = memref.load %arg2[%c14] : memref<147xf32, #tpu.memory_space<smem>>
    %c0_68 = arith.constant 0 : index
    %c2_69 = arith.constant 2 : index
    %c0_70 = arith.constant 0 : index
    %144 = vector.load %arg5[%c0_68, %c2_69, %c0_70] : memref<3x24x256xf32, #tpu.memory_space<vmem>>, vector<1x16x128xf32>
    %145 = vector.shape_cast %144 : vector<1x16x128xf32> to vector<16x128xf32>
    %146 = vector.broadcast %143 : f32 to vector<16x128xf32>
    %147 = arith.mulf %146, %145 : vector<16x128xf32>
    %148 = arith.addf %124, %147 : vector<16x128xf32>
    %c15 = arith.constant 15 : index
    %149 = memref.load %arg2[%c15] : memref<147xf32, #tpu.memory_space<smem>>
    %c0_71 = arith.constant 0 : index
    %c2_72 = arith.constant 2 : index
    %c1_73 = arith.constant 1 : index
    %150 = vector.load %arg5[%c0_71, %c2_72, %c1_73] : memref<3x24x256xf32, #tpu.memory_space<vmem>>, vector<1x16x128xf32>
    %151 = vector.shape_cast %150 : vector<1x16x128xf32> to vector<16x128xf32>
    %152 = vector.broadcast %149 : f32 to vector<16x128xf32>
    %153 = arith.mulf %152, %151 : vector<16x128xf32>
    %154 = arith.addf %130, %153 : vector<16x128xf32>
    %c16 = arith.constant 16 : index
    %155 = memref.load %arg2[%c16] : memref<147xf32, #tpu.memory_space<smem>>
    %c0_74 = arith.constant 0 : index
    %c2_75 = arith.constant 2 : index
    %c2_76 = arith.constant 2 : index
    %156 = vector.load %arg5[%c0_74, %c2_75, %c2_76] : memref<3x24x256xf32, #tpu.memory_space<vmem>>, vector<1x16x128xf32>
    %157 = vector.shape_cast %156 : vector<1x16x128xf32> to vector<16x128xf32>
    %158 = vector.broadcast %155 : f32 to vector<16x128xf32>
    %159 = arith.mulf %158, %157 : vector<16x128xf32>
    %160 = arith.addf %136, %159 : vector<16x128xf32>
    %c17 = arith.constant 17 : index
    %161 = memref.load %arg2[%c17] : memref<147xf32, #tpu.memory_space<smem>>
    %c0_77 = arith.constant 0 : index
    %c2_78 = arith.constant 2 : index
    %c3_79 = arith.constant 3 : index
    %162 = vector.load %arg5[%c0_77, %c2_78, %c3_79] : memref<3x24x256xf32, #tpu.memory_space<vmem>>, vector<1x16x128xf32>
    %163 = vector.shape_cast %162 : vector<1x16x128xf32> to vector<16x128xf32>
    %164 = vector.broadcast %161 : f32 to vector<16x128xf32>
    %165 = arith.mulf %164, %163 : vector<16x128xf32>
    %166 = arith.addf %142, %165 : vector<16x128xf32>
    %c18 = arith.constant 18 : index
    %167 = memref.load %arg2[%c18] : memref<147xf32, #tpu.memory_space<smem>>
    %c0_80 = arith.constant 0 : index
    %c2_81 = arith.constant 2 : index
    %c4_82 = arith.constant 4 : index
    %168 = vector.load %arg5[%c0_80, %c2_81, %c4_82] : memref<3x24x256xf32, #tpu.memory_space<vmem>>, vector<1x16x128xf32>
    %169 = vector.shape_cast %168 : vector<1x16x128xf32> to vector<16x128xf32>
    %170 = vector.broadcast %167 : f32 to vector<16x128xf32>
    %171 = arith.mulf %170, %169 : vector<16x128xf32>
    %172 = arith.addf %148, %171 : vector<16x128xf32>
    %c19 = arith.constant 19 : index
    %173 = memref.load %arg2[%c19] : memref<147xf32, #tpu.memory_space<smem>>
    %c0_83 = arith.constant 0 : index
    %c2_84 = arith.constant 2 : index
    %c5_85 = arith.constant 5 : index
    %174 = vector.load %arg5[%c0_83, %c2_84, %c5_85] : memref<3x24x256xf32, #tpu.memory_space<vmem>>, vector<1x16x128xf32>
    %175 = vector.shape_cast %174 : vector<1x16x128xf32> to vector<16x128xf32>
    %176 = vector.broadcast %173 : f32 to vector<16x128xf32>
    %177 = arith.mulf %176, %175 : vector<16x128xf32>
    %178 = arith.addf %154, %177 : vector<16x128xf32>
    %c20 = arith.constant 20 : index
    %179 = memref.load %arg2[%c20] : memref<147xf32, #tpu.memory_space<smem>>
    %c0_86 = arith.constant 0 : index
    %c2_87 = arith.constant 2 : index
    %c6_88 = arith.constant 6 : index
    %180 = vector.load %arg5[%c0_86, %c2_87, %c6_88] : memref<3x24x256xf32, #tpu.memory_space<vmem>>, vector<1x16x128xf32>
    %181 = vector.shape_cast %180 : vector<1x16x128xf32> to vector<16x128xf32>
    %182 = vector.broadcast %179 : f32 to vector<16x128xf32>
    %183 = arith.mulf %182, %181 : vector<16x128xf32>
    %184 = arith.addf %160, %183 : vector<16x128xf32>
    %c21 = arith.constant 21 : index
    %185 = memref.load %arg2[%c21] : memref<147xf32, #tpu.memory_space<smem>>
    %c0_89 = arith.constant 0 : index
    %c3_90 = arith.constant 3 : index
    %c0_91 = arith.constant 0 : index
    %186 = vector.load %arg5[%c0_89, %c3_90, %c0_91] : memref<3x24x256xf32, #tpu.memory_space<vmem>>, vector<1x16x128xf32>
    %187 = vector.shape_cast %186 : vector<1x16x128xf32> to vector<16x128xf32>
    %188 = vector.broadcast %185 : f32 to vector<16x128xf32>
    %189 = arith.mulf %188, %187 : vector<16x128xf32>
    %190 = arith.addf %166, %189 : vector<16x128xf32>
    %c22 = arith.constant 22 : index
    %191 = memref.load %arg2[%c22] : memref<147xf32, #tpu.memory_space<smem>>
    %c0_92 = arith.constant 0 : index
    %c3_93 = arith.constant 3 : index
    %c1_94 = arith.constant 1 : index
    %192 = vector.load %arg5[%c0_92, %c3_93, %c1_94] : memref<3x24x256xf32, #tpu.memory_space<vmem>>, vector<1x16x128xf32>
    %193 = vector.shape_cast %192 : vector<1x16x128xf32> to vector<16x128xf32>
    %194 = vector.broadcast %191 : f32 to vector<16x128xf32>
    %195 = arith.mulf %194, %193 : vector<16x128xf32>
    %196 = arith.addf %172, %195 : vector<16x128xf32>
    %c23 = arith.constant 23 : index
    %197 = memref.load %arg2[%c23] : memref<147xf32, #tpu.memory_space<smem>>
    %c0_95 = arith.constant 0 : index
    %c3_96 = arith.constant 3 : index
    %c2_97 = arith.constant 2 : index
    %198 = vector.load %arg5[%c0_95, %c3_96, %c2_97] : memref<3x24x256xf32, #tpu.memory_space<vmem>>, vector<1x16x128xf32>
    %199 = vector.shape_cast %198 : vector<1x16x128xf32> to vector<16x128xf32>
    %200 = vector.broadcast %197 : f32 to vector<16x128xf32>
    %201 = arith.mulf %200, %199 : vector<16x128xf32>
    %202 = arith.addf %178, %201 : vector<16x128xf32>
    %c24 = arith.constant 24 : index
    %203 = memref.load %arg2[%c24] : memref<147xf32, #tpu.memory_space<smem>>
    %c0_98 = arith.constant 0 : index
    %c3_99 = arith.constant 3 : index
    %c3_100 = arith.constant 3 : index
    %204 = vector.load %arg5[%c0_98, %c3_99, %c3_100] : memref<3x24x256xf32, #tpu.memory_space<vmem>>, vector<1x16x128xf32>
    %205 = vector.shape_cast %204 : vector<1x16x128xf32> to vector<16x128xf32>
    %206 = vector.broadcast %203 : f32 to vector<16x128xf32>
    %207 = arith.mulf %206, %205 : vector<16x128xf32>
    %208 = arith.addf %184, %207 : vector<16x128xf32>
    %c25 = arith.constant 25 : index
    %209 = memref.load %arg2[%c25] : memref<147xf32, #tpu.memory_space<smem>>
    %c0_101 = arith.constant 0 : index
    %c3_102 = arith.constant 3 : index
    %c4_103 = arith.constant 4 : index
    %210 = vector.load %arg5[%c0_101, %c3_102, %c4_103] : memref<3x24x256xf32, #tpu.memory_space<vmem>>, vector<1x16x128xf32>
    %211 = vector.shape_cast %210 : vector<1x16x128xf32> to vector<16x128xf32>
    %212 = vector.broadcast %209 : f32 to vector<16x128xf32>
    %213 = arith.mulf %212, %211 : vector<16x128xf32>
    %214 = arith.addf %190, %213 : vector<16x128xf32>
    %c26 = arith.constant 26 : index
    %215 = memref.load %arg2[%c26] : memref<147xf32, #tpu.memory_space<smem>>
    %c0_104 = arith.constant 0 : index
    %c3_105 = arith.constant 3 : index
    %c5_106 = arith.constant 5 : index
    %216 = vector.load %arg5[%c0_104, %c3_105, %c5_106] : memref<3x24x256xf32, #tpu.memory_space<vmem>>, vector<1x16x128xf32>
    %217 = vector.shape_cast %216 : vector<1x16x128xf32> to vector<16x128xf32>
    %218 = vector.broadcast %215 : f32 to vector<16x128xf32>
    %219 = arith.mulf %218, %217 : vector<16x128xf32>
    %220 = arith.addf %196, %219 : vector<16x128xf32>
    %c27 = arith.constant 27 : index
    %221 = memref.load %arg2[%c27] : memref<147xf32, #tpu.memory_space<smem>>
    %c0_107 = arith.constant 0 : index
    %c3_108 = arith.constant 3 : index
    %c6_109 = arith.constant 6 : index
    %222 = vector.load %arg5[%c0_107, %c3_108, %c6_109] : memref<3x24x256xf32, #tpu.memory_space<vmem>>, vector<1x16x128xf32>
    %223 = vector.shape_cast %222 : vector<1x16x128xf32> to vector<16x128xf32>
    %224 = vector.broadcast %221 : f32 to vector<16x128xf32>
    %225 = arith.mulf %224, %223 : vector<16x128xf32>
    %226 = arith.addf %202, %225 : vector<16x128xf32>
    %c28 = arith.constant 28 : index
    %227 = memref.load %arg2[%c28] : memref<147xf32, #tpu.memory_space<smem>>
    %c0_110 = arith.constant 0 : index
    %c4_111 = arith.constant 4 : index
    %c0_112 = arith.constant 0 : index
    %228 = vector.load %arg5[%c0_110, %c4_111, %c0_112] : memref<3x24x256xf32, #tpu.memory_space<vmem>>, vector<1x16x128xf32>
    %229 = vector.shape_cast %228 : vector<1x16x128xf32> to vector<16x128xf32>
    %230 = vector.broadcast %227 : f32 to vector<16x128xf32>
    %231 = arith.mulf %230, %229 : vector<16x128xf32>
    %232 = arith.addf %208, %231 : vector<16x128xf32>
    %c29 = arith.constant 29 : index
    %233 = memref.load %arg2[%c29] : memref<147xf32, #tpu.memory_space<smem>>
    %c0_113 = arith.constant 0 : index
    %c4_114 = arith.constant 4 : index
    %c1_115 = arith.constant 1 : index
    %234 = vector.load %arg5[%c0_113, %c4_114, %c1_115] : memref<3x24x256xf32, #tpu.memory_space<vmem>>, vector<1x16x128xf32>
    %235 = vector.shape_cast %234 : vector<1x16x128xf32> to vector<16x128xf32>
    %236 = vector.broadcast %233 : f32 to vector<16x128xf32>
    %237 = arith.mulf %236, %235 : vector<16x128xf32>
    %238 = arith.addf %214, %237 : vector<16x128xf32>
    %c30 = arith.constant 30 : index
    %239 = memref.load %arg2[%c30] : memref<147xf32, #tpu.memory_space<smem>>
    %c0_116 = arith.constant 0 : index
    %c4_117 = arith.constant 4 : index
    %c2_118 = arith.constant 2 : index
    %240 = vector.load %arg5[%c0_116, %c4_117, %c2_118] : memref<3x24x256xf32, #tpu.memory_space<vmem>>, vector<1x16x128xf32>
    %241 = vector.shape_cast %240 : vector<1x16x128xf32> to vector<16x128xf32>
    %242 = vector.broadcast %239 : f32 to vector<16x128xf32>
    %243 = arith.mulf %242, %241 : vector<16x128xf32>
    %244 = arith.addf %220, %243 : vector<16x128xf32>
    %c31 = arith.constant 31 : index
    %245 = memref.load %arg2[%c31] : memref<147xf32, #tpu.memory_space<smem>>
    %c0_119 = arith.constant 0 : index
    %c4_120 = arith.constant 4 : index
    %c3_121 = arith.constant 3 : index
    %246 = vector.load %arg5[%c0_119, %c4_120, %c3_121] : memref<3x24x256xf32, #tpu.memory_space<vmem>>, vector<1x16x128xf32>
    %247 = vector.shape_cast %246 : vector<1x16x128xf32> to vector<16x128xf32>
    %248 = vector.broadcast %245 : f32 to vector<16x128xf32>
    %249 = arith.mulf %248, %247 : vector<16x128xf32>
    %250 = arith.addf %226, %249 : vector<16x128xf32>
    %c32 = arith.constant 32 : index
    %251 = memref.load %arg2[%c32] : memref<147xf32, #tpu.memory_space<smem>>
    %c0_122 = arith.constant 0 : index
    %c4_123 = arith.constant 4 : index
    %c4_124 = arith.constant 4 : index
    %252 = vector.load %arg5[%c0_122, %c4_123, %c4_124] : memref<3x24x256xf32, #tpu.memory_space<vmem>>, vector<1x16x128xf32>
    %253 = vector.shape_cast %252 : vector<1x16x128xf32> to vector<16x128xf32>
    %254 = vector.broadcast %251 : f32 to vector<16x128xf32>
    %255 = arith.mulf %254, %253 : vector<16x128xf32>
    %256 = arith.addf %232, %255 : vector<16x128xf32>
    %c33 = arith.constant 33 : index
    %257 = memref.load %arg2[%c33] : memref<147xf32, #tpu.memory_space<smem>>
    %c0_125 = arith.constant 0 : index
    %c4_126 = arith.constant 4 : index
    %c5_127 = arith.constant 5 : index
    %258 = vector.load %arg5[%c0_125, %c4_126, %c5_127] : memref<3x24x256xf32, #tpu.memory_space<vmem>>, vector<1x16x128xf32>
    %259 = vector.shape_cast %258 : vector<1x16x128xf32> to vector<16x128xf32>
    %260 = vector.broadcast %257 : f32 to vector<16x128xf32>
    %261 = arith.mulf %260, %259 : vector<16x128xf32>
    %262 = arith.addf %238, %261 : vector<16x128xf32>
    %c34 = arith.constant 34 : index
    %263 = memref.load %arg2[%c34] : memref<147xf32, #tpu.memory_space<smem>>
    %c0_128 = arith.constant 0 : index
    %c4_129 = arith.constant 4 : index
    %c6_130 = arith.constant 6 : index
    %264 = vector.load %arg5[%c0_128, %c4_129, %c6_130] : memref<3x24x256xf32, #tpu.memory_space<vmem>>, vector<1x16x128xf32>
    %265 = vector.shape_cast %264 : vector<1x16x128xf32> to vector<16x128xf32>
    %266 = vector.broadcast %263 : f32 to vector<16x128xf32>
    %267 = arith.mulf %266, %265 : vector<16x128xf32>
    %268 = arith.addf %244, %267 : vector<16x128xf32>
    %c35 = arith.constant 35 : index
    %269 = memref.load %arg2[%c35] : memref<147xf32, #tpu.memory_space<smem>>
    %c0_131 = arith.constant 0 : index
    %c5_132 = arith.constant 5 : index
    %c0_133 = arith.constant 0 : index
    %270 = vector.load %arg5[%c0_131, %c5_132, %c0_133] : memref<3x24x256xf32, #tpu.memory_space<vmem>>, vector<1x16x128xf32>
    %271 = vector.shape_cast %270 : vector<1x16x128xf32> to vector<16x128xf32>
    %272 = vector.broadcast %269 : f32 to vector<16x128xf32>
    %273 = arith.mulf %272, %271 : vector<16x128xf32>
    %274 = arith.addf %250, %273 : vector<16x128xf32>
    %c36 = arith.constant 36 : index
    %275 = memref.load %arg2[%c36] : memref<147xf32, #tpu.memory_space<smem>>
    %c0_134 = arith.constant 0 : index
    %c5_135 = arith.constant 5 : index
    %c1_136 = arith.constant 1 : index
    %276 = vector.load %arg5[%c0_134, %c5_135, %c1_136] : memref<3x24x256xf32, #tpu.memory_space<vmem>>, vector<1x16x128xf32>
    %277 = vector.shape_cast %276 : vector<1x16x128xf32> to vector<16x128xf32>
    %278 = vector.broadcast %275 : f32 to vector<16x128xf32>
    %279 = arith.mulf %278, %277 : vector<16x128xf32>
    %280 = arith.addf %256, %279 : vector<16x128xf32>
    %c37 = arith.constant 37 : index
    %281 = memref.load %arg2[%c37] : memref<147xf32, #tpu.memory_space<smem>>
    %c0_137 = arith.constant 0 : index
    %c5_138 = arith.constant 5 : index
    %c2_139 = arith.constant 2 : index
    %282 = vector.load %arg5[%c0_137, %c5_138, %c2_139] : memref<3x24x256xf32, #tpu.memory_space<vmem>>, vector<1x16x128xf32>
    %283 = vector.shape_cast %282 : vector<1x16x128xf32> to vector<16x128xf32>
    %284 = vector.broadcast %281 : f32 to vector<16x128xf32>
    %285 = arith.mulf %284, %283 : vector<16x128xf32>
    %286 = arith.addf %262, %285 : vector<16x128xf32>
    %c38 = arith.constant 38 : index
    %287 = memref.load %arg2[%c38] : memref<147xf32, #tpu.memory_space<smem>>
    %c0_140 = arith.constant 0 : index
    %c5_141 = arith.constant 5 : index
    %c3_142 = arith.constant 3 : index
    %288 = vector.load %arg5[%c0_140, %c5_141, %c3_142] : memref<3x24x256xf32, #tpu.memory_space<vmem>>, vector<1x16x128xf32>
    %289 = vector.shape_cast %288 : vector<1x16x128xf32> to vector<16x128xf32>
    %290 = vector.broadcast %287 : f32 to vector<16x128xf32>
    %291 = arith.mulf %290, %289 : vector<16x128xf32>
    %292 = arith.addf %268, %291 : vector<16x128xf32>
    %c39 = arith.constant 39 : index
    %293 = memref.load %arg2[%c39] : memref<147xf32, #tpu.memory_space<smem>>
    %c0_143 = arith.constant 0 : index
    %c5_144 = arith.constant 5 : index
    %c4_145 = arith.constant 4 : index
    %294 = vector.load %arg5[%c0_143, %c5_144, %c4_145] : memref<3x24x256xf32, #tpu.memory_space<vmem>>, vector<1x16x128xf32>
    %295 = vector.shape_cast %294 : vector<1x16x128xf32> to vector<16x128xf32>
    %296 = vector.broadcast %293 : f32 to vector<16x128xf32>
    %297 = arith.mulf %296, %295 : vector<16x128xf32>
    %298 = arith.addf %274, %297 : vector<16x128xf32>
    %c40 = arith.constant 40 : index
    %299 = memref.load %arg2[%c40] : memref<147xf32, #tpu.memory_space<smem>>
    %c0_146 = arith.constant 0 : index
    %c5_147 = arith.constant 5 : index
    %c5_148 = arith.constant 5 : index
    %300 = vector.load %arg5[%c0_146, %c5_147, %c5_148] : memref<3x24x256xf32, #tpu.memory_space<vmem>>, vector<1x16x128xf32>
    %301 = vector.shape_cast %300 : vector<1x16x128xf32> to vector<16x128xf32>
    %302 = vector.broadcast %299 : f32 to vector<16x128xf32>
    %303 = arith.mulf %302, %301 : vector<16x128xf32>
    %304 = arith.addf %280, %303 : vector<16x128xf32>
    %c41 = arith.constant 41 : index
    %305 = memref.load %arg2[%c41] : memref<147xf32, #tpu.memory_space<smem>>
    %c0_149 = arith.constant 0 : index
    %c5_150 = arith.constant 5 : index
    %c6_151 = arith.constant 6 : index
    %306 = vector.load %arg5[%c0_149, %c5_150, %c6_151] : memref<3x24x256xf32, #tpu.memory_space<vmem>>, vector<1x16x128xf32>
    %307 = vector.shape_cast %306 : vector<1x16x128xf32> to vector<16x128xf32>
    %308 = vector.broadcast %305 : f32 to vector<16x128xf32>
    %309 = arith.mulf %308, %307 : vector<16x128xf32>
    %310 = arith.addf %286, %309 : vector<16x128xf32>
    %c42 = arith.constant 42 : index
    %311 = memref.load %arg2[%c42] : memref<147xf32, #tpu.memory_space<smem>>
    %c0_152 = arith.constant 0 : index
    %c6_153 = arith.constant 6 : index
    %c0_154 = arith.constant 0 : index
    %312 = vector.load %arg5[%c0_152, %c6_153, %c0_154] : memref<3x24x256xf32, #tpu.memory_space<vmem>>, vector<1x16x128xf32>
    %313 = vector.shape_cast %312 : vector<1x16x128xf32> to vector<16x128xf32>
    %314 = vector.broadcast %311 : f32 to vector<16x128xf32>
    %315 = arith.mulf %314, %313 : vector<16x128xf32>
    %316 = arith.addf %292, %315 : vector<16x128xf32>
    %c43 = arith.constant 43 : index
    %317 = memref.load %arg2[%c43] : memref<147xf32, #tpu.memory_space<smem>>
    %c0_155 = arith.constant 0 : index
    %c6_156 = arith.constant 6 : index
    %c1_157 = arith.constant 1 : index
    %318 = vector.load %arg5[%c0_155, %c6_156, %c1_157] : memref<3x24x256xf32, #tpu.memory_space<vmem>>, vector<1x16x128xf32>
    %319 = vector.shape_cast %318 : vector<1x16x128xf32> to vector<16x128xf32>
    %320 = vector.broadcast %317 : f32 to vector<16x128xf32>
    %321 = arith.mulf %320, %319 : vector<16x128xf32>
    %322 = arith.addf %298, %321 : vector<16x128xf32>
    %c44 = arith.constant 44 : index
    %323 = memref.load %arg2[%c44] : memref<147xf32, #tpu.memory_space<smem>>
    %c0_158 = arith.constant 0 : index
    %c6_159 = arith.constant 6 : index
    %c2_160 = arith.constant 2 : index
    %324 = vector.load %arg5[%c0_158, %c6_159, %c2_160] : memref<3x24x256xf32, #tpu.memory_space<vmem>>, vector<1x16x128xf32>
    %325 = vector.shape_cast %324 : vector<1x16x128xf32> to vector<16x128xf32>
    %326 = vector.broadcast %323 : f32 to vector<16x128xf32>
    %327 = arith.mulf %326, %325 : vector<16x128xf32>
    %328 = arith.addf %304, %327 : vector<16x128xf32>
    %c45 = arith.constant 45 : index
    %329 = memref.load %arg2[%c45] : memref<147xf32, #tpu.memory_space<smem>>
    %c0_161 = arith.constant 0 : index
    %c6_162 = arith.constant 6 : index
    %c3_163 = arith.constant 3 : index
    %330 = vector.load %arg5[%c0_161, %c6_162, %c3_163] : memref<3x24x256xf32, #tpu.memory_space<vmem>>, vector<1x16x128xf32>
    %331 = vector.shape_cast %330 : vector<1x16x128xf32> to vector<16x128xf32>
    %332 = vector.broadcast %329 : f32 to vector<16x128xf32>
    %333 = arith.mulf %332, %331 : vector<16x128xf32>
    %334 = arith.addf %310, %333 : vector<16x128xf32>
    %c46 = arith.constant 46 : index
    %335 = memref.load %arg2[%c46] : memref<147xf32, #tpu.memory_space<smem>>
    %c0_164 = arith.constant 0 : index
    %c6_165 = arith.constant 6 : index
    %c4_166 = arith.constant 4 : index
    %336 = vector.load %arg5[%c0_164, %c6_165, %c4_166] : memref<3x24x256xf32, #tpu.memory_space<vmem>>, vector<1x16x128xf32>
    %337 = vector.shape_cast %336 : vector<1x16x128xf32> to vector<16x128xf32>
    %338 = vector.broadcast %335 : f32 to vector<16x128xf32>
    %339 = arith.mulf %338, %337 : vector<16x128xf32>
    %340 = arith.addf %316, %339 : vector<16x128xf32>
    %c47 = arith.constant 47 : index
    %341 = memref.load %arg2[%c47] : memref<147xf32, #tpu.memory_space<smem>>
    %c0_167 = arith.constant 0 : index
    %c6_168 = arith.constant 6 : index
    %c5_169 = arith.constant 5 : index
    %342 = vector.load %arg5[%c0_167, %c6_168, %c5_169] : memref<3x24x256xf32, #tpu.memory_space<vmem>>, vector<1x16x128xf32>
    %343 = vector.shape_cast %342 : vector<1x16x128xf32> to vector<16x128xf32>
    %344 = vector.broadcast %341 : f32 to vector<16x128xf32>
    %345 = arith.mulf %344, %343 : vector<16x128xf32>
    %346 = arith.addf %322, %345 : vector<16x128xf32>
    %c48 = arith.constant 48 : index
    %347 = memref.load %arg2[%c48] : memref<147xf32, #tpu.memory_space<smem>>
    %c0_170 = arith.constant 0 : index
    %c6_171 = arith.constant 6 : index
    %c6_172 = arith.constant 6 : index
    %348 = vector.load %arg5[%c0_170, %c6_171, %c6_172] : memref<3x24x256xf32, #tpu.memory_space<vmem>>, vector<1x16x128xf32>
    %349 = vector.shape_cast %348 : vector<1x16x128xf32> to vector<16x128xf32>
    %350 = vector.broadcast %347 : f32 to vector<16x128xf32>
    %351 = arith.mulf %350, %349 : vector<16x128xf32>
    %352 = arith.addf %328, %351 : vector<16x128xf32>
    %c49 = arith.constant 49 : index
    %353 = memref.load %arg2[%c49] : memref<147xf32, #tpu.memory_space<smem>>
    %c1_173 = arith.constant 1 : index
    %c0_174 = arith.constant 0 : index
    %c0_175 = arith.constant 0 : index
    %354 = vector.load %arg5[%c1_173, %c0_174, %c0_175] : memref<3x24x256xf32, #tpu.memory_space<vmem>>, vector<1x16x128xf32>
    %355 = vector.shape_cast %354 : vector<1x16x128xf32> to vector<16x128xf32>
    %356 = vector.broadcast %353 : f32 to vector<16x128xf32>
    %357 = arith.mulf %356, %355 : vector<16x128xf32>
    %358 = arith.addf %334, %357 : vector<16x128xf32>
    %c50 = arith.constant 50 : index
    %359 = memref.load %arg2[%c50] : memref<147xf32, #tpu.memory_space<smem>>
    %c1_176 = arith.constant 1 : index
    %c0_177 = arith.constant 0 : index
    %c1_178 = arith.constant 1 : index
    %360 = vector.load %arg5[%c1_176, %c0_177, %c1_178] : memref<3x24x256xf32, #tpu.memory_space<vmem>>, vector<1x16x128xf32>
    %361 = vector.shape_cast %360 : vector<1x16x128xf32> to vector<16x128xf32>
    %362 = vector.broadcast %359 : f32 to vector<16x128xf32>
    %363 = arith.mulf %362, %361 : vector<16x128xf32>
    %364 = arith.addf %340, %363 : vector<16x128xf32>
    %c51 = arith.constant 51 : index
    %365 = memref.load %arg2[%c51] : memref<147xf32, #tpu.memory_space<smem>>
    %c1_179 = arith.constant 1 : index
    %c0_180 = arith.constant 0 : index
    %c2_181 = arith.constant 2 : index
    %366 = vector.load %arg5[%c1_179, %c0_180, %c2_181] : memref<3x24x256xf32, #tpu.memory_space<vmem>>, vector<1x16x128xf32>
    %367 = vector.shape_cast %366 : vector<1x16x128xf32> to vector<16x128xf32>
    %368 = vector.broadcast %365 : f32 to vector<16x128xf32>
    %369 = arith.mulf %368, %367 : vector<16x128xf32>
    %370 = arith.addf %346, %369 : vector<16x128xf32>
    %c52 = arith.constant 52 : index
    %371 = memref.load %arg2[%c52] : memref<147xf32, #tpu.memory_space<smem>>
    %c1_182 = arith.constant 1 : index
    %c0_183 = arith.constant 0 : index
    %c3_184 = arith.constant 3 : index
    %372 = vector.load %arg5[%c1_182, %c0_183, %c3_184] : memref<3x24x256xf32, #tpu.memory_space<vmem>>, vector<1x16x128xf32>
    %373 = vector.shape_cast %372 : vector<1x16x128xf32> to vector<16x128xf32>
    %374 = vector.broadcast %371 : f32 to vector<16x128xf32>
    %375 = arith.mulf %374, %373 : vector<16x128xf32>
    %376 = arith.addf %352, %375 : vector<16x128xf32>
    %c53 = arith.constant 53 : index
    %377 = memref.load %arg2[%c53] : memref<147xf32, #tpu.memory_space<smem>>
    %c1_185 = arith.constant 1 : index
    %c0_186 = arith.constant 0 : index
    %c4_187 = arith.constant 4 : index
    %378 = vector.load %arg5[%c1_185, %c0_186, %c4_187] : memref<3x24x256xf32, #tpu.memory_space<vmem>>, vector<1x16x128xf32>
    %379 = vector.shape_cast %378 : vector<1x16x128xf32> to vector<16x128xf32>
    %380 = vector.broadcast %377 : f32 to vector<16x128xf32>
    %381 = arith.mulf %380, %379 : vector<16x128xf32>
    %382 = arith.addf %358, %381 : vector<16x128xf32>
    %c54 = arith.constant 54 : index
    %383 = memref.load %arg2[%c54] : memref<147xf32, #tpu.memory_space<smem>>
    %c1_188 = arith.constant 1 : index
    %c0_189 = arith.constant 0 : index
    %c5_190 = arith.constant 5 : index
    %384 = vector.load %arg5[%c1_188, %c0_189, %c5_190] : memref<3x24x256xf32, #tpu.memory_space<vmem>>, vector<1x16x128xf32>
    %385 = vector.shape_cast %384 : vector<1x16x128xf32> to vector<16x128xf32>
    %386 = vector.broadcast %383 : f32 to vector<16x128xf32>
    %387 = arith.mulf %386, %385 : vector<16x128xf32>
    %388 = arith.addf %364, %387 : vector<16x128xf32>
    %c55 = arith.constant 55 : index
    %389 = memref.load %arg2[%c55] : memref<147xf32, #tpu.memory_space<smem>>
    %c1_191 = arith.constant 1 : index
    %c0_192 = arith.constant 0 : index
    %c6_193 = arith.constant 6 : index
    %390 = vector.load %arg5[%c1_191, %c0_192, %c6_193] : memref<3x24x256xf32, #tpu.memory_space<vmem>>, vector<1x16x128xf32>
    %391 = vector.shape_cast %390 : vector<1x16x128xf32> to vector<16x128xf32>
    %392 = vector.broadcast %389 : f32 to vector<16x128xf32>
    %393 = arith.mulf %392, %391 : vector<16x128xf32>
    %394 = arith.addf %370, %393 : vector<16x128xf32>
    %c56 = arith.constant 56 : index
    %395 = memref.load %arg2[%c56] : memref<147xf32, #tpu.memory_space<smem>>
    %c1_194 = arith.constant 1 : index
    %c1_195 = arith.constant 1 : index
    %c0_196 = arith.constant 0 : index
    %396 = vector.load %arg5[%c1_194, %c1_195, %c0_196] : memref<3x24x256xf32, #tpu.memory_space<vmem>>, vector<1x16x128xf32>
    %397 = vector.shape_cast %396 : vector<1x16x128xf32> to vector<16x128xf32>
    %398 = vector.broadcast %395 : f32 to vector<16x128xf32>
    %399 = arith.mulf %398, %397 : vector<16x128xf32>
    %400 = arith.addf %376, %399 : vector<16x128xf32>
    %c57 = arith.constant 57 : index
    %401 = memref.load %arg2[%c57] : memref<147xf32, #tpu.memory_space<smem>>
    %c1_197 = arith.constant 1 : index
    %c1_198 = arith.constant 1 : index
    %c1_199 = arith.constant 1 : index
    %402 = vector.load %arg5[%c1_197, %c1_198, %c1_199] : memref<3x24x256xf32, #tpu.memory_space<vmem>>, vector<1x16x128xf32>
    %403 = vector.shape_cast %402 : vector<1x16x128xf32> to vector<16x128xf32>
    %404 = vector.broadcast %401 : f32 to vector<16x128xf32>
    %405 = arith.mulf %404, %403 : vector<16x128xf32>
    %406 = arith.addf %382, %405 : vector<16x128xf32>
    %c58 = arith.constant 58 : index
    %407 = memref.load %arg2[%c58] : memref<147xf32, #tpu.memory_space<smem>>
    %c1_200 = arith.constant 1 : index
    %c1_201 = arith.constant 1 : index
    %c2_202 = arith.constant 2 : index
    %408 = vector.load %arg5[%c1_200, %c1_201, %c2_202] : memref<3x24x256xf32, #tpu.memory_space<vmem>>, vector<1x16x128xf32>
    %409 = vector.shape_cast %408 : vector<1x16x128xf32> to vector<16x128xf32>
    %410 = vector.broadcast %407 : f32 to vector<16x128xf32>
    %411 = arith.mulf %410, %409 : vector<16x128xf32>
    %412 = arith.addf %388, %411 : vector<16x128xf32>
    %c59 = arith.constant 59 : index
    %413 = memref.load %arg2[%c59] : memref<147xf32, #tpu.memory_space<smem>>
    %c1_203 = arith.constant 1 : index
    %c1_204 = arith.constant 1 : index
    %c3_205 = arith.constant 3 : index
    %414 = vector.load %arg5[%c1_203, %c1_204, %c3_205] : memref<3x24x256xf32, #tpu.memory_space<vmem>>, vector<1x16x128xf32>
    %415 = vector.shape_cast %414 : vector<1x16x128xf32> to vector<16x128xf32>
    %416 = vector.broadcast %413 : f32 to vector<16x128xf32>
    %417 = arith.mulf %416, %415 : vector<16x128xf32>
    %418 = arith.addf %394, %417 : vector<16x128xf32>
    %c60 = arith.constant 60 : index
    %419 = memref.load %arg2[%c60] : memref<147xf32, #tpu.memory_space<smem>>
    %c1_206 = arith.constant 1 : index
    %c1_207 = arith.constant 1 : index
    %c4_208 = arith.constant 4 : index
    %420 = vector.load %arg5[%c1_206, %c1_207, %c4_208] : memref<3x24x256xf32, #tpu.memory_space<vmem>>, vector<1x16x128xf32>
    %421 = vector.shape_cast %420 : vector<1x16x128xf32> to vector<16x128xf32>
    %422 = vector.broadcast %419 : f32 to vector<16x128xf32>
    %423 = arith.mulf %422, %421 : vector<16x128xf32>
    %424 = arith.addf %400, %423 : vector<16x128xf32>
    %c61 = arith.constant 61 : index
    %425 = memref.load %arg2[%c61] : memref<147xf32, #tpu.memory_space<smem>>
    %c1_209 = arith.constant 1 : index
    %c1_210 = arith.constant 1 : index
    %c5_211 = arith.constant 5 : index
    %426 = vector.load %arg5[%c1_209, %c1_210, %c5_211] : memref<3x24x256xf32, #tpu.memory_space<vmem>>, vector<1x16x128xf32>
    %427 = vector.shape_cast %426 : vector<1x16x128xf32> to vector<16x128xf32>
    %428 = vector.broadcast %425 : f32 to vector<16x128xf32>
    %429 = arith.mulf %428, %427 : vector<16x128xf32>
    %430 = arith.addf %406, %429 : vector<16x128xf32>
    %c62 = arith.constant 62 : index
    %431 = memref.load %arg2[%c62] : memref<147xf32, #tpu.memory_space<smem>>
    %c1_212 = arith.constant 1 : index
    %c1_213 = arith.constant 1 : index
    %c6_214 = arith.constant 6 : index
    %432 = vector.load %arg5[%c1_212, %c1_213, %c6_214] : memref<3x24x256xf32, #tpu.memory_space<vmem>>, vector<1x16x128xf32>
    %433 = vector.shape_cast %432 : vector<1x16x128xf32> to vector<16x128xf32>
    %434 = vector.broadcast %431 : f32 to vector<16x128xf32>
    %435 = arith.mulf %434, %433 : vector<16x128xf32>
    %436 = arith.addf %412, %435 : vector<16x128xf32>
    %c63 = arith.constant 63 : index
    %437 = memref.load %arg2[%c63] : memref<147xf32, #tpu.memory_space<smem>>
    %c1_215 = arith.constant 1 : index
    %c2_216 = arith.constant 2 : index
    %c0_217 = arith.constant 0 : index
    %438 = vector.load %arg5[%c1_215, %c2_216, %c0_217] : memref<3x24x256xf32, #tpu.memory_space<vmem>>, vector<1x16x128xf32>
    %439 = vector.shape_cast %438 : vector<1x16x128xf32> to vector<16x128xf32>
    %440 = vector.broadcast %437 : f32 to vector<16x128xf32>
    %441 = arith.mulf %440, %439 : vector<16x128xf32>
    %442 = arith.addf %418, %441 : vector<16x128xf32>
    %c64 = arith.constant 64 : index
    %443 = memref.load %arg2[%c64] : memref<147xf32, #tpu.memory_space<smem>>
    %c1_218 = arith.constant 1 : index
    %c2_219 = arith.constant 2 : index
    %c1_220 = arith.constant 1 : index
    %444 = vector.load %arg5[%c1_218, %c2_219, %c1_220] : memref<3x24x256xf32, #tpu.memory_space<vmem>>, vector<1x16x128xf32>
    %445 = vector.shape_cast %444 : vector<1x16x128xf32> to vector<16x128xf32>
    %446 = vector.broadcast %443 : f32 to vector<16x128xf32>
    %447 = arith.mulf %446, %445 : vector<16x128xf32>
    %448 = arith.addf %424, %447 : vector<16x128xf32>
    %c65 = arith.constant 65 : index
    %449 = memref.load %arg2[%c65] : memref<147xf32, #tpu.memory_space<smem>>
    %c1_221 = arith.constant 1 : index
    %c2_222 = arith.constant 2 : index
    %c2_223 = arith.constant 2 : index
    %450 = vector.load %arg5[%c1_221, %c2_222, %c2_223] : memref<3x24x256xf32, #tpu.memory_space<vmem>>, vector<1x16x128xf32>
    %451 = vector.shape_cast %450 : vector<1x16x128xf32> to vector<16x128xf32>
    %452 = vector.broadcast %449 : f32 to vector<16x128xf32>
    %453 = arith.mulf %452, %451 : vector<16x128xf32>
    %454 = arith.addf %430, %453 : vector<16x128xf32>
    %c66 = arith.constant 66 : index
    %455 = memref.load %arg2[%c66] : memref<147xf32, #tpu.memory_space<smem>>
    %c1_224 = arith.constant 1 : index
    %c2_225 = arith.constant 2 : index
    %c3_226 = arith.constant 3 : index
    %456 = vector.load %arg5[%c1_224, %c2_225, %c3_226] : memref<3x24x256xf32, #tpu.memory_space<vmem>>, vector<1x16x128xf32>
    %457 = vector.shape_cast %456 : vector<1x16x128xf32> to vector<16x128xf32>
    %458 = vector.broadcast %455 : f32 to vector<16x128xf32>
    %459 = arith.mulf %458, %457 : vector<16x128xf32>
    %460 = arith.addf %436, %459 : vector<16x128xf32>
    %c67 = arith.constant 67 : index
    %461 = memref.load %arg2[%c67] : memref<147xf32, #tpu.memory_space<smem>>
    %c1_227 = arith.constant 1 : index
    %c2_228 = arith.constant 2 : index
    %c4_229 = arith.constant 4 : index
    %462 = vector.load %arg5[%c1_227, %c2_228, %c4_229] : memref<3x24x256xf32, #tpu.memory_space<vmem>>, vector<1x16x128xf32>
    %463 = vector.shape_cast %462 : vector<1x16x128xf32> to vector<16x128xf32>
    %464 = vector.broadcast %461 : f32 to vector<16x128xf32>
    %465 = arith.mulf %464, %463 : vector<16x128xf32>
    %466 = arith.addf %442, %465 : vector<16x128xf32>
    %c68 = arith.constant 68 : index
    %467 = memref.load %arg2[%c68] : memref<147xf32, #tpu.memory_space<smem>>
    %c1_230 = arith.constant 1 : index
    %c2_231 = arith.constant 2 : index
    %c5_232 = arith.constant 5 : index
    %468 = vector.load %arg5[%c1_230, %c2_231, %c5_232] : memref<3x24x256xf32, #tpu.memory_space<vmem>>, vector<1x16x128xf32>
    %469 = vector.shape_cast %468 : vector<1x16x128xf32> to vector<16x128xf32>
    %470 = vector.broadcast %467 : f32 to vector<16x128xf32>
    %471 = arith.mulf %470, %469 : vector<16x128xf32>
    %472 = arith.addf %448, %471 : vector<16x128xf32>
    %c69 = arith.constant 69 : index
    %473 = memref.load %arg2[%c69] : memref<147xf32, #tpu.memory_space<smem>>
    %c1_233 = arith.constant 1 : index
    %c2_234 = arith.constant 2 : index
    %c6_235 = arith.constant 6 : index
    %474 = vector.load %arg5[%c1_233, %c2_234, %c6_235] : memref<3x24x256xf32, #tpu.memory_space<vmem>>, vector<1x16x128xf32>
    %475 = vector.shape_cast %474 : vector<1x16x128xf32> to vector<16x128xf32>
    %476 = vector.broadcast %473 : f32 to vector<16x128xf32>
    %477 = arith.mulf %476, %475 : vector<16x128xf32>
    %478 = arith.addf %454, %477 : vector<16x128xf32>
    %c70 = arith.constant 70 : index
    %479 = memref.load %arg2[%c70] : memref<147xf32, #tpu.memory_space<smem>>
    %c1_236 = arith.constant 1 : index
    %c3_237 = arith.constant 3 : index
    %c0_238 = arith.constant 0 : index
    %480 = vector.load %arg5[%c1_236, %c3_237, %c0_238] : memref<3x24x256xf32, #tpu.memory_space<vmem>>, vector<1x16x128xf32>
    %481 = vector.shape_cast %480 : vector<1x16x128xf32> to vector<16x128xf32>
    %482 = vector.broadcast %479 : f32 to vector<16x128xf32>
    %483 = arith.mulf %482, %481 : vector<16x128xf32>
    %484 = arith.addf %460, %483 : vector<16x128xf32>
    %c71 = arith.constant 71 : index
    %485 = memref.load %arg2[%c71] : memref<147xf32, #tpu.memory_space<smem>>
    %c1_239 = arith.constant 1 : index
    %c3_240 = arith.constant 3 : index
    %c1_241 = arith.constant 1 : index
    %486 = vector.load %arg5[%c1_239, %c3_240, %c1_241] : memref<3x24x256xf32, #tpu.memory_space<vmem>>, vector<1x16x128xf32>
    %487 = vector.shape_cast %486 : vector<1x16x128xf32> to vector<16x128xf32>
    %488 = vector.broadcast %485 : f32 to vector<16x128xf32>
    %489 = arith.mulf %488, %487 : vector<16x128xf32>
    %490 = arith.addf %466, %489 : vector<16x128xf32>
    %c72 = arith.constant 72 : index
    %491 = memref.load %arg2[%c72] : memref<147xf32, #tpu.memory_space<smem>>
    %c1_242 = arith.constant 1 : index
    %c3_243 = arith.constant 3 : index
    %c2_244 = arith.constant 2 : index
    %492 = vector.load %arg5[%c1_242, %c3_243, %c2_244] : memref<3x24x256xf32, #tpu.memory_space<vmem>>, vector<1x16x128xf32>
    %493 = vector.shape_cast %492 : vector<1x16x128xf32> to vector<16x128xf32>
    %494 = vector.broadcast %491 : f32 to vector<16x128xf32>
    %495 = arith.mulf %494, %493 : vector<16x128xf32>
    %496 = arith.addf %472, %495 : vector<16x128xf32>
    %c73 = arith.constant 73 : index
    %497 = memref.load %arg2[%c73] : memref<147xf32, #tpu.memory_space<smem>>
    %c1_245 = arith.constant 1 : index
    %c3_246 = arith.constant 3 : index
    %c3_247 = arith.constant 3 : index
    %498 = vector.load %arg5[%c1_245, %c3_246, %c3_247] : memref<3x24x256xf32, #tpu.memory_space<vmem>>, vector<1x16x128xf32>
    %499 = vector.shape_cast %498 : vector<1x16x128xf32> to vector<16x128xf32>
    %500 = vector.broadcast %497 : f32 to vector<16x128xf32>
    %501 = arith.mulf %500, %499 : vector<16x128xf32>
    %502 = arith.addf %478, %501 : vector<16x128xf32>
    %c74 = arith.constant 74 : index
    %503 = memref.load %arg2[%c74] : memref<147xf32, #tpu.memory_space<smem>>
    %c1_248 = arith.constant 1 : index
    %c3_249 = arith.constant 3 : index
    %c4_250 = arith.constant 4 : index
    %504 = vector.load %arg5[%c1_248, %c3_249, %c4_250] : memref<3x24x256xf32, #tpu.memory_space<vmem>>, vector<1x16x128xf32>
    %505 = vector.shape_cast %504 : vector<1x16x128xf32> to vector<16x128xf32>
    %506 = vector.broadcast %503 : f32 to vector<16x128xf32>
    %507 = arith.mulf %506, %505 : vector<16x128xf32>
    %508 = arith.addf %484, %507 : vector<16x128xf32>
    %c75 = arith.constant 75 : index
    %509 = memref.load %arg2[%c75] : memref<147xf32, #tpu.memory_space<smem>>
    %c1_251 = arith.constant 1 : index
    %c3_252 = arith.constant 3 : index
    %c5_253 = arith.constant 5 : index
    %510 = vector.load %arg5[%c1_251, %c3_252, %c5_253] : memref<3x24x256xf32, #tpu.memory_space<vmem>>, vector<1x16x128xf32>
    %511 = vector.shape_cast %510 : vector<1x16x128xf32> to vector<16x128xf32>
    %512 = vector.broadcast %509 : f32 to vector<16x128xf32>
    %513 = arith.mulf %512, %511 : vector<16x128xf32>
    %514 = arith.addf %490, %513 : vector<16x128xf32>
    %c76 = arith.constant 76 : index
    %515 = memref.load %arg2[%c76] : memref<147xf32, #tpu.memory_space<smem>>
    %c1_254 = arith.constant 1 : index
    %c3_255 = arith.constant 3 : index
    %c6_256 = arith.constant 6 : index
    %516 = vector.load %arg5[%c1_254, %c3_255, %c6_256] : memref<3x24x256xf32, #tpu.memory_space<vmem>>, vector<1x16x128xf32>
    %517 = vector.shape_cast %516 : vector<1x16x128xf32> to vector<16x128xf32>
    %518 = vector.broadcast %515 : f32 to vector<16x128xf32>
    %519 = arith.mulf %518, %517 : vector<16x128xf32>
    %520 = arith.addf %496, %519 : vector<16x128xf32>
    %c77 = arith.constant 77 : index
    %521 = memref.load %arg2[%c77] : memref<147xf32, #tpu.memory_space<smem>>
    %c1_257 = arith.constant 1 : index
    %c4_258 = arith.constant 4 : index
    %c0_259 = arith.constant 0 : index
    %522 = vector.load %arg5[%c1_257, %c4_258, %c0_259] : memref<3x24x256xf32, #tpu.memory_space<vmem>>, vector<1x16x128xf32>
    %523 = vector.shape_cast %522 : vector<1x16x128xf32> to vector<16x128xf32>
    %524 = vector.broadcast %521 : f32 to vector<16x128xf32>
    %525 = arith.mulf %524, %523 : vector<16x128xf32>
    %526 = arith.addf %502, %525 : vector<16x128xf32>
    %c78 = arith.constant 78 : index
    %527 = memref.load %arg2[%c78] : memref<147xf32, #tpu.memory_space<smem>>
    %c1_260 = arith.constant 1 : index
    %c4_261 = arith.constant 4 : index
    %c1_262 = arith.constant 1 : index
    %528 = vector.load %arg5[%c1_260, %c4_261, %c1_262] : memref<3x24x256xf32, #tpu.memory_space<vmem>>, vector<1x16x128xf32>
    %529 = vector.shape_cast %528 : vector<1x16x128xf32> to vector<16x128xf32>
    %530 = vector.broadcast %527 : f32 to vector<16x128xf32>
    %531 = arith.mulf %530, %529 : vector<16x128xf32>
    %532 = arith.addf %508, %531 : vector<16x128xf32>
    %c79 = arith.constant 79 : index
    %533 = memref.load %arg2[%c79] : memref<147xf32, #tpu.memory_space<smem>>
    %c1_263 = arith.constant 1 : index
    %c4_264 = arith.constant 4 : index
    %c2_265 = arith.constant 2 : index
    %534 = vector.load %arg5[%c1_263, %c4_264, %c2_265] : memref<3x24x256xf32, #tpu.memory_space<vmem>>, vector<1x16x128xf32>
    %535 = vector.shape_cast %534 : vector<1x16x128xf32> to vector<16x128xf32>
    %536 = vector.broadcast %533 : f32 to vector<16x128xf32>
    %537 = arith.mulf %536, %535 : vector<16x128xf32>
    %538 = arith.addf %514, %537 : vector<16x128xf32>
    %c80 = arith.constant 80 : index
    %539 = memref.load %arg2[%c80] : memref<147xf32, #tpu.memory_space<smem>>
    %c1_266 = arith.constant 1 : index
    %c4_267 = arith.constant 4 : index
    %c3_268 = arith.constant 3 : index
    %540 = vector.load %arg5[%c1_266, %c4_267, %c3_268] : memref<3x24x256xf32, #tpu.memory_space<vmem>>, vector<1x16x128xf32>
    %541 = vector.shape_cast %540 : vector<1x16x128xf32> to vector<16x128xf32>
    %542 = vector.broadcast %539 : f32 to vector<16x128xf32>
    %543 = arith.mulf %542, %541 : vector<16x128xf32>
    %544 = arith.addf %520, %543 : vector<16x128xf32>
    %c81 = arith.constant 81 : index
    %545 = memref.load %arg2[%c81] : memref<147xf32, #tpu.memory_space<smem>>
    %c1_269 = arith.constant 1 : index
    %c4_270 = arith.constant 4 : index
    %c4_271 = arith.constant 4 : index
    %546 = vector.load %arg5[%c1_269, %c4_270, %c4_271] : memref<3x24x256xf32, #tpu.memory_space<vmem>>, vector<1x16x128xf32>
    %547 = vector.shape_cast %546 : vector<1x16x128xf32> to vector<16x128xf32>
    %548 = vector.broadcast %545 : f32 to vector<16x128xf32>
    %549 = arith.mulf %548, %547 : vector<16x128xf32>
    %550 = arith.addf %526, %549 : vector<16x128xf32>
    %c82 = arith.constant 82 : index
    %551 = memref.load %arg2[%c82] : memref<147xf32, #tpu.memory_space<smem>>
    %c1_272 = arith.constant 1 : index
    %c4_273 = arith.constant 4 : index
    %c5_274 = arith.constant 5 : index
    %552 = vector.load %arg5[%c1_272, %c4_273, %c5_274] : memref<3x24x256xf32, #tpu.memory_space<vmem>>, vector<1x16x128xf32>
    %553 = vector.shape_cast %552 : vector<1x16x128xf32> to vector<16x128xf32>
    %554 = vector.broadcast %551 : f32 to vector<16x128xf32>
    %555 = arith.mulf %554, %553 : vector<16x128xf32>
    %556 = arith.addf %532, %555 : vector<16x128xf32>
    %c83 = arith.constant 83 : index
    %557 = memref.load %arg2[%c83] : memref<147xf32, #tpu.memory_space<smem>>
    %c1_275 = arith.constant 1 : index
    %c4_276 = arith.constant 4 : index
    %c6_277 = arith.constant 6 : index
    %558 = vector.load %arg5[%c1_275, %c4_276, %c6_277] : memref<3x24x256xf32, #tpu.memory_space<vmem>>, vector<1x16x128xf32>
    %559 = vector.shape_cast %558 : vector<1x16x128xf32> to vector<16x128xf32>
    %560 = vector.broadcast %557 : f32 to vector<16x128xf32>
    %561 = arith.mulf %560, %559 : vector<16x128xf32>
    %562 = arith.addf %538, %561 : vector<16x128xf32>
    %c84 = arith.constant 84 : index
    %563 = memref.load %arg2[%c84] : memref<147xf32, #tpu.memory_space<smem>>
    %c1_278 = arith.constant 1 : index
    %c5_279 = arith.constant 5 : index
    %c0_280 = arith.constant 0 : index
    %564 = vector.load %arg5[%c1_278, %c5_279, %c0_280] : memref<3x24x256xf32, #tpu.memory_space<vmem>>, vector<1x16x128xf32>
    %565 = vector.shape_cast %564 : vector<1x16x128xf32> to vector<16x128xf32>
    %566 = vector.broadcast %563 : f32 to vector<16x128xf32>
    %567 = arith.mulf %566, %565 : vector<16x128xf32>
    %568 = arith.addf %544, %567 : vector<16x128xf32>
    %c85 = arith.constant 85 : index
    %569 = memref.load %arg2[%c85] : memref<147xf32, #tpu.memory_space<smem>>
    %c1_281 = arith.constant 1 : index
    %c5_282 = arith.constant 5 : index
    %c1_283 = arith.constant 1 : index
    %570 = vector.load %arg5[%c1_281, %c5_282, %c1_283] : memref<3x24x256xf32, #tpu.memory_space<vmem>>, vector<1x16x128xf32>
    %571 = vector.shape_cast %570 : vector<1x16x128xf32> to vector<16x128xf32>
    %572 = vector.broadcast %569 : f32 to vector<16x128xf32>
    %573 = arith.mulf %572, %571 : vector<16x128xf32>
    %574 = arith.addf %550, %573 : vector<16x128xf32>
    %c86 = arith.constant 86 : index
    %575 = memref.load %arg2[%c86] : memref<147xf32, #tpu.memory_space<smem>>
    %c1_284 = arith.constant 1 : index
    %c5_285 = arith.constant 5 : index
    %c2_286 = arith.constant 2 : index
    %576 = vector.load %arg5[%c1_284, %c5_285, %c2_286] : memref<3x24x256xf32, #tpu.memory_space<vmem>>, vector<1x16x128xf32>
    %577 = vector.shape_cast %576 : vector<1x16x128xf32> to vector<16x128xf32>
    %578 = vector.broadcast %575 : f32 to vector<16x128xf32>
    %579 = arith.mulf %578, %577 : vector<16x128xf32>
    %580 = arith.addf %556, %579 : vector<16x128xf32>
    %c87 = arith.constant 87 : index
    %581 = memref.load %arg2[%c87] : memref<147xf32, #tpu.memory_space<smem>>
    %c1_287 = arith.constant 1 : index
    %c5_288 = arith.constant 5 : index
    %c3_289 = arith.constant 3 : index
    %582 = vector.load %arg5[%c1_287, %c5_288, %c3_289] : memref<3x24x256xf32, #tpu.memory_space<vmem>>, vector<1x16x128xf32>
    %583 = vector.shape_cast %582 : vector<1x16x128xf32> to vector<16x128xf32>
    %584 = vector.broadcast %581 : f32 to vector<16x128xf32>
    %585 = arith.mulf %584, %583 : vector<16x128xf32>
    %586 = arith.addf %562, %585 : vector<16x128xf32>
    %c88 = arith.constant 88 : index
    %587 = memref.load %arg2[%c88] : memref<147xf32, #tpu.memory_space<smem>>
    %c1_290 = arith.constant 1 : index
    %c5_291 = arith.constant 5 : index
    %c4_292 = arith.constant 4 : index
    %588 = vector.load %arg5[%c1_290, %c5_291, %c4_292] : memref<3x24x256xf32, #tpu.memory_space<vmem>>, vector<1x16x128xf32>
    %589 = vector.shape_cast %588 : vector<1x16x128xf32> to vector<16x128xf32>
    %590 = vector.broadcast %587 : f32 to vector<16x128xf32>
    %591 = arith.mulf %590, %589 : vector<16x128xf32>
    %592 = arith.addf %568, %591 : vector<16x128xf32>
    %c89 = arith.constant 89 : index
    %593 = memref.load %arg2[%c89] : memref<147xf32, #tpu.memory_space<smem>>
    %c1_293 = arith.constant 1 : index
    %c5_294 = arith.constant 5 : index
    %c5_295 = arith.constant 5 : index
    %594 = vector.load %arg5[%c1_293, %c5_294, %c5_295] : memref<3x24x256xf32, #tpu.memory_space<vmem>>, vector<1x16x128xf32>
    %595 = vector.shape_cast %594 : vector<1x16x128xf32> to vector<16x128xf32>
    %596 = vector.broadcast %593 : f32 to vector<16x128xf32>
    %597 = arith.mulf %596, %595 : vector<16x128xf32>
    %598 = arith.addf %574, %597 : vector<16x128xf32>
    %c90 = arith.constant 90 : index
    %599 = memref.load %arg2[%c90] : memref<147xf32, #tpu.memory_space<smem>>
    %c1_296 = arith.constant 1 : index
    %c5_297 = arith.constant 5 : index
    %c6_298 = arith.constant 6 : index
    %600 = vector.load %arg5[%c1_296, %c5_297, %c6_298] : memref<3x24x256xf32, #tpu.memory_space<vmem>>, vector<1x16x128xf32>
    %601 = vector.shape_cast %600 : vector<1x16x128xf32> to vector<16x128xf32>
    %602 = vector.broadcast %599 : f32 to vector<16x128xf32>
    %603 = arith.mulf %602, %601 : vector<16x128xf32>
    %604 = arith.addf %580, %603 : vector<16x128xf32>
    %c91 = arith.constant 91 : index
    %605 = memref.load %arg2[%c91] : memref<147xf32, #tpu.memory_space<smem>>
    %c1_299 = arith.constant 1 : index
    %c6_300 = arith.constant 6 : index
    %c0_301 = arith.constant 0 : index
    %606 = vector.load %arg5[%c1_299, %c6_300, %c0_301] : memref<3x24x256xf32, #tpu.memory_space<vmem>>, vector<1x16x128xf32>
    %607 = vector.shape_cast %606 : vector<1x16x128xf32> to vector<16x128xf32>
    %608 = vector.broadcast %605 : f32 to vector<16x128xf32>
    %609 = arith.mulf %608, %607 : vector<16x128xf32>
    %610 = arith.addf %586, %609 : vector<16x128xf32>
    %c92 = arith.constant 92 : index
    %611 = memref.load %arg2[%c92] : memref<147xf32, #tpu.memory_space<smem>>
    %c1_302 = arith.constant 1 : index
    %c6_303 = arith.constant 6 : index
    %c1_304 = arith.constant 1 : index
    %612 = vector.load %arg5[%c1_302, %c6_303, %c1_304] : memref<3x24x256xf32, #tpu.memory_space<vmem>>, vector<1x16x128xf32>
    %613 = vector.shape_cast %612 : vector<1x16x128xf32> to vector<16x128xf32>
    %614 = vector.broadcast %611 : f32 to vector<16x128xf32>
    %615 = arith.mulf %614, %613 : vector<16x128xf32>
    %616 = arith.addf %592, %615 : vector<16x128xf32>
    %c93 = arith.constant 93 : index
    %617 = memref.load %arg2[%c93] : memref<147xf32, #tpu.memory_space<smem>>
    %c1_305 = arith.constant 1 : index
    %c6_306 = arith.constant 6 : index
    %c2_307 = arith.constant 2 : index
    %618 = vector.load %arg5[%c1_305, %c6_306, %c2_307] : memref<3x24x256xf32, #tpu.memory_space<vmem>>, vector<1x16x128xf32>
    %619 = vector.shape_cast %618 : vector<1x16x128xf32> to vector<16x128xf32>
    %620 = vector.broadcast %617 : f32 to vector<16x128xf32>
    %621 = arith.mulf %620, %619 : vector<16x128xf32>
    %622 = arith.addf %598, %621 : vector<16x128xf32>
    %c94 = arith.constant 94 : index
    %623 = memref.load %arg2[%c94] : memref<147xf32, #tpu.memory_space<smem>>
    %c1_308 = arith.constant 1 : index
    %c6_309 = arith.constant 6 : index
    %c3_310 = arith.constant 3 : index
    %624 = vector.load %arg5[%c1_308, %c6_309, %c3_310] : memref<3x24x256xf32, #tpu.memory_space<vmem>>, vector<1x16x128xf32>
    %625 = vector.shape_cast %624 : vector<1x16x128xf32> to vector<16x128xf32>
    %626 = vector.broadcast %623 : f32 to vector<16x128xf32>
    %627 = arith.mulf %626, %625 : vector<16x128xf32>
    %628 = arith.addf %604, %627 : vector<16x128xf32>
    %c95 = arith.constant 95 : index
    %629 = memref.load %arg2[%c95] : memref<147xf32, #tpu.memory_space<smem>>
    %c1_311 = arith.constant 1 : index
    %c6_312 = arith.constant 6 : index
    %c4_313 = arith.constant 4 : index
    %630 = vector.load %arg5[%c1_311, %c6_312, %c4_313] : memref<3x24x256xf32, #tpu.memory_space<vmem>>, vector<1x16x128xf32>
    %631 = vector.shape_cast %630 : vector<1x16x128xf32> to vector<16x128xf32>
    %632 = vector.broadcast %629 : f32 to vector<16x128xf32>
    %633 = arith.mulf %632, %631 : vector<16x128xf32>
    %634 = arith.addf %610, %633 : vector<16x128xf32>
    %c96 = arith.constant 96 : index
    %635 = memref.load %arg2[%c96] : memref<147xf32, #tpu.memory_space<smem>>
    %c1_314 = arith.constant 1 : index
    %c6_315 = arith.constant 6 : index
    %c5_316 = arith.constant 5 : index
    %636 = vector.load %arg5[%c1_314, %c6_315, %c5_316] : memref<3x24x256xf32, #tpu.memory_space<vmem>>, vector<1x16x128xf32>
    %637 = vector.shape_cast %636 : vector<1x16x128xf32> to vector<16x128xf32>
    %638 = vector.broadcast %635 : f32 to vector<16x128xf32>
    %639 = arith.mulf %638, %637 : vector<16x128xf32>
    %640 = arith.addf %616, %639 : vector<16x128xf32>
    %c97 = arith.constant 97 : index
    %641 = memref.load %arg2[%c97] : memref<147xf32, #tpu.memory_space<smem>>
    %c1_317 = arith.constant 1 : index
    %c6_318 = arith.constant 6 : index
    %c6_319 = arith.constant 6 : index
    %642 = vector.load %arg5[%c1_317, %c6_318, %c6_319] : memref<3x24x256xf32, #tpu.memory_space<vmem>>, vector<1x16x128xf32>
    %643 = vector.shape_cast %642 : vector<1x16x128xf32> to vector<16x128xf32>
    %644 = vector.broadcast %641 : f32 to vector<16x128xf32>
    %645 = arith.mulf %644, %643 : vector<16x128xf32>
    %646 = arith.addf %622, %645 : vector<16x128xf32>
    %c98 = arith.constant 98 : index
    %647 = memref.load %arg2[%c98] : memref<147xf32, #tpu.memory_space<smem>>
    %c2_320 = arith.constant 2 : index
    %c0_321 = arith.constant 0 : index
    %c0_322 = arith.constant 0 : index
    %648 = vector.load %arg5[%c2_320, %c0_321, %c0_322] : memref<3x24x256xf32, #tpu.memory_space<vmem>>, vector<1x16x128xf32>
    %649 = vector.shape_cast %648 : vector<1x16x128xf32> to vector<16x128xf32>
    %650 = vector.broadcast %647 : f32 to vector<16x128xf32>
    %651 = arith.mulf %650, %649 : vector<16x128xf32>
    %652 = arith.addf %628, %651 : vector<16x128xf32>
    %c99 = arith.constant 99 : index
    %653 = memref.load %arg2[%c99] : memref<147xf32, #tpu.memory_space<smem>>
    %c2_323 = arith.constant 2 : index
    %c0_324 = arith.constant 0 : index
    %c1_325 = arith.constant 1 : index
    %654 = vector.load %arg5[%c2_323, %c0_324, %c1_325] : memref<3x24x256xf32, #tpu.memory_space<vmem>>, vector<1x16x128xf32>
    %655 = vector.shape_cast %654 : vector<1x16x128xf32> to vector<16x128xf32>
    %656 = vector.broadcast %653 : f32 to vector<16x128xf32>
    %657 = arith.mulf %656, %655 : vector<16x128xf32>
    %658 = arith.addf %634, %657 : vector<16x128xf32>
    %c100 = arith.constant 100 : index
    %659 = memref.load %arg2[%c100] : memref<147xf32, #tpu.memory_space<smem>>
    %c2_326 = arith.constant 2 : index
    %c0_327 = arith.constant 0 : index
    %c2_328 = arith.constant 2 : index
    %660 = vector.load %arg5[%c2_326, %c0_327, %c2_328] : memref<3x24x256xf32, #tpu.memory_space<vmem>>, vector<1x16x128xf32>
    %661 = vector.shape_cast %660 : vector<1x16x128xf32> to vector<16x128xf32>
    %662 = vector.broadcast %659 : f32 to vector<16x128xf32>
    %663 = arith.mulf %662, %661 : vector<16x128xf32>
    %664 = arith.addf %640, %663 : vector<16x128xf32>
    %c101 = arith.constant 101 : index
    %665 = memref.load %arg2[%c101] : memref<147xf32, #tpu.memory_space<smem>>
    %c2_329 = arith.constant 2 : index
    %c0_330 = arith.constant 0 : index
    %c3_331 = arith.constant 3 : index
    %666 = vector.load %arg5[%c2_329, %c0_330, %c3_331] : memref<3x24x256xf32, #tpu.memory_space<vmem>>, vector<1x16x128xf32>
    %667 = vector.shape_cast %666 : vector<1x16x128xf32> to vector<16x128xf32>
    %668 = vector.broadcast %665 : f32 to vector<16x128xf32>
    %669 = arith.mulf %668, %667 : vector<16x128xf32>
    %670 = arith.addf %646, %669 : vector<16x128xf32>
    %c102 = arith.constant 102 : index
    %671 = memref.load %arg2[%c102] : memref<147xf32, #tpu.memory_space<smem>>
    %c2_332 = arith.constant 2 : index
    %c0_333 = arith.constant 0 : index
    %c4_334 = arith.constant 4 : index
    %672 = vector.load %arg5[%c2_332, %c0_333, %c4_334] : memref<3x24x256xf32, #tpu.memory_space<vmem>>, vector<1x16x128xf32>
    %673 = vector.shape_cast %672 : vector<1x16x128xf32> to vector<16x128xf32>
    %674 = vector.broadcast %671 : f32 to vector<16x128xf32>
    %675 = arith.mulf %674, %673 : vector<16x128xf32>
    %676 = arith.addf %652, %675 : vector<16x128xf32>
    %c103 = arith.constant 103 : index
    %677 = memref.load %arg2[%c103] : memref<147xf32, #tpu.memory_space<smem>>
    %c2_335 = arith.constant 2 : index
    %c0_336 = arith.constant 0 : index
    %c5_337 = arith.constant 5 : index
    %678 = vector.load %arg5[%c2_335, %c0_336, %c5_337] : memref<3x24x256xf32, #tpu.memory_space<vmem>>, vector<1x16x128xf32>
    %679 = vector.shape_cast %678 : vector<1x16x128xf32> to vector<16x128xf32>
    %680 = vector.broadcast %677 : f32 to vector<16x128xf32>
    %681 = arith.mulf %680, %679 : vector<16x128xf32>
    %682 = arith.addf %658, %681 : vector<16x128xf32>
    %c104 = arith.constant 104 : index
    %683 = memref.load %arg2[%c104] : memref<147xf32, #tpu.memory_space<smem>>
    %c2_338 = arith.constant 2 : index
    %c0_339 = arith.constant 0 : index
    %c6_340 = arith.constant 6 : index
    %684 = vector.load %arg5[%c2_338, %c0_339, %c6_340] : memref<3x24x256xf32, #tpu.memory_space<vmem>>, vector<1x16x128xf32>
    %685 = vector.shape_cast %684 : vector<1x16x128xf32> to vector<16x128xf32>
    %686 = vector.broadcast %683 : f32 to vector<16x128xf32>
    %687 = arith.mulf %686, %685 : vector<16x128xf32>
    %688 = arith.addf %664, %687 : vector<16x128xf32>
    %c105 = arith.constant 105 : index
    %689 = memref.load %arg2[%c105] : memref<147xf32, #tpu.memory_space<smem>>
    %c2_341 = arith.constant 2 : index
    %c1_342 = arith.constant 1 : index
    %c0_343 = arith.constant 0 : index
    %690 = vector.load %arg5[%c2_341, %c1_342, %c0_343] : memref<3x24x256xf32, #tpu.memory_space<vmem>>, vector<1x16x128xf32>
    %691 = vector.shape_cast %690 : vector<1x16x128xf32> to vector<16x128xf32>
    %692 = vector.broadcast %689 : f32 to vector<16x128xf32>
    %693 = arith.mulf %692, %691 : vector<16x128xf32>
    %694 = arith.addf %670, %693 : vector<16x128xf32>
    %c106 = arith.constant 106 : index
    %695 = memref.load %arg2[%c106] : memref<147xf32, #tpu.memory_space<smem>>
    %c2_344 = arith.constant 2 : index
    %c1_345 = arith.constant 1 : index
    %c1_346 = arith.constant 1 : index
    %696 = vector.load %arg5[%c2_344, %c1_345, %c1_346] : memref<3x24x256xf32, #tpu.memory_space<vmem>>, vector<1x16x128xf32>
    %697 = vector.shape_cast %696 : vector<1x16x128xf32> to vector<16x128xf32>
    %698 = vector.broadcast %695 : f32 to vector<16x128xf32>
    %699 = arith.mulf %698, %697 : vector<16x128xf32>
    %700 = arith.addf %676, %699 : vector<16x128xf32>
    %c107 = arith.constant 107 : index
    %701 = memref.load %arg2[%c107] : memref<147xf32, #tpu.memory_space<smem>>
    %c2_347 = arith.constant 2 : index
    %c1_348 = arith.constant 1 : index
    %c2_349 = arith.constant 2 : index
    %702 = vector.load %arg5[%c2_347, %c1_348, %c2_349] : memref<3x24x256xf32, #tpu.memory_space<vmem>>, vector<1x16x128xf32>
    %703 = vector.shape_cast %702 : vector<1x16x128xf32> to vector<16x128xf32>
    %704 = vector.broadcast %701 : f32 to vector<16x128xf32>
    %705 = arith.mulf %704, %703 : vector<16x128xf32>
    %706 = arith.addf %682, %705 : vector<16x128xf32>
    %c108 = arith.constant 108 : index
    %707 = memref.load %arg2[%c108] : memref<147xf32, #tpu.memory_space<smem>>
    %c2_350 = arith.constant 2 : index
    %c1_351 = arith.constant 1 : index
    %c3_352 = arith.constant 3 : index
    %708 = vector.load %arg5[%c2_350, %c1_351, %c3_352] : memref<3x24x256xf32, #tpu.memory_space<vmem>>, vector<1x16x128xf32>
    %709 = vector.shape_cast %708 : vector<1x16x128xf32> to vector<16x128xf32>
    %710 = vector.broadcast %707 : f32 to vector<16x128xf32>
    %711 = arith.mulf %710, %709 : vector<16x128xf32>
    %712 = arith.addf %688, %711 : vector<16x128xf32>
    %c109 = arith.constant 109 : index
    %713 = memref.load %arg2[%c109] : memref<147xf32, #tpu.memory_space<smem>>
    %c2_353 = arith.constant 2 : index
    %c1_354 = arith.constant 1 : index
    %c4_355 = arith.constant 4 : index
    %714 = vector.load %arg5[%c2_353, %c1_354, %c4_355] : memref<3x24x256xf32, #tpu.memory_space<vmem>>, vector<1x16x128xf32>
    %715 = vector.shape_cast %714 : vector<1x16x128xf32> to vector<16x128xf32>
    %716 = vector.broadcast %713 : f32 to vector<16x128xf32>
    %717 = arith.mulf %716, %715 : vector<16x128xf32>
    %718 = arith.addf %694, %717 : vector<16x128xf32>
    %c110 = arith.constant 110 : index
    %719 = memref.load %arg2[%c110] : memref<147xf32, #tpu.memory_space<smem>>
    %c2_356 = arith.constant 2 : index
    %c1_357 = arith.constant 1 : index
    %c5_358 = arith.constant 5 : index
    %720 = vector.load %arg5[%c2_356, %c1_357, %c5_358] : memref<3x24x256xf32, #tpu.memory_space<vmem>>, vector<1x16x128xf32>
    %721 = vector.shape_cast %720 : vector<1x16x128xf32> to vector<16x128xf32>
    %722 = vector.broadcast %719 : f32 to vector<16x128xf32>
    %723 = arith.mulf %722, %721 : vector<16x128xf32>
    %724 = arith.addf %700, %723 : vector<16x128xf32>
    %c111 = arith.constant 111 : index
    %725 = memref.load %arg2[%c111] : memref<147xf32, #tpu.memory_space<smem>>
    %c2_359 = arith.constant 2 : index
    %c1_360 = arith.constant 1 : index
    %c6_361 = arith.constant 6 : index
    %726 = vector.load %arg5[%c2_359, %c1_360, %c6_361] : memref<3x24x256xf32, #tpu.memory_space<vmem>>, vector<1x16x128xf32>
    %727 = vector.shape_cast %726 : vector<1x16x128xf32> to vector<16x128xf32>
    %728 = vector.broadcast %725 : f32 to vector<16x128xf32>
    %729 = arith.mulf %728, %727 : vector<16x128xf32>
    %730 = arith.addf %706, %729 : vector<16x128xf32>
    %c112 = arith.constant 112 : index
    %731 = memref.load %arg2[%c112] : memref<147xf32, #tpu.memory_space<smem>>
    %c2_362 = arith.constant 2 : index
    %c2_363 = arith.constant 2 : index
    %c0_364 = arith.constant 0 : index
    %732 = vector.load %arg5[%c2_362, %c2_363, %c0_364] : memref<3x24x256xf32, #tpu.memory_space<vmem>>, vector<1x16x128xf32>
    %733 = vector.shape_cast %732 : vector<1x16x128xf32> to vector<16x128xf32>
    %734 = vector.broadcast %731 : f32 to vector<16x128xf32>
    %735 = arith.mulf %734, %733 : vector<16x128xf32>
    %736 = arith.addf %712, %735 : vector<16x128xf32>
    %c113 = arith.constant 113 : index
    %737 = memref.load %arg2[%c113] : memref<147xf32, #tpu.memory_space<smem>>
    %c2_365 = arith.constant 2 : index
    %c2_366 = arith.constant 2 : index
    %c1_367 = arith.constant 1 : index
    %738 = vector.load %arg5[%c2_365, %c2_366, %c1_367] : memref<3x24x256xf32, #tpu.memory_space<vmem>>, vector<1x16x128xf32>
    %739 = vector.shape_cast %738 : vector<1x16x128xf32> to vector<16x128xf32>
    %740 = vector.broadcast %737 : f32 to vector<16x128xf32>
    %741 = arith.mulf %740, %739 : vector<16x128xf32>
    %742 = arith.addf %718, %741 : vector<16x128xf32>
    %c114 = arith.constant 114 : index
    %743 = memref.load %arg2[%c114] : memref<147xf32, #tpu.memory_space<smem>>
    %c2_368 = arith.constant 2 : index
    %c2_369 = arith.constant 2 : index
    %c2_370 = arith.constant 2 : index
    %744 = vector.load %arg5[%c2_368, %c2_369, %c2_370] : memref<3x24x256xf32, #tpu.memory_space<vmem>>, vector<1x16x128xf32>
    %745 = vector.shape_cast %744 : vector<1x16x128xf32> to vector<16x128xf32>
    %746 = vector.broadcast %743 : f32 to vector<16x128xf32>
    %747 = arith.mulf %746, %745 : vector<16x128xf32>
    %748 = arith.addf %724, %747 : vector<16x128xf32>
    %c115 = arith.constant 115 : index
    %749 = memref.load %arg2[%c115] : memref<147xf32, #tpu.memory_space<smem>>
    %c2_371 = arith.constant 2 : index
    %c2_372 = arith.constant 2 : index
    %c3_373 = arith.constant 3 : index
    %750 = vector.load %arg5[%c2_371, %c2_372, %c3_373] : memref<3x24x256xf32, #tpu.memory_space<vmem>>, vector<1x16x128xf32>
    %751 = vector.shape_cast %750 : vector<1x16x128xf32> to vector<16x128xf32>
    %752 = vector.broadcast %749 : f32 to vector<16x128xf32>
    %753 = arith.mulf %752, %751 : vector<16x128xf32>
    %754 = arith.addf %730, %753 : vector<16x128xf32>
    %c116 = arith.constant 116 : index
    %755 = memref.load %arg2[%c116] : memref<147xf32, #tpu.memory_space<smem>>
    %c2_374 = arith.constant 2 : index
    %c2_375 = arith.constant 2 : index
    %c4_376 = arith.constant 4 : index
    %756 = vector.load %arg5[%c2_374, %c2_375, %c4_376] : memref<3x24x256xf32, #tpu.memory_space<vmem>>, vector<1x16x128xf32>
    %757 = vector.shape_cast %756 : vector<1x16x128xf32> to vector<16x128xf32>
    %758 = vector.broadcast %755 : f32 to vector<16x128xf32>
    %759 = arith.mulf %758, %757 : vector<16x128xf32>
    %760 = arith.addf %736, %759 : vector<16x128xf32>
    %c117 = arith.constant 117 : index
    %761 = memref.load %arg2[%c117] : memref<147xf32, #tpu.memory_space<smem>>
    %c2_377 = arith.constant 2 : index
    %c2_378 = arith.constant 2 : index
    %c5_379 = arith.constant 5 : index
    %762 = vector.load %arg5[%c2_377, %c2_378, %c5_379] : memref<3x24x256xf32, #tpu.memory_space<vmem>>, vector<1x16x128xf32>
    %763 = vector.shape_cast %762 : vector<1x16x128xf32> to vector<16x128xf32>
    %764 = vector.broadcast %761 : f32 to vector<16x128xf32>
    %765 = arith.mulf %764, %763 : vector<16x128xf32>
    %766 = arith.addf %742, %765 : vector<16x128xf32>
    %c118 = arith.constant 118 : index
    %767 = memref.load %arg2[%c118] : memref<147xf32, #tpu.memory_space<smem>>
    %c2_380 = arith.constant 2 : index
    %c2_381 = arith.constant 2 : index
    %c6_382 = arith.constant 6 : index
    %768 = vector.load %arg5[%c2_380, %c2_381, %c6_382] : memref<3x24x256xf32, #tpu.memory_space<vmem>>, vector<1x16x128xf32>
    %769 = vector.shape_cast %768 : vector<1x16x128xf32> to vector<16x128xf32>
    %770 = vector.broadcast %767 : f32 to vector<16x128xf32>
    %771 = arith.mulf %770, %769 : vector<16x128xf32>
    %772 = arith.addf %748, %771 : vector<16x128xf32>
    %c119 = arith.constant 119 : index
    %773 = memref.load %arg2[%c119] : memref<147xf32, #tpu.memory_space<smem>>
    %c2_383 = arith.constant 2 : index
    %c3_384 = arith.constant 3 : index
    %c0_385 = arith.constant 0 : index
    %774 = vector.load %arg5[%c2_383, %c3_384, %c0_385] : memref<3x24x256xf32, #tpu.memory_space<vmem>>, vector<1x16x128xf32>
    %775 = vector.shape_cast %774 : vector<1x16x128xf32> to vector<16x128xf32>
    %776 = vector.broadcast %773 : f32 to vector<16x128xf32>
    %777 = arith.mulf %776, %775 : vector<16x128xf32>
    %778 = arith.addf %754, %777 : vector<16x128xf32>
    %c120 = arith.constant 120 : index
    %779 = memref.load %arg2[%c120] : memref<147xf32, #tpu.memory_space<smem>>
    %c2_386 = arith.constant 2 : index
    %c3_387 = arith.constant 3 : index
    %c1_388 = arith.constant 1 : index
    %780 = vector.load %arg5[%c2_386, %c3_387, %c1_388] : memref<3x24x256xf32, #tpu.memory_space<vmem>>, vector<1x16x128xf32>
    %781 = vector.shape_cast %780 : vector<1x16x128xf32> to vector<16x128xf32>
    %782 = vector.broadcast %779 : f32 to vector<16x128xf32>
    %783 = arith.mulf %782, %781 : vector<16x128xf32>
    %784 = arith.addf %760, %783 : vector<16x128xf32>
    %c121 = arith.constant 121 : index
    %785 = memref.load %arg2[%c121] : memref<147xf32, #tpu.memory_space<smem>>
    %c2_389 = arith.constant 2 : index
    %c3_390 = arith.constant 3 : index
    %c2_391 = arith.constant 2 : index
    %786 = vector.load %arg5[%c2_389, %c3_390, %c2_391] : memref<3x24x256xf32, #tpu.memory_space<vmem>>, vector<1x16x128xf32>
    %787 = vector.shape_cast %786 : vector<1x16x128xf32> to vector<16x128xf32>
    %788 = vector.broadcast %785 : f32 to vector<16x128xf32>
    %789 = arith.mulf %788, %787 : vector<16x128xf32>
    %790 = arith.addf %766, %789 : vector<16x128xf32>
    %c122 = arith.constant 122 : index
    %791 = memref.load %arg2[%c122] : memref<147xf32, #tpu.memory_space<smem>>
    %c2_392 = arith.constant 2 : index
    %c3_393 = arith.constant 3 : index
    %c3_394 = arith.constant 3 : index
    %792 = vector.load %arg5[%c2_392, %c3_393, %c3_394] : memref<3x24x256xf32, #tpu.memory_space<vmem>>, vector<1x16x128xf32>
    %793 = vector.shape_cast %792 : vector<1x16x128xf32> to vector<16x128xf32>
    %794 = vector.broadcast %791 : f32 to vector<16x128xf32>
    %795 = arith.mulf %794, %793 : vector<16x128xf32>
    %796 = arith.addf %772, %795 : vector<16x128xf32>
    %c123 = arith.constant 123 : index
    %797 = memref.load %arg2[%c123] : memref<147xf32, #tpu.memory_space<smem>>
    %c2_395 = arith.constant 2 : index
    %c3_396 = arith.constant 3 : index
    %c4_397 = arith.constant 4 : index
    %798 = vector.load %arg5[%c2_395, %c3_396, %c4_397] : memref<3x24x256xf32, #tpu.memory_space<vmem>>, vector<1x16x128xf32>
    %799 = vector.shape_cast %798 : vector<1x16x128xf32> to vector<16x128xf32>
    %800 = vector.broadcast %797 : f32 to vector<16x128xf32>
    %801 = arith.mulf %800, %799 : vector<16x128xf32>
    %802 = arith.addf %778, %801 : vector<16x128xf32>
    %c124 = arith.constant 124 : index
    %803 = memref.load %arg2[%c124] : memref<147xf32, #tpu.memory_space<smem>>
    %c2_398 = arith.constant 2 : index
    %c3_399 = arith.constant 3 : index
    %c5_400 = arith.constant 5 : index
    %804 = vector.load %arg5[%c2_398, %c3_399, %c5_400] : memref<3x24x256xf32, #tpu.memory_space<vmem>>, vector<1x16x128xf32>
    %805 = vector.shape_cast %804 : vector<1x16x128xf32> to vector<16x128xf32>
    %806 = vector.broadcast %803 : f32 to vector<16x128xf32>
    %807 = arith.mulf %806, %805 : vector<16x128xf32>
    %808 = arith.addf %784, %807 : vector<16x128xf32>
    %c125 = arith.constant 125 : index
    %809 = memref.load %arg2[%c125] : memref<147xf32, #tpu.memory_space<smem>>
    %c2_401 = arith.constant 2 : index
    %c3_402 = arith.constant 3 : index
    %c6_403 = arith.constant 6 : index
    %810 = vector.load %arg5[%c2_401, %c3_402, %c6_403] : memref<3x24x256xf32, #tpu.memory_space<vmem>>, vector<1x16x128xf32>
    %811 = vector.shape_cast %810 : vector<1x16x128xf32> to vector<16x128xf32>
    %812 = vector.broadcast %809 : f32 to vector<16x128xf32>
    %813 = arith.mulf %812, %811 : vector<16x128xf32>
    %814 = arith.addf %790, %813 : vector<16x128xf32>
    %c126 = arith.constant 126 : index
    %815 = memref.load %arg2[%c126] : memref<147xf32, #tpu.memory_space<smem>>
    %c2_404 = arith.constant 2 : index
    %c4_405 = arith.constant 4 : index
    %c0_406 = arith.constant 0 : index
    %816 = vector.load %arg5[%c2_404, %c4_405, %c0_406] : memref<3x24x256xf32, #tpu.memory_space<vmem>>, vector<1x16x128xf32>
    %817 = vector.shape_cast %816 : vector<1x16x128xf32> to vector<16x128xf32>
    %818 = vector.broadcast %815 : f32 to vector<16x128xf32>
    %819 = arith.mulf %818, %817 : vector<16x128xf32>
    %820 = arith.addf %796, %819 : vector<16x128xf32>
    %c127 = arith.constant 127 : index
    %821 = memref.load %arg2[%c127] : memref<147xf32, #tpu.memory_space<smem>>
    %c2_407 = arith.constant 2 : index
    %c4_408 = arith.constant 4 : index
    %c1_409 = arith.constant 1 : index
    %822 = vector.load %arg5[%c2_407, %c4_408, %c1_409] : memref<3x24x256xf32, #tpu.memory_space<vmem>>, vector<1x16x128xf32>
    %823 = vector.shape_cast %822 : vector<1x16x128xf32> to vector<16x128xf32>
    %824 = vector.broadcast %821 : f32 to vector<16x128xf32>
    %825 = arith.mulf %824, %823 : vector<16x128xf32>
    %826 = arith.addf %802, %825 : vector<16x128xf32>
    %c128_410 = arith.constant 128 : index
    %827 = memref.load %arg2[%c128_410] : memref<147xf32, #tpu.memory_space<smem>>
    %c2_411 = arith.constant 2 : index
    %c4_412 = arith.constant 4 : index
    %c2_413 = arith.constant 2 : index
    %828 = vector.load %arg5[%c2_411, %c4_412, %c2_413] : memref<3x24x256xf32, #tpu.memory_space<vmem>>, vector<1x16x128xf32>
    %829 = vector.shape_cast %828 : vector<1x16x128xf32> to vector<16x128xf32>
    %830 = vector.broadcast %827 : f32 to vector<16x128xf32>
    %831 = arith.mulf %830, %829 : vector<16x128xf32>
    %832 = arith.addf %808, %831 : vector<16x128xf32>
    %c129 = arith.constant 129 : index
    %833 = memref.load %arg2[%c129] : memref<147xf32, #tpu.memory_space<smem>>
    %c2_414 = arith.constant 2 : index
    %c4_415 = arith.constant 4 : index
    %c3_416 = arith.constant 3 : index
    %834 = vector.load %arg5[%c2_414, %c4_415, %c3_416] : memref<3x24x256xf32, #tpu.memory_space<vmem>>, vector<1x16x128xf32>
    %835 = vector.shape_cast %834 : vector<1x16x128xf32> to vector<16x128xf32>
    %836 = vector.broadcast %833 : f32 to vector<16x128xf32>
    %837 = arith.mulf %836, %835 : vector<16x128xf32>
    %838 = arith.addf %814, %837 : vector<16x128xf32>
    %c130 = arith.constant 130 : index
    %839 = memref.load %arg2[%c130] : memref<147xf32, #tpu.memory_space<smem>>
    %c2_417 = arith.constant 2 : index
    %c4_418 = arith.constant 4 : index
    %c4_419 = arith.constant 4 : index
    %840 = vector.load %arg5[%c2_417, %c4_418, %c4_419] : memref<3x24x256xf32, #tpu.memory_space<vmem>>, vector<1x16x128xf32>
    %841 = vector.shape_cast %840 : vector<1x16x128xf32> to vector<16x128xf32>
    %842 = vector.broadcast %839 : f32 to vector<16x128xf32>
    %843 = arith.mulf %842, %841 : vector<16x128xf32>
    %844 = arith.addf %820, %843 : vector<16x128xf32>
    %c131 = arith.constant 131 : index
    %845 = memref.load %arg2[%c131] : memref<147xf32, #tpu.memory_space<smem>>
    %c2_420 = arith.constant 2 : index
    %c4_421 = arith.constant 4 : index
    %c5_422 = arith.constant 5 : index
    %846 = vector.load %arg5[%c2_420, %c4_421, %c5_422] : memref<3x24x256xf32, #tpu.memory_space<vmem>>, vector<1x16x128xf32>
    %847 = vector.shape_cast %846 : vector<1x16x128xf32> to vector<16x128xf32>
    %848 = vector.broadcast %845 : f32 to vector<16x128xf32>
    %849 = arith.mulf %848, %847 : vector<16x128xf32>
    %850 = arith.addf %826, %849 : vector<16x128xf32>
    %c132 = arith.constant 132 : index
    %851 = memref.load %arg2[%c132] : memref<147xf32, #tpu.memory_space<smem>>
    %c2_423 = arith.constant 2 : index
    %c4_424 = arith.constant 4 : index
    %c6_425 = arith.constant 6 : index
    %852 = vector.load %arg5[%c2_423, %c4_424, %c6_425] : memref<3x24x256xf32, #tpu.memory_space<vmem>>, vector<1x16x128xf32>
    %853 = vector.shape_cast %852 : vector<1x16x128xf32> to vector<16x128xf32>
    %854 = vector.broadcast %851 : f32 to vector<16x128xf32>
    %855 = arith.mulf %854, %853 : vector<16x128xf32>
    %856 = arith.addf %832, %855 : vector<16x128xf32>
    %c133 = arith.constant 133 : index
    %857 = memref.load %arg2[%c133] : memref<147xf32, #tpu.memory_space<smem>>
    %c2_426 = arith.constant 2 : index
    %c5_427 = arith.constant 5 : index
    %c0_428 = arith.constant 0 : index
    %858 = vector.load %arg5[%c2_426, %c5_427, %c0_428] : memref<3x24x256xf32, #tpu.memory_space<vmem>>, vector<1x16x128xf32>
    %859 = vector.shape_cast %858 : vector<1x16x128xf32> to vector<16x128xf32>
    %860 = vector.broadcast %857 : f32 to vector<16x128xf32>
    %861 = arith.mulf %860, %859 : vector<16x128xf32>
    %862 = arith.addf %838, %861 : vector<16x128xf32>
    %c134 = arith.constant 134 : index
    %863 = memref.load %arg2[%c134] : memref<147xf32, #tpu.memory_space<smem>>
    %c2_429 = arith.constant 2 : index
    %c5_430 = arith.constant 5 : index
    %c1_431 = arith.constant 1 : index
    %864 = vector.load %arg5[%c2_429, %c5_430, %c1_431] : memref<3x24x256xf32, #tpu.memory_space<vmem>>, vector<1x16x128xf32>
    %865 = vector.shape_cast %864 : vector<1x16x128xf32> to vector<16x128xf32>
    %866 = vector.broadcast %863 : f32 to vector<16x128xf32>
    %867 = arith.mulf %866, %865 : vector<16x128xf32>
    %868 = arith.addf %844, %867 : vector<16x128xf32>
    %c135 = arith.constant 135 : index
    %869 = memref.load %arg2[%c135] : memref<147xf32, #tpu.memory_space<smem>>
    %c2_432 = arith.constant 2 : index
    %c5_433 = arith.constant 5 : index
    %c2_434 = arith.constant 2 : index
    %870 = vector.load %arg5[%c2_432, %c5_433, %c2_434] : memref<3x24x256xf32, #tpu.memory_space<vmem>>, vector<1x16x128xf32>
    %871 = vector.shape_cast %870 : vector<1x16x128xf32> to vector<16x128xf32>
    %872 = vector.broadcast %869 : f32 to vector<16x128xf32>
    %873 = arith.mulf %872, %871 : vector<16x128xf32>
    %874 = arith.addf %850, %873 : vector<16x128xf32>
    %c136 = arith.constant 136 : index
    %875 = memref.load %arg2[%c136] : memref<147xf32, #tpu.memory_space<smem>>
    %c2_435 = arith.constant 2 : index
    %c5_436 = arith.constant 5 : index
    %c3_437 = arith.constant 3 : index
    %876 = vector.load %arg5[%c2_435, %c5_436, %c3_437] : memref<3x24x256xf32, #tpu.memory_space<vmem>>, vector<1x16x128xf32>
    %877 = vector.shape_cast %876 : vector<1x16x128xf32> to vector<16x128xf32>
    %878 = vector.broadcast %875 : f32 to vector<16x128xf32>
    %879 = arith.mulf %878, %877 : vector<16x128xf32>
    %880 = arith.addf %856, %879 : vector<16x128xf32>
    %c137 = arith.constant 137 : index
    %881 = memref.load %arg2[%c137] : memref<147xf32, #tpu.memory_space<smem>>
    %c2_438 = arith.constant 2 : index
    %c5_439 = arith.constant 5 : index
    %c4_440 = arith.constant 4 : index
    %882 = vector.load %arg5[%c2_438, %c5_439, %c4_440] : memref<3x24x256xf32, #tpu.memory_space<vmem>>, vector<1x16x128xf32>
    %883 = vector.shape_cast %882 : vector<1x16x128xf32> to vector<16x128xf32>
    %884 = vector.broadcast %881 : f32 to vector<16x128xf32>
    %885 = arith.mulf %884, %883 : vector<16x128xf32>
    %886 = arith.addf %862, %885 : vector<16x128xf32>
    %c138 = arith.constant 138 : index
    %887 = memref.load %arg2[%c138] : memref<147xf32, #tpu.memory_space<smem>>
    %c2_441 = arith.constant 2 : index
    %c5_442 = arith.constant 5 : index
    %c5_443 = arith.constant 5 : index
    %888 = vector.load %arg5[%c2_441, %c5_442, %c5_443] : memref<3x24x256xf32, #tpu.memory_space<vmem>>, vector<1x16x128xf32>
    %889 = vector.shape_cast %888 : vector<1x16x128xf32> to vector<16x128xf32>
    %890 = vector.broadcast %887 : f32 to vector<16x128xf32>
    %891 = arith.mulf %890, %889 : vector<16x128xf32>
    %892 = arith.addf %868, %891 : vector<16x128xf32>
    %c139 = arith.constant 139 : index
    %893 = memref.load %arg2[%c139] : memref<147xf32, #tpu.memory_space<smem>>
    %c2_444 = arith.constant 2 : index
    %c5_445 = arith.constant 5 : index
    %c6_446 = arith.constant 6 : index
    %894 = vector.load %arg5[%c2_444, %c5_445, %c6_446] : memref<3x24x256xf32, #tpu.memory_space<vmem>>, vector<1x16x128xf32>
    %895 = vector.shape_cast %894 : vector<1x16x128xf32> to vector<16x128xf32>
    %896 = vector.broadcast %893 : f32 to vector<16x128xf32>
    %897 = arith.mulf %896, %895 : vector<16x128xf32>
    %898 = arith.addf %874, %897 : vector<16x128xf32>
    %c140 = arith.constant 140 : index
    %899 = memref.load %arg2[%c140] : memref<147xf32, #tpu.memory_space<smem>>
    %c2_447 = arith.constant 2 : index
    %c6_448 = arith.constant 6 : index
    %c0_449 = arith.constant 0 : index
    %900 = vector.load %arg5[%c2_447, %c6_448, %c0_449] : memref<3x24x256xf32, #tpu.memory_space<vmem>>, vector<1x16x128xf32>
    %901 = vector.shape_cast %900 : vector<1x16x128xf32> to vector<16x128xf32>
    %902 = vector.broadcast %899 : f32 to vector<16x128xf32>
    %903 = arith.mulf %902, %901 : vector<16x128xf32>
    %904 = arith.addf %880, %903 : vector<16x128xf32>
    %c141 = arith.constant 141 : index
    %905 = memref.load %arg2[%c141] : memref<147xf32, #tpu.memory_space<smem>>
    %c2_450 = arith.constant 2 : index
    %c6_451 = arith.constant 6 : index
    %c1_452 = arith.constant 1 : index
    %906 = vector.load %arg5[%c2_450, %c6_451, %c1_452] : memref<3x24x256xf32, #tpu.memory_space<vmem>>, vector<1x16x128xf32>
    %907 = vector.shape_cast %906 : vector<1x16x128xf32> to vector<16x128xf32>
    %908 = vector.broadcast %905 : f32 to vector<16x128xf32>
    %909 = arith.mulf %908, %907 : vector<16x128xf32>
    %910 = arith.addf %886, %909 : vector<16x128xf32>
    %c142 = arith.constant 142 : index
    %911 = memref.load %arg2[%c142] : memref<147xf32, #tpu.memory_space<smem>>
    %c2_453 = arith.constant 2 : index
    %c6_454 = arith.constant 6 : index
    %c2_455 = arith.constant 2 : index
    %912 = vector.load %arg5[%c2_453, %c6_454, %c2_455] : memref<3x24x256xf32, #tpu.memory_space<vmem>>, vector<1x16x128xf32>
    %913 = vector.shape_cast %912 : vector<1x16x128xf32> to vector<16x128xf32>
    %914 = vector.broadcast %911 : f32 to vector<16x128xf32>
    %915 = arith.mulf %914, %913 : vector<16x128xf32>
    %916 = arith.addf %892, %915 : vector<16x128xf32>
    %c143 = arith.constant 143 : index
    %917 = memref.load %arg2[%c143] : memref<147xf32, #tpu.memory_space<smem>>
    %c2_456 = arith.constant 2 : index
    %c6_457 = arith.constant 6 : index
    %c3_458 = arith.constant 3 : index
    %918 = vector.load %arg5[%c2_456, %c6_457, %c3_458] : memref<3x24x256xf32, #tpu.memory_space<vmem>>, vector<1x16x128xf32>
    %919 = vector.shape_cast %918 : vector<1x16x128xf32> to vector<16x128xf32>
    %920 = vector.broadcast %917 : f32 to vector<16x128xf32>
    %921 = arith.mulf %920, %919 : vector<16x128xf32>
    %922 = arith.addf %898, %921 : vector<16x128xf32>
    %c144 = arith.constant 144 : index
    %923 = memref.load %arg2[%c144] : memref<147xf32, #tpu.memory_space<smem>>
    %c2_459 = arith.constant 2 : index
    %c6_460 = arith.constant 6 : index
    %c4_461 = arith.constant 4 : index
    %924 = vector.load %arg5[%c2_459, %c6_460, %c4_461] : memref<3x24x256xf32, #tpu.memory_space<vmem>>, vector<1x16x128xf32>
    %925 = vector.shape_cast %924 : vector<1x16x128xf32> to vector<16x128xf32>
    %926 = vector.broadcast %923 : f32 to vector<16x128xf32>
    %927 = arith.mulf %926, %925 : vector<16x128xf32>
    %928 = arith.addf %904, %927 : vector<16x128xf32>
    %c145 = arith.constant 145 : index
    %929 = memref.load %arg2[%c145] : memref<147xf32, #tpu.memory_space<smem>>
    %c2_462 = arith.constant 2 : index
    %c6_463 = arith.constant 6 : index
    %c5_464 = arith.constant 5 : index
    %930 = vector.load %arg5[%c2_462, %c6_463, %c5_464] : memref<3x24x256xf32, #tpu.memory_space<vmem>>, vector<1x16x128xf32>
    %931 = vector.shape_cast %930 : vector<1x16x128xf32> to vector<16x128xf32>
    %932 = vector.broadcast %929 : f32 to vector<16x128xf32>
    %933 = arith.mulf %932, %931 : vector<16x128xf32>
    %934 = arith.addf %910, %933 : vector<16x128xf32>
    %c146 = arith.constant 146 : index
    %935 = memref.load %arg2[%c146] : memref<147xf32, #tpu.memory_space<smem>>
    %c2_465 = arith.constant 2 : index
    %c6_466 = arith.constant 6 : index
    %c6_467 = arith.constant 6 : index
    %936 = vector.load %arg5[%c2_465, %c6_466, %c6_467] : memref<3x24x256xf32, #tpu.memory_space<vmem>>, vector<1x16x128xf32>
    %937 = vector.shape_cast %936 : vector<1x16x128xf32> to vector<16x128xf32>
    %938 = vector.broadcast %935 : f32 to vector<16x128xf32>
    %939 = arith.mulf %938, %937 : vector<16x128xf32>
    %940 = arith.addf %916, %939 : vector<16x128xf32>
    %941 = arith.addf %928, %934 : vector<16x128xf32>
    %942 = arith.addf %940, %922 : vector<16x128xf32>
    %943 = arith.addf %941, %942 : vector<16x128xf32>
    %c0_468 = arith.constant 0 : index
    %c0_469 = arith.constant 0 : index
    %944 = vector.load %arg4[%c0_468, %c0_469] : memref<16x128xf32, #tpu.memory_space<vmem>>, vector<16x128xf32>
    tpu.vector_store %arg4[%c0_468, %c0_469], %943 {strides = array<i32>} : memref<16x128xf32, #tpu.memory_space<vmem>>, vector<16x128xf32>,
    return
  }
  func.func @transform_0(%arg0: i32) -> i32 {
    %c0_i32 = arith.constant 0 : i32
    %c0_i32_0 = arith.constant 0 : i32
    return %c0_i32 : i32
  }
  func.func @transform_1(%arg0: i32) -> i32 {
    %c0_i32 = arith.constant 0 : i32
    %c0_i32_0 = arith.constant 0 : i32
    return %c0_i32 : i32
  }
  func.func @transform_2(%arg0: i32) -> (i32, i32, i32) {
    %c0_i32 = arith.constant 0 : i32
    %c0_i32_0 = arith.constant 0 : i32
    %c0_i32_1 = arith.constant 0 : i32
    return %c0_i32, %c0_i32_0, %arg0 : i32, i32, i32
  }
  func.func @transform_3(%arg0: i32) -> (i32, i32) {
    %c0_i32 = arith.constant 0 : i32
    %c0_i32_0 = arith.constant 0 : i32
    return %c0_i32, %arg0 : i32, i32
  }
}

</mosaic_0001>

<llo_original>
// kernel: tpu_custom_call.1
$region0: #{tpu_custom_call.1}
  #allocation0 [shape = 'u32[]', space=smem, size = 0x4, offset = 0x4, fixed_abs, tag = 'smem constant byte address 0x4 - core index']
  #allocation1 [shape = 'u32[144,128]{1,0:T(1,128)}', space=vmem, size = 0x12000, scoped, tag = 'internal scratch']
  #allocation2 [shape = 'f32[3,24,256]{2,1,0:T(8,128)}', space=vmem, size = 0x12000, scoped, tag = 'scratch operand']
  %s0 = inlined_call_operand.hbm [shape: f32[4], index: 0, kind: input, shape index: {}]
  %s1 = inlined_call_operand.vmem [shape: f32[147], index: 1, kind: input, shape index: {}]
  %s2 = inlined_call_operand.hbm [shape: f32[4,24,128], index: 2, kind: input, shape index: {}]
  %s3 = inlined_call_operand.hbm [shape: f32[16,128], index: 3, kind: output, shape index: {}]
  %s4 = sld [smem:[#allocation0]]
  $region34: #{tpu_custom_call.1} parent=0
    _
  %s6 = ssub.s32 1, %s4
  %s7 = scalar_select 0, %s6, %s4
  $region1: #{tpu_custom_call.1} parent=0
    #allocation3 [shape = 'u8[512]{0}', space=smem, size = 0x200, scoped, tag = 'input window, operand 0, single buffered']
    #allocation4 [shape = 's32[1]{0}', space=sflag, size = 0x4, scoped, tag = 'scoped memory for tpu_custom_call.1']
    #allocation5 [shape = 's32[1]{0}', space=sflag, size = 0x4, scoped, tag = 'scoped memory for tpu_custom_call.1']
    #allocation6 [shape = 's32[1]{0}', space=sflag, size = 0x4, scoped, tag = 'scoped memory for tpu_custom_call.1']
    #allocation7 [shape = 's32[1]{0}', space=sflag, size = 0x4, scoped, tag = 'scoped memory for tpu_custom_call.1']
    #allocation8 [shape = 'u8[1024]{0}', space=smem, size = 0x400, scoped, tag = 'input window, operand 1, single buffered']
    #allocation9 [shape = 'u8[49152]{0}', space=vmem, size = 0xc000, scoped, tag = 'input window, operand 2, single buffered']
    #allocation10 [shape = 'u8[8192]{0}', space=vmem, size = 0x2000, scoped, tag = 'output window, operand 0, single buffered']
    %8 = vsyncpa [#allocation6], 0
    %9 = vsyncpa [#allocation7], 0
    %10 = vsyncpa [#allocation4], 0
    %11 = vsyncpa [#allocation5], 0
    // Predicated region
    $region2: #{tpu_custom_call.1} parent=1 // pred_check
      _
    $region3: #{tpu_custom_call.1} parent=1 // pred_check_branch
      %13 = sbr.rel (0) target = $region5
    $region4: #{tpu_custom_call.1} parent=1 // pred_region
      %s15 = ssub.s32 16, 16
      %16 = vsyncadd [#allocation6], %s15
      %19 = dma.hbm_to_smem %s0, 16, [#allocation3], [#allocation6]
    $region5: #{tpu_custom_call.1} parent=1 // pred_fallthru
      _
    // Predicated region
    $region6: #{tpu_custom_call.1} parent=1 // pred_check
      _
    $region7: #{tpu_custom_call.1} parent=1 // pred_check_branch
      %21 = sbr.rel (0) target = $region9
    $region8: #{tpu_custom_call.1} parent=1 // pred_region
      %s23 = ssub.s32 32, 32
      %24 = vsyncadd [#allocation7], %s23
      %s26 = sshll.u32 %s1, 4
      %s27 = int_to_ptr.vmem [resolvable:$true] %s26
      %29 = dma.vmem_to_smem %s27, 32, [#allocation8], [#allocation7]
    $region9: #{tpu_custom_call.1} parent=1 // pred_fallthru
      _
    // Predicated region
    $region10: #{tpu_custom_call.1} parent=1 // pred_check
      _
    $region11: #{tpu_custom_call.1} parent=1 // pred_check_branch
      %31 = sbr.rel (0) target = $region13
    $region12: #{tpu_custom_call.1} parent=1 // pred_region
      %s33 = ssub.s32 1536, 1536
      %34 = vsyncadd [#allocation4], %s33
      %s35 = sshll.u32 [#allocation9], 4
      %s36 = int_to_ptr.vmem [resolvable:$true] %s35
      %41 = dma.hbm_to_vmem [thread:$0]  %s2, 1536, %s36, [#allocation4], 128, 128, 8
    $region13: #{tpu_custom_call.1} parent=1 // pred_fallthru
      _
    // Predicated region
    $region14: #{tpu_custom_call.1} parent=1 // pred_check
      _
    $region15: #{tpu_custom_call.1} parent=1 // pred_check_branch
      %43 = sbr.rel (0) target = $region17
    $region16: #{tpu_custom_call.1} parent=1 // pred_region
      %44 = dma.done [#allocation6], 16
    $region17: #{tpu_custom_call.1} parent=1 // pred_fallthru
      _
    // Predicated region
    $region18: #{tpu_custom_call.1} parent=1 // pred_check
      _
    $region19: #{tpu_custom_call.1} parent=1 // pred_check_branch
      %46 = sbr.rel (0) target = $region21
    $region20: #{tpu_custom_call.1} parent=1 // pred_region
      %47 = dma.done [#allocation7], 32
    $region21: #{tpu_custom_call.1} parent=1 // pred_fallthru
      _
    // Predicated region
    $region22: #{tpu_custom_call.1} parent=1 // pred_check
      _
    $region23: #{tpu_custom_call.1} parent=1 // pred_check_branch
      %49 = sbr.rel (0) target = $region25
    $region24: #{tpu_custom_call.1} parent=1 // pred_region
      %50 = dma.done [#allocation4], 1536
    $region25: #{tpu_custom_call.1} parent=1 // pred_fallthru
      _
    %51 = sfence
    %v52 = vld [vmem:[#allocation9] sm:$0xff]
    %v53 = vld [vmem:[#allocation9 + $0x8] sm:$0xff]
    %v54 = vld [vmem:[#allocation9 + $0x10] sm:$0xff]
    %v55 = vadd.f32 %v52, 0.0
    %v56 = vadd.f32 %v53, 0.0
    %v57 = vadd.f32 %v54, 0.0
    %s58 = sld [smem:[#allocation3]]
    %v59 = vstv %s58
    %v60 = vmul.f32 %v59, %v52
    %v61 = vmul.f32 %v59, %v53
    %v62 = vmul.f32 %v59, %v54
    %v63 = vadd.f32 %v60, 0.0
    %v64 = vadd.f32 %v61, 0.0
    %v65 = vadd.f32 %v62, 0.0
    %s66 = scalar_lea.vmem [#allocation9], 24
    %v67 = vld [vmem:[%s66] sm:$0xff]
    %v68 = vld [vmem:[%s66 + $0x8] sm:$0xff]
    %v69 = vld [vmem:[%s66 + $0x10] sm:$0xff]
    %v70 = vadd.f32 %v55, %v67
    %v71 = vadd.f32 %v56, %v68
    %v72 = vadd.f32 %v57, %v69
    %v73 = vmax.f32 %v52, %v67
    %v74 = vmax.f32 %v53, %v68
    %v75 = vmax.f32 %v54, %v69
    %s76 = sld [smem:[#allocation3 + $0x1]]
    %v77 = vstv %s76
    %v78 = vmul.f32 %v77, %v67
    %v79 = vmul.f32 %v77, %v68
    %v80 = vmul.f32 %v77, %v69
    %v81 = vadd.f32 %v63, %v78
    %v82 = vadd.f32 %v64, %v79
    %v83 = vadd.f32 %v65, %v80
    %s84 = scalar_lea.vmem [#allocation9], 48
    %v85 = vld [vmem:[%s84] sm:$0xff]
    %v86 = vld [vmem:[%s84 + $0x8] sm:$0xff]
    %v87 = vld [vmem:[%s84 + $0x10] sm:$0xff]
    %v88 = vadd.f32 %v70, %v85
    %v89 = vadd.f32 %v71, %v86
    %v90 = vadd.f32 %v72, %v87
    %v91 = vmax.f32 %v73, %v85
    %v92 = vmax.f32 %v74, %v86
    %v93 = vmax.f32 %v75, %v87
    %s94 = sld [smem:[#allocation3 + $0x2]]
    %v95 = vstv %s94
    %v96 = vmul.f32 %v95, %v85
    %v97 = vmul.f32 %v95, %v86
    %v98 = vmul.f32 %v95, %v87
    %v99 = vadd.f32 %v81, %v96
    %v100 = vadd.f32 %v82, %v97
    %v101 = vadd.f32 %v83, %v98
    %s102 = scalar_lea.vmem [#allocation9], 72
    %v103 = vld [vmem:[%s102] sm:$0xff]
    %v104 = vld [vmem:[%s102 + $0x8] sm:$0xff]
    %v105 = vld [vmem:[%s102 + $0x10] sm:$0xff]
    %v106 = vadd.f32 %v88, %v103
    %v107 = vadd.f32 %v89, %v104
    %v108 = vadd.f32 %v90, %v105
    %v109 = vmax.f32 %v91, %v103
    %v110 = vmax.f32 %v92, %v104
    %v111 = vmax.f32 %v93, %v105
    %s112 = sld [smem:[#allocation3 + $0x3]]
    %v113 = vstv %s112
    %v114 = vmul.f32 %v113, %v103
    %v115 = vmul.f32 %v113, %v104
    %v116 = vmul.f32 %v113, %v105
    %v117 = vadd.f32 %v99, %v114
    %v118 = vadd.f32 %v100, %v115
    %v119 = vadd.f32 %v101, %v116
    %v120 = vmul.f32 %v106, 0.25
    %v121 = vmul.f32 %v107, 0.25
    %v122 = vmul.f32 %v108, 0.25
    %123 = vst [vmem:[#allocation2] sm:$0xff] %v120
    %124 = vst [vmem:[#allocation2 + $0x10] sm:$0xff] %v121
    %125 = vst [vmem:[#allocation2 + $0x20] sm:$0xff] %v122
    %s126 = scalar_lea.vmem [#allocation2], 48
    %127 = vst [vmem:[%s126] sm:$0xff] %v109
    %128 = vst [vmem:[%s126 + $0x10] sm:$0xff] %v110
    %129 = vst [vmem:[%s126 + $0x20] sm:$0xff] %v111
    %s130 = scalar_lea.vmem [#allocation2], 96
    %131 = vst [vmem:[%s130] sm:$0xff] %v117
    %132 = vst [vmem:[%s130 + $0x10] sm:$0xff] %v118
    %133 = vst [vmem:[%s130 + $0x20] sm:$0xff] %v119
    %134 = vst [vmem:[#allocation2 + $0x8] sm:$0xff] 0.0
    %135 = vst [vmem:[#allocation2 + $0x18] sm:$0xff] 0.0
    %136 = vst [vmem:[#allocation2 + $0x28] sm:$0xff] 0.0
    %137 = vst [vmem:[#allocation2 + $0x38] sm:$0xff] 0.0
    %138 = vst [vmem:[#allocation2 + $0x48] sm:$0xff] 0.0
    %139 = vst [vmem:[#allocation2 + $0x58] sm:$0xff] 0.0
    %140 = vst [vmem:[#allocation2 + $0x68] sm:$0xff] 0.0
    %141 = vst [vmem:[#allocation2 + $0x78] sm:$0xff] 0.0
    %142 = vst [vmem:[#allocation2 + $0x88] sm:$0xff] 0.0
    %s143 = sld [smem:[#allocation8]]
    %v144 = vld [vmem:[#allocation2] sm:$0xff]
    %v145 = vld [vmem:[#allocation2 + $0x10] sm:$0xff]
    %v146 = vstv %s143
    %v147 = vmul.f32 %v146, %v144
    %v148 = vmul.f32 %v146, %v145
    %v149 = vadd.f32 %v147, 0.0
    %v150 = vadd.f32 %v148, 0.0
    %s151 = sld [smem:[#allocation8 + $0x1]]
    %v152 = vld [vmem:[#allocation2] sm:$0xff]
    %v153 = vld [vmem:[#allocation2 + $0x8] sm:$0xff]
    %v154 = vld [vmem:[#allocation2 + $0x10] sm:$0xff]
    %v155 = vld [vmem:[#allocation2 + $0x18] sm:$0xff]
    %v156 = vstv %s151
    %v157 = vmul.f32 %v156, %v152
    %v158 = vmul.f32 %v156, %v153
    %v159 = vmul.f32 %v156, %v154
    %v160 = vmul.f32 %v156, %v155
    %v161 = vadd.f32 %v157, 0.0
    %v162 = vadd.f32 %v158, 0.0
    %v163 = vadd.f32 %v159, 0.0
    %v164 = vadd.f32 %v160, 0.0
    %s165 = sld [smem:[#allocation8 + $0x2]]
    %v166 = vstv %s165
    %v167 = vmul.f32 %v166, %v152
    %v168 = vmul.f32 %v166, %v153
    %v169 = vmul.f32 %v166, %v154
    %v170 = vmul.f32 %v166, %v155
    %v171 = vadd.f32 %v167, 0.0
    %v172 = vadd.f32 %v168, 0.0
    %v173 = vadd.f32 %v169, 0.0
    %v174 = vadd.f32 %v170, 0.0
    %s175 = sld [smem:[#allocation8 + $0x3]]
    %v176 = vstv %s175
    %v177 = vmul.f32 %v176, %v152
    %v178 = vmul.f32 %v176, %v153
    %v179 = vmul.f32 %v176, %v154
    %v180 = vmul.f32 %v176, %v155
    %v181 = vadd.f32 %v177, 0.0
    %v182 = vadd.f32 %v178, 0.0
    %v183 = vadd.f32 %v179, 0.0
    %v184 = vadd.f32 %v180, 0.0
    %s185 = sld [smem:[#allocation8 + $0x4]]
    %v186 = vstv %s185
    %v187 = vmul.f32 %v186, %v152
    %v188 = vmul.f32 %v186, %v153
    %v189 = vmul.f32 %v186, %v154
    %v190 = vmul.f32 %v186, %v155
    %195 = vrot.lane.b32.xlu0 %v187, 124
    %v196 = vpop.permute.xlu0 %195
    %197 = vrot.lane.b32.xlu0 %v188, 124
    %v198 = vpop.permute.xlu0 %197
    %199 = vrot.lane.b32.xlu0 %v189, 124
    %v200 = vpop.permute.xlu0 %199
    %201 = vrot.lane.b32.xlu0 %v190, 124
    %v202 = vpop.permute.xlu0 %201
    %vm203 = vcmask 1014784
    %v204 = vsel %vm203, %v196, %v198
    %v205 = vsel %vm203, %v200, %v202
    %v208 = vadd.f32 %v149, %v204
    %v209 = vadd.f32 %v150, %v205
    %s210 = sld [smem:[#allocation8 + $0x5]]
    %v211 = vstv %s210
    %v212 = vmul.f32 %v211, %v152
    %v213 = vmul.f32 %v211, %v153
    %v214 = vmul.f32 %v211, %v154
    %v215 = vmul.f32 %v211, %v155
    %220 = vrot.lane.b32.xlu0 %v212, 124
    %v221 = vpop.permute.xlu0 %220
    %222 = vrot.lane.b32.xlu0 %v213, 124
    %v223 = vpop.permute.xlu0 %222
    %224 = vrot.lane.b32.xlu0 %v214, 124
    %v225 = vpop.permute.xlu0 %224
    %226 = vrot.lane.b32.xlu0 %v215, 124
    %v227 = vpop.permute.xlu0 %226
    %v228 = vsel %vm203, %v221, %v223
    %v229 = vsel %vm203, %v225, %v227
    %v234 = vadd.f32 %v161, %v228
    %v235 = vadd.f32 %v162, %v223
    %v236 = vadd.f32 %v163, %v229
    %v237 = vadd.f32 %v164, %v227
    %s238 = sld [smem:[#allocation8 + $0x6]]
    %v239 = vstv %s238
    %v240 = vmul.f32 %v239, %v152
    %v241 = vmul.f32 %v239, %v153
    %v242 = vmul.f32 %v239, %v154
    %v243 = vmul.f32 %v239, %v155
    %248 = vrot.lane.b32.xlu0 %v240, 124
    %v249 = vpop.permute.xlu0 %248
    %250 = vrot.lane.b32.xlu0 %v241, 124
    %v251 = vpop.permute.xlu0 %250
    %252 = vrot.lane.b32.xlu0 %v242, 124
    %v253 = vpop.permute.xlu0 %252
    %254 = vrot.lane.b32.xlu0 %v243, 124
    %v255 = vpop.permute.xlu0 %254
    %v256 = vsel %vm203, %v249, %v251
    %v257 = vsel %vm203, %v253, %v255
    %v262 = vadd.f32 %v171, %v256
    %v263 = vadd.f32 %v172, %v251
    %v264 = vadd.f32 %v173, %v257
    %v265 = vadd.f32 %v174, %v255
    %s266 = sld [smem:[#allocation8 + $0x7]]
    %v267 = vld [vmem:[#allocation2] sm:$0xfe]
    %v268 = vld [vmem:[#allocation2 + $0x10] sm:$0xff]
    %v269 = vld [vmem:[#allocation2 + $0x20] sm:$0x1]
    %v270 = vstv %s266
    %v271 = vmul.f32 %v270, %v267
    %v272 = vmul.f32 %v270, %v268
    %v273 = vmul.f32 %v270, %v269
    %vm277 = vcmask 1046528
    %v278 = vrot.slane %v271, 1
    %v279 = vrot.slane %v272, 1
    %v280 = vsel %vm277, %v278, %v279
    %v281 = vrot.slane %v273, 1
    %v282 = vsel %vm277, %v279, %v281
    %283 = vrot.lane.b32.xlu0 %v280, 3
    %v284 = vpop.permute.xlu0 %283
    %285 = vrot.lane.b32.xlu0 %v282, 3
    %v286 = vpop.permute.xlu0 %285
    %v289 = vadd.f32 %v181, %v284
    %v290 = vadd.f32 %v182, %v284
    %v291 = vadd.f32 %v183, %v286
    %v292 = vadd.f32 %v184, %v286
    %s293 = sld [smem:[#allocation8 + $0x8]]
    %v294 = vld [vmem:[#allocation2] sm:$0xfe]
    %v295 = vld [vmem:[#allocation2 + $0x8] sm:$0xfe]
    %v296 = vld [vmem:[#allocation2 + $0x10] sm:$0xff]
    %v297 = vld [vmem:[#allocation2 + $0x18] sm:$0xff]
    %v298 = vld [vmem:[#allocation2 + $0x20] sm:$0x1]
    %v299 = vld [vmem:[#allocation2 + $0x28] sm:$0x1]
    %v300 = vstv %s293
    %v301 = vmul.f32 %v300, %v294
    %v302 = vmul.f32 %v300, %v295
    %v303 = vmul.f32 %v300, %v296
    %v304 = vmul.f32 %v300, %v297
    %v305 = vmul.f32 %v300, %v298
    %v306 = vmul.f32 %v300, %v299
    %v313 = vrot.slane %v301, 1
    %v314 = vrot.slane %v303, 1
    %v315 = vsel %vm277, %v313, %v314
    %v316 = vrot.slane %v302, 1
    %v317 = vrot.slane %v304, 1
    %v318 = vsel %vm277, %v316, %v317
    %v319 = vrot.slane %v305, 1
    %v320 = vsel %vm277, %v314, %v319
    %v321 = vrot.slane %v306, 1
    %v322 = vsel %vm277, %v317, %v321
    %323 = vrot.lane.b32.xlu0 %v315, 127
    %v324 = vpop.permute.xlu0 %323
    %325 = vrot.lane.b32.xlu0 %v318, 127
    %v326 = vpop.permute.xlu0 %325
    %327 = vrot.lane.b32.xlu0 %v320, 127
    %v328 = vpop.permute.xlu0 %327
    %329 = vrot.lane.b32.xlu0 %v322, 127
    %v330 = vpop.permute.xlu0 %329
    %vm331 = vcmask 1039360
    %v332 = vsel %vm331, %v324, %v326
    %v333 = vsel %vm331, %v328, %v330
    %v336 = vadd.f32 %v208, %v332
    %v337 = vadd.f32 %v209, %v333
    %s338 = sld [smem:[#allocation8 + $0x9]]
    %v339 = vstv %s338
    %v340 = vmul.f32 %v339, %v294
    %v341 = vmul.f32 %v339, %v295
    %v342 = vmul.f32 %v339, %v296
    %v343 = vmul.f32 %v339, %v297
    %v344 = vmul.f32 %v339, %v298
    %v345 = vmul.f32 %v339, %v299
    %v352 = vrot.slane %v340, 1
    %v353 = vrot.slane %v342, 1
    %v354 = vsel %vm277, %v352, %v353
    %v355 = vrot.slane %v341, 1
    %v356 = vrot.slane %v343, 1
    %v357 = vsel %vm277, %v355, %v356
    %v358 = vrot.slane %v344, 1
    %v359 = vsel %vm277, %v353, %v358
    %v360 = vrot.slane %v345, 1
    %v361 = vsel %vm277, %v356, %v360
    %362 = vrot.lane.b32.xlu0 %v354, 127
    %v363 = vpop.permute.xlu0 %362
    %364 = vrot.lane.b32.xlu0 %v357, 127
    %v365 = vpop.permute.xlu0 %364
    %366 = vrot.lane.b32.xlu0 %v359, 127
    %v367 = vpop.permute.xlu0 %366
    %368 = vrot.lane.b32.xlu0 %v361, 127
    %v369 = vpop.permute.xlu0 %368
    %v370 = vsel %vm331, %v363, %v365
    %v371 = vsel %vm331, %v367, %v369
    %v376 = vadd.f32 %v234, %v370
    %v377 = vadd.f32 %v235, %v365
    %v378 = vadd.f32 %v236, %v371
    %v379 = vadd.f32 %v237, %v369
    %s380 = sld [smem:[#allocation8 + $0xa]]
    %v381 = vstv %s380
    %v382 = vmul.f32 %v381, %v294
    %v383 = vmul.f32 %v381, %v295
    %v384 = vmul.f32 %v381, %v296
    %v385 = vmul.f32 %v381, %v297
    %v386 = vmul.f32 %v381, %v298
    %v387 = vmul.f32 %v381, %v299
    %v394 = vrot.slane %v382, 1
    %v395 = vrot.slane %v384, 1
    %v396 = vsel %vm277, %v394, %v395
    %v397 = vrot.slane %v383, 1
    %v398 = vrot.slane %v385, 1
    %v399 = vsel %vm277, %v397, %v398
    %v400 = vrot.slane %v386, 1
    %v401 = vsel %vm277, %v395, %v400
    %v402 = vrot.slane %v387, 1
    %v403 = vsel %vm277, %v398, %v402
    %404 = vrot.lane.b32.xlu0 %v396, 127
    %v405 = vpop.permute.xlu0 %404
    %406 = vrot.lane.b32.xlu0 %v399, 127
    %v407 = vpop.permute.xlu0 %406
    %408 = vrot.lane.b32.xlu0 %v401, 127
    %v409 = vpop.permute.xlu0 %408
    %410 = vrot.lane.b32.xlu0 %v403, 127
    %v411 = vpop.permute.xlu0 %410
    %v412 = vsel %vm331, %v405, %v407
    %v413 = vsel %vm331, %v409, %v411
    %v418 = vadd.f32 %v262, %v412
    %v419 = vadd.f32 %v263, %v407
    %v420 = vadd.f32 %v264, %v413
    %v421 = vadd.f32 %v265, %v411
    %s422 = sld [smem:[#allocation8 + $0xb]]
    %v423 = vstv %s422
    %v424 = vmul.f32 %v423, %v294
    %v425 = vmul.f32 %v423, %v295
    %v426 = vmul.f32 %v423, %v296
    %v427 = vmul.f32 %v423, %v297
    %v428 = vmul.f32 %v423, %v298
    %v429 = vmul.f32 %v423, %v299
    %v436 = vrot.slane %v424, 1
    %v437 = vrot.slane %v426, 1
    %v438 = vsel %vm277, %v436, %v437
    %v439 = vrot.slane %v425, 1
    %v440 = vrot.slane %v427, 1
    %v441 = vsel %vm277, %v439, %v440
    %v442 = vrot.slane %v428, 1
    %v443 = vsel %vm277, %v437, %v442
    %v444 = vrot.slane %v429, 1
    %v445 = vsel %vm277, %v440, %v444
    %446 = vrot.lane.b32.xlu0 %v438, 127
    %v447 = vpop.permute.xlu0 %446
    %448 = vrot.lane.b32.xlu0 %v441, 127
    %v449 = vpop.permute.xlu0 %448
    %450 = vrot.lane.b32.xlu0 %v443, 127
    %v451 = vpop.permute.xlu0 %450
    %452 = vrot.lane.b32.xlu0 %v445, 127
    %v453 = vpop.permute.xlu0 %452
    %v454 = vsel %vm331, %v447, %v449
    %v455 = vsel %vm331, %v451, %v453
    %v460 = vadd.f32 %v289, %v454
    %v461 = vadd.f32 %v290, %v449
    %v462 = vadd.f32 %v291, %v455
    %v463 = vadd.f32 %v292, %v453
    %s464 = sld [smem:[#allocation8 + $0xc]]
    %v465 = vstv %s464
    %v466 = vmul.f32 %v465, %v294
    %v467 = vmul.f32 %v465, %v295
    %v468 = vmul.f32 %v465, %v296
    %v469 = vmul.f32 %v465, %v297
    %v470 = vmul.f32 %v465, %v298
    %v471 = vmul.f32 %v465, %v299
    %v478 = vrot.slane %v466, 1
    %v479 = vrot.slane %v468, 1
    %v480 = vsel %vm277, %v478, %v479
    %v481 = vrot.slane %v467, 1
    %v482 = vrot.slane %v469, 1
    %v483 = vsel %vm277, %v481, %v482
    %v484 = vrot.slane %v470, 1
    %v485 = vsel %vm277, %v479, %v484
    %v486 = vrot.slane %v471, 1
    %v487 = vsel %vm277, %v482, %v486
    %488 = vrot.lane.b32.xlu0 %v480, 123
    %v489 = vpop.permute.xlu0 %488
    %490 = vrot.lane.b32.xlu0 %v483, 123
    %v491 = vpop.permute.xlu0 %490
    %492 = vrot.lane.b32.xlu0 %v485, 123
    %v493 = vpop.permute.xlu0 %492
    %494 = vrot.lane.b32.xlu0 %v487, 123
    %v495 = vpop.permute.xlu0 %494
    %vm496 = vcmask 1006592
    %v497 = vsel %vm496, %v489, %v491
    %v498 = vsel %vm496, %v493, %v495
    %v501 = vadd.f32 %v336, %v497
    %v502 = vadd.f32 %v337, %v498
    %s503 = sld [smem:[#allocation8 + $0xd]]
    %v504 = vstv %s503
    %v505 = vmul.f32 %v504, %v294
    %v506 = vmul.f32 %v504, %v295
    %v507 = vmul.f32 %v504, %v296
    %v508 = vmul.f32 %v504, %v297
    %v509 = vmul.f32 %v504, %v298
    %v510 = vmul.f32 %v504, %v299
    %v517 = vrot.slane %v505, 1
    %v518 = vrot.slane %v507, 1
    %v519 = vsel %vm277, %v517, %v518
    %v520 = vrot.slane %v506, 1
    %v521 = vrot.slane %v508, 1
    %v522 = vsel %vm277, %v520, %v521
    %v523 = vrot.slane %v509, 1
    %v524 = vsel %vm277, %v518, %v523
    %v525 = vrot.slane %v510, 1
    %v526 = vsel %vm277, %v521, %v525
    %527 = vrot.lane.b32.xlu0 %v519, 123
    %v528 = vpop.permute.xlu0 %527
    %529 = vrot.lane.b32.xlu0 %v522, 123
    %v530 = vpop.permute.xlu0 %529
    %531 = vrot.lane.b32.xlu0 %v524, 123
    %v532 = vpop.permute.xlu0 %531
    %533 = vrot.lane.b32.xlu0 %v526, 123
    %v534 = vpop.permute.xlu0 %533
    %v535 = vsel %vm496, %v528, %v530
    %v536 = vsel %vm496, %v532, %v534
    %v541 = vadd.f32 %v376, %v535
    %v542 = vadd.f32 %v377, %v530
    %v543 = vadd.f32 %v378, %v536
    %v544 = vadd.f32 %v379, %v534
    %s545 = sld [smem:[#allocation8 + $0xe]]
    %v546 = vld [vmem:[#allocation2] sm:$0xfc]
    %v547 = vld [vmem:[#allocation2 + $0x20] sm:$0x3]
    %v548 = vstv %s545
    %v549 = vmul.f32 %v548, %v546
    %v550 = vmul.f32 %v548, %v268
    %v551 = vmul.f32 %v548, %v547
    %vm555 = vcmask 1045504
    %v556 = vrot.slane %v549, 2
    %v557 = vrot.slane %v550, 2
    %v558 = vsel %vm555, %v556, %v557
    %v559 = vrot.slane %v551, 2
    %v560 = vsel %vm555, %v557, %v559
    %561 = vrot.lane.b32.xlu0 %v558, 2
    %v562 = vpop.permute.xlu0 %561
    %563 = vrot.lane.b32.xlu0 %v560, 2
    %v564 = vpop.permute.xlu0 %563
    %v567 = vadd.f32 %v418, %v562
    %v568 = vadd.f32 %v419, %v562
    %v569 = vadd.f32 %v420, %v564
    %v570 = vadd.f32 %v421, %v564
    %s571 = sld [smem:[#allocation8 + $0xf]]
    %v572 = vld [vmem:[#allocation2] sm:$0xfc]
    %v573 = vld [vmem:[#allocation2 + $0x8] sm:$0xfc]
    %v574 = vld [vmem:[#allocation2 + $0x20] sm:$0x3]
    %v575 = vld [vmem:[#allocation2 + $0x28] sm:$0x3]
    %v576 = vstv %s571
    %v577 = vmul.f32 %v576, %v572
    %v578 = vmul.f32 %v576, %v573
    %v579 = vmul.f32 %v576, %v296
    %v580 = vmul.f32 %v576, %v297
    %v581 = vmul.f32 %v576, %v574
    %v582 = vmul.f32 %v576, %v575
    %v589 = vrot.slane %v577, 2
    %v590 = vrot.slane %v579, 2
    %v591 = vsel %vm555, %v589, %v590
    %v592 = vrot.slane %v578, 2
    %v593 = vrot.slane %v580, 2
    %v594 = vsel %vm555, %v592, %v593
    %v595 = vrot.slane %v581, 2
    %v596 = vsel %vm555, %v590, %v595
    %v597 = vrot.slane %v582, 2
    %v598 = vsel %vm555, %v593, %v597
    %599 = vrot.lane.b32.xlu0 %v591, 2
    %v600 = vpop.permute.xlu0 %599
    %601 = vrot.lane.b32.xlu0 %v594, 2
    %v602 = vpop.permute.xlu0 %601
    %603 = vrot.lane.b32.xlu0 %v596, 2
    %v604 = vpop.permute.xlu0 %603
    %605 = vrot.lane.b32.xlu0 %v598, 2
    %v606 = vpop.permute.xlu0 %605
    %vm607 = vcmask 15360
    %v608 = vsel %vm607, %v600, %v602
    %v609 = vsel %vm607, %v604, %v606
    %v614 = vadd.f32 %v460, %v600
    %v615 = vadd.f32 %v461, %v608
    %v616 = vadd.f32 %v462, %v604
    %v617 = vadd.f32 %v463, %v609
    %s618 = sld [smem:[#allocation8 + $0x10]]
    %v619 = vstv %s618
    %v620 = vmul.f32 %v619, %v572
    %v621 = vmul.f32 %v619, %v573
    %v622 = vmul.f32 %v619, %v296
    %v623 = vmul.f32 %v619, %v297
    %v624 = vmul.f32 %v619, %v574
    %v625 = vmul.f32 %v619, %v575
    %v632 = vrot.slane %v620, 2
    %v633 = vrot.slane %v622, 2
    %v634 = vsel %vm555, %v632, %v633
    %v635 = vrot.slane %v621, 2
    %v636 = vrot.slane %v623, 2
    %v637 = vsel %vm555, %v635, %v636
    %v638 = vrot.slane %v624, 2
    %v639 = vsel %vm555, %v633, %v638
    %v640 = vrot.slane %v625, 2
    %v641 = vsel %vm555, %v636, %v640
    %642 = vrot.lane.b32.xlu0 %v634, 126
    %v643 = vpop.permute.xlu0 %642
    %644 = vrot.lane.b32.xlu0 %v637, 126
    %v645 = vpop.permute.xlu0 %644
    %646 = vrot.lane.b32.xlu0 %v639, 126
    %v647 = vpop.permute.xlu0 %646
    %648 = vrot.lane.b32.xlu0 %v641, 126
    %v649 = vpop.permute.xlu0 %648
    %vm650 = vcmask 1031168
    %v651 = vsel %vm650, %v643, %v645
    %v652 = vsel %vm650, %v647, %v649
    %v655 = vadd.f32 %v501, %v651
    %v656 = vadd.f32 %v502, %v652
    %s657 = sld [smem:[#allocation8 + $0x11]]
    %v658 = vstv %s657
    %v659 = vmul.f32 %v658, %v572
    %v660 = vmul.f32 %v658, %v573
    %v661 = vmul.f32 %v658, %v296
    %v662 = vmul.f32 %v658, %v297
    %v663 = vmul.f32 %v658, %v574
    %v664 = vmul.f32 %v658, %v575
    %v671 = vrot.slane %v659, 2
    %v672 = vrot.slane %v661, 2
    %v673 = vsel %vm555, %v671, %v672
    %v674 = vrot.slane %v660, 2
    %v675 = vrot.slane %v662, 2
    %v676 = vsel %vm555, %v674, %v675
    %v677 = vrot.slane %v663, 2
    %v678 = vsel %vm555, %v672, %v677
    %v679 = vrot.slane %v664, 2
    %v680 = vsel %vm555, %v675, %v679
    %681 = vrot.lane.b32.xlu0 %v673, 126
    %v682 = vpop.permute.xlu0 %681
    %683 = vrot.lane.b32.xlu0 %v676, 126
    %v684 = vpop.permute.xlu0 %683
    %685 = vrot.lane.b32.xlu0 %v678, 126
    %v686 = vpop.permute.xlu0 %685
    %687 = vrot.lane.b32.xlu0 %v680, 126
    %v688 = vpop.permute.xlu0 %687
    %v689 = vsel %vm650, %v682, %v684
    %v690 = vsel %vm650, %v686, %v688
    %v695 = vadd.f32 %v541, %v689
    %v696 = vadd.f32 %v542, %v684
    %v697 = vadd.f32 %v543, %v690
    %v698 = vadd.f32 %v544, %v688
    %s699 = sld [smem:[#allocation8 + $0x12]]
    %v700 = vstv %s699
    %v701 = vmul.f32 %v700, %v572
    %v702 = vmul.f32 %v700, %v573
    %v703 = vmul.f32 %v700, %v296
    %v704 = vmul.f32 %v700, %v297
    %v705 = vmul.f32 %v700, %v574
    %v706 = vmul.f32 %v700, %v575
    %v713 = vrot.slane %v701, 2
    %v714 = vrot.slane %v703, 2
    %v715 = vsel %vm555, %v713, %v714
    %v716 = vrot.slane %v702, 2
    %v717 = vrot.slane %v704, 2
    %v718 = vsel %vm555, %v716, %v717
    %v719 = vrot.slane %v705, 2
    %v720 = vsel %vm555, %v714, %v719
    %v721 = vrot.slane %v706, 2
    %v722 = vsel %vm555, %v717, %v721
    %723 = vrot.lane.b32.xlu0 %v715, 126
    %v724 = vpop.permute.xlu0 %723
    %725 = vrot.lane.b32.xlu0 %v718, 126
    %v726 = vpop.permute.xlu0 %725
    %727 = vrot.lane.b32.xlu0 %v720, 126
    %v728 = vpop.permute.xlu0 %727
    %729 = vrot.lane.b32.xlu0 %v722, 126
    %v730 = vpop.permute.xlu0 %729
    %v731 = vsel %vm650, %v724, %v726
    %v732 = vsel %vm650, %v728, %v730
    %v737 = vadd.f32 %v567, %v731
    %v738 = vadd.f32 %v568, %v726
    %v739 = vadd.f32 %v569, %v732
    %v740 = vadd.f32 %v570, %v730
    %s741 = sld [smem:[#allocation8 + $0x13]]
    %v742 = vstv %s741
    %v743 = vmul.f32 %v742, %v572
    %v744 = vmul.f32 %v742, %v573
    %v745 = vmul.f32 %v742, %v296
    %v746 = vmul.f32 %v742, %v297
    %v747 = vmul.f32 %v742, %v574
    %v748 = vmul.f32 %v742, %v575
    %v755 = vrot.slane %v743, 2
    %v756 = vrot.slane %v745, 2
    %v757 = vsel %vm555, %v755, %v756
    %v758 = vrot.slane %v744, 2
    %v759 = vrot.slane %v746, 2
    %v760 = vsel %vm555, %v758, %v759
    %v761 = vrot.slane %v747, 2
    %v762 = vsel %vm555, %v756, %v761
    %v763 = vrot.slane %v748, 2
    %v764 = vsel %vm555, %v759, %v763
    %765 = vrot.lane.b32.xlu0 %v757, 126
    %v766 = vpop.permute.xlu0 %765
    %767 = vrot.lane.b32.xlu0 %v760, 126
    %v768 = vpop.permute.xlu0 %767
    %769 = vrot.lane.b32.xlu0 %v762, 126
    %v770 = vpop.permute.xlu0 %769
    %771 = vrot.lane.b32.xlu0 %v764, 126
    %v772 = vpop.permute.xlu0 %771
    %v773 = vsel %vm650, %v766, %v768
    %v774 = vsel %vm650, %v770, %v772
    %v779 = vadd.f32 %v614, %v773
    %v780 = vadd.f32 %v615, %v768
    %v781 = vadd.f32 %v616, %v774
    %v782 = vadd.f32 %v617, %v772
    %s783 = sld [smem:[#allocation8 + $0x14]]
    %v784 = vstv %s783
    %v785 = vmul.f32 %v784, %v572
    %v786 = vmul.f32 %v784, %v573
    %v787 = vmul.f32 %v784, %v296
    %v788 = vmul.f32 %v784, %v297
    %v789 = vmul.f32 %v784, %v574
    %v790 = vmul.f32 %v784, %v575
    %v797 = vrot.slane %v785, 2
    %v798 = vrot.slane %v787, 2
    %v799 = vsel %vm555, %v797, %v798
    %v800 = vrot.slane %v786, 2
    %v801 = vrot.slane %v788, 2
    %v802 = vsel %vm555, %v800, %v801
    %v803 = vrot.slane %v789, 2
    %v804 = vsel %vm555, %v798, %v803
    %v805 = vrot.slane %v790, 2
    %v806 = vsel %vm555, %v801, %v805
    %807 = vrot.lane.b32.xlu0 %v799, 122
    %v808 = vpop.permute.xlu0 %807
    %809 = vrot.lane.b32.xlu0 %v802, 122
    %v810 = vpop.permute.xlu0 %809
    %811 = vrot.lane.b32.xlu0 %v804, 122
    %v812 = vpop.permute.xlu0 %811
    %813 = vrot.lane.b32.xlu0 %v806, 122
    %v814 = vpop.permute.xlu0 %813
    %vm815 = vcmask 998400
    %v816 = vsel %vm815, %v808, %v810
    %v817 = vsel %vm815, %v812, %v814
    %v820 = vadd.f32 %v655, %v816
    %v821 = vadd.f32 %v656, %v817
    %s822 = sld [smem:[#allocation8 + $0x15]]
    %v823 = vld [vmem:[#allocation2] sm:$0xf8]
    %v824 = vld [vmem:[#allocation2 + $0x20] sm:$0x7]
    %v825 = vstv %s822
    %v826 = vmul.f32 %v825, %v823
    %v827 = vmul.f32 %v825, %v268
    %v828 = vmul.f32 %v825, %v824
    %vm832 = vcmask 1044480
    %v833 = vrot.slane %v826, 3
    %v834 = vrot.slane %v827, 3
    %v835 = vsel %vm832, %v833, %v834
    %v836 = vrot.slane %v828, 3
    %v837 = vsel %vm832, %v834, %v836
    %838 = vrot.lane.b32.xlu0 %v835, 1
    %v839 = vpop.permute.xlu0 %838
    %840 = vrot.lane.b32.xlu0 %v837, 1
    %v841 = vpop.permute.xlu0 %840
    %v844 = vadd.f32 %v695, %v839
    %v845 = vadd.f32 %v696, %v839
    %v846 = vadd.f32 %v697, %v841
    %v847 = vadd.f32 %v698, %v841
    %s848 = sld [smem:[#allocation8 + $0x16]]
    %v849 = vld [vmem:[#allocation2] sm:$0xf8]
    %v850 = vld [vmem:[#allocation2 + $0x8] sm:$0xf8]
    %v851 = vld [vmem:[#allocation2 + $0x20] sm:$0x7]
    %v852 = vld [vmem:[#allocation2 + $0x28] sm:$0x7]
    %v853 = vstv %s848
    %v854 = vmul.f32 %v853, %v849
    %v855 = vmul.f32 %v853, %v850
    %v856 = vmul.f32 %v853, %v296
    %v857 = vmul.f32 %v853, %v297
    %v858 = vmul.f32 %v853, %v851
    %v859 = vmul.f32 %v853, %v852
    %v866 = vrot.slane %v854, 3
    %v867 = vrot.slane %v856, 3
    %v868 = vsel %vm832, %v866, %v867
    %v869 = vrot.slane %v855, 3
    %v870 = vrot.slane %v857, 3
    %v871 = vsel %vm832, %v869, %v870
    %v872 = vrot.slane %v858, 3
    %v873 = vsel %vm832, %v867, %v872
    %v874 = vrot.slane %v859, 3
    %v875 = vsel %vm832, %v870, %v874
    %876 = vrot.lane.b32.xlu0 %v868, 1
    %v877 = vpop.permute.xlu0 %876
    %878 = vrot.lane.b32.xlu0 %v871, 1
    %v879 = vpop.permute.xlu0 %878
    %880 = vrot.lane.b32.xlu0 %v873, 1
    %v881 = vpop.permute.xlu0 %880
    %882 = vrot.lane.b32.xlu0 %v875, 1
    %v883 = vpop.permute.xlu0 %882
    %vm884 = vcmask 7168
    %v885 = vsel %vm884, %v877, %v879
    %v886 = vsel %vm884, %v881, %v883
    %v891 = vadd.f32 %v737, %v877
    %v892 = vadd.f32 %v738, %v885
    %v893 = vadd.f32 %v739, %v881
    %v894 = vadd.f32 %v740, %v886
    %s895 = sld [smem:[#allocation8 + $0x17]]
    %v896 = vstv %s895
    %v897 = vmul.f32 %v896, %v849
    %v898 = vmul.f32 %v896, %v850
    %v899 = vmul.f32 %v896, %v296
    %v900 = vmul.f32 %v896, %v297
    %v901 = vmul.f32 %v896, %v851
    %v902 = vmul.f32 %v896, %v852
    %v909 = vrot.slane %v897, 3
    %v910 = vrot.slane %v899, 3
    %v911 = vsel %vm832, %v909, %v910
    %v912 = vrot.slane %v898, 3
    %v913 = vrot.slane %v900, 3
    %v914 = vsel %vm832, %v912, %v913
    %v915 = vrot.slane %v901, 3
    %v916 = vsel %vm832, %v910, %v915
    %v917 = vrot.slane %v902, 3
    %v918 = vsel %vm832, %v913, %v917
    %919 = vrot.lane.b32.xlu0 %v911, 1
    %v920 = vpop.permute.xlu0 %919
    %921 = vrot.lane.b32.xlu0 %v914, 1
    %v922 = vpop.permute.xlu0 %921
    %923 = vrot.lane.b32.xlu0 %v916, 1
    %v924 = vpop.permute.xlu0 %923
    %925 = vrot.lane.b32.xlu0 %v918, 1
    %v926 = vpop.permute.xlu0 %925
    %v927 = vsel %vm884, %v920, %v922
    %v928 = vsel %vm884, %v924, %v926
    %v933 = vadd.f32 %v779, %v920
    %v934 = vadd.f32 %v780, %v927
    %v935 = vadd.f32 %v781, %v924
    %v936 = vadd.f32 %v782, %v928
    %s937 = sld [smem:[#allocation8 + $0x18]]
    %v938 = vstv %s937
    %v939 = vmul.f32 %v938, %v849
    %v940 = vmul.f32 %v938, %v850
    %v941 = vmul.f32 %v938, %v296
    %v942 = vmul.f32 %v938, %v297
    %v943 = vmul.f32 %v938, %v851
    %v944 = vmul.f32 %v938, %v852
    %v951 = vrot.slane %v939, 3
    %v952 = vrot.slane %v941, 3
    %v953 = vsel %vm832, %v951, %v952
    %v954 = vrot.slane %v940, 3
    %v955 = vrot.slane %v942, 3
    %v956 = vsel %vm832, %v954, %v955
    %v957 = vrot.slane %v943, 3
    %v958 = vsel %vm832, %v952, %v957
    %v959 = vrot.slane %v944, 3
    %v960 = vsel %vm832, %v955, %v959
    %961 = vrot.lane.b32.xlu0 %v953, 125
    %v962 = vpop.permute.xlu0 %961
    %963 = vrot.lane.b32.xlu0 %v956, 125
    %v964 = vpop.permute.xlu0 %963
    %965 = vrot.lane.b32.xlu0 %v958, 125
    %v966 = vpop.permute.xlu0 %965
    %967 = vrot.lane.b32.xlu0 %v960, 125
    %v968 = vpop.permute.xlu0 %967
    %vm969 = vcmask 1022976
    %v970 = vsel %vm969, %v962, %v964
    %v971 = vsel %vm969, %v966, %v968
    %v974 = vadd.f32 %v820, %v970
    %v975 = vadd.f32 %v821, %v971
    %s976 = sld [smem:[#allocation8 + $0x19]]
    %v977 = vstv %s976
    %v978 = vmul.f32 %v977, %v849
    %v979 = vmul.f32 %v977, %v850
    %v980 = vmul.f32 %v977, %v296
    %v981 = vmul.f32 %v977, %v297
    %v982 = vmul.f32 %v977, %v851
    %v983 = vmul.f32 %v977, %v852
    %v990 = vrot.slane %v978, 3
    %v991 = vrot.slane %v980, 3
    %v992 = vsel %vm832, %v990, %v991
    %v993 = vrot.slane %v979, 3
    %v994 = vrot.slane %v981, 3
    %v995 = vsel %vm832, %v993, %v994
    %v996 = vrot.slane %v982, 3
    %v997 = vsel %vm832, %v991, %v996
    %v998 = vrot.slane %v983, 3
    %v999 = vsel %vm832, %v994, %v998
    %1000 = vrot.lane.b32.xlu0 %v992, 125
    %v1001 = vpop.permute.xlu0 %1000
    %1002 = vrot.lane.b32.xlu0 %v995, 125
    %v1003 = vpop.permute.xlu0 %1002
    %1004 = vrot.lane.b32.xlu0 %v997, 125
    %v1005 = vpop.permute.xlu0 %1004
    %1006 = vrot.lane.b32.xlu0 %v999, 125
    %v1007 = vpop.permute.xlu0 %1006
    %v1008 = vsel %vm969, %v1001, %v1003
    %v1009 = vsel %vm969, %v1005, %v1007
    %v1014 = vadd.f32 %v844, %v1008
    %v1015 = vadd.f32 %v845, %v1003
    %v1016 = vadd.f32 %v846, %v1009
    %v1017 = vadd.f32 %v847, %v1007
    %s1018 = sld [smem:[#allocation8 + $0x1a]]
    %v1019 = vstv %s1018
    %v1020 = vmul.f32 %v1019, %v849
    %v1021 = vmul.f32 %v1019, %v850
    %v1022 = vmul.f32 %v1019, %v296
    %v1023 = vmul.f32 %v1019, %v297
    %v1024 = vmul.f32 %v1019, %v851
    %v1025 = vmul.f32 %v1019, %v852
    %v1032 = vrot.slane %v1020, 3
    %v1033 = vrot.slane %v1022, 3
    %v1034 = vsel %vm832, %v1032, %v1033
    %v1035 = vrot.slane %v1021, 3
    %v1036 = vrot.slane %v1023, 3
    %v1037 = vsel %vm832, %v1035, %v1036
    %v1038 = vrot.slane %v1024, 3
    %v1039 = vsel %vm832, %v1033, %v1038
    %v1040 = vrot.slane %v1025, 3
    %v1041 = vsel %vm832, %v1036, %v1040
    %1042 = vrot.lane.b32.xlu0 %v1034, 125
    %v1043 = vpop.permute.xlu0 %1042
    %1044 = vrot.lane.b32.xlu0 %v1037, 125
    %v1045 = vpop.permute.xlu0 %1044
    %1046 = vrot.lane.b32.xlu0 %v1039, 125
    %v1047 = vpop.permute.xlu0 %1046
    %1048 = vrot.lane.b32.xlu0 %v1041, 125
    %v1049 = vpop.permute.xlu0 %1048
    %v1050 = vsel %vm969, %v1043, %v1045
    %v1051 = vsel %vm969, %v1047, %v1049
    %v1056 = vadd.f32 %v891, %v1050
    %v1057 = vadd.f32 %v892, %v1045
    %v1058 = vadd.f32 %v893, %v1051
    %v1059 = vadd.f32 %v894, %v1049
    %s1060 = sld [smem:[#allocation8 + $0x1b]]
    %v1061 = vstv %s1060
    %v1062 = vmul.f32 %v1061, %v849
    %v1063 = vmul.f32 %v1061, %v850
    %v1064 = vmul.f32 %v1061, %v296
    %v1065 = vmul.f32 %v1061, %v297
    %v1066 = vmul.f32 %v1061, %v851
    %v1067 = vmul.f32 %v1061, %v852
    %v1074 = vrot.slane %v1062, 3
    %v1075 = vrot.slane %v1064, 3
    %v1076 = vsel %vm832, %v1074, %v1075
    %v1077 = vrot.slane %v1063, 3
    %v1078 = vrot.slane %v1065, 3
    %v1079 = vsel %vm832, %v1077, %v1078
    %v1080 = vrot.slane %v1066, 3
    %v1081 = vsel %vm832, %v1075, %v1080
    %v1082 = vrot.slane %v1067, 3
    %v1083 = vsel %vm832, %v1078, %v1082
    %1084 = vrot.lane.b32.xlu0 %v1076, 125
    %v1085 = vpop.permute.xlu0 %1084
    %1086 = vrot.lane.b32.xlu0 %v1079, 125
    %v1087 = vpop.permute.xlu0 %1086
    %1088 = vrot.lane.b32.xlu0 %v1081, 125
    %v1089 = vpop.permute.xlu0 %1088
    %1090 = vrot.lane.b32.xlu0 %v1083, 125
    %v1091 = vpop.permute.xlu0 %1090
    %v1092 = vsel %vm969, %v1085, %v1087
    %v1093 = vsel %vm969, %v1089, %v1091
    %v1098 = vadd.f32 %v933, %v1092
    %v1099 = vadd.f32 %v934, %v1087
    %v1100 = vadd.f32 %v935, %v1093
    %v1101 = vadd.f32 %v936, %v1091
    %s1102 = sld [smem:[#allocation8 + $0x1c]]
    %v1103 = vld [vmem:[#allocation2] sm:$0xf0]
    %v1104 = vld [vmem:[#allocation2 + $0x20] sm:$0xf]
    %v1105 = vstv %s1102
    %v1106 = vmul.f32 %v1105, %v1103
    %v1107 = vmul.f32 %v1105, %v268
    %v1108 = vmul.f32 %v1105, %v1104
    %vm1112 = vcmask 1043456
    %v1113 = vrot.slane %v1106, 4
    %v1114 = vrot.slane %v1107, 4
    %v1115 = vsel %vm1112, %v1113, %v1114
    %v1116 = vrot.slane %v1108, 4
    %v1117 = vsel %vm1112, %v1114, %v1116
    %v1120 = vadd.f32 %v974, %v1115
    %v1121 = vadd.f32 %v975, %v1117
    %s1122 = sld [smem:[#allocation8 + $0x1d]]
    %v1123 = vld [vmem:[#allocation2] sm:$0xf0]
    %v1124 = vld [vmem:[#allocation2 + $0x8] sm:$0xf0]
    %v1125 = vld [vmem:[#allocation2 + $0x20] sm:$0xf]
    %v1126 = vld [vmem:[#allocation2 + $0x28] sm:$0xf]
    %v1127 = vstv %s1122
    %v1128 = vmul.f32 %v1127, %v1123
    %v1129 = vmul.f32 %v1127, %v1124
    %v1130 = vmul.f32 %v1127, %v296
    %v1131 = vmul.f32 %v1127, %v297
    %v1132 = vmul.f32 %v1127, %v1125
    %v1133 = vmul.f32 %v1127, %v1126
    %v1140 = vrot.slane %v1128, 4
    %v1141 = vrot.slane %v1130, 4
    %v1142 = vsel %vm1112, %v1140, %v1141
    %v1143 = vrot.slane %v1129, 4
    %v1144 = vrot.slane %v1131, 4
    %v1145 = vsel %vm1112, %v1143, %v1144
    %v1146 = vrot.slane %v1132, 4
    %v1147 = vsel %vm1112, %v1141, %v1146
    %v1148 = vrot.slane %v1133, 4
    %v1149 = vsel %vm1112, %v1144, %v1148
    %v1154 = vadd.f32 %v1014, %v1142
    %v1155 = vadd.f32 %v1015, %v1145
    %v1156 = vadd.f32 %v1016, %v1147
    %v1157 = vadd.f32 %v1017, %v1149
    %s1158 = sld [smem:[#allocation8 + $0x1e]]
    %v1159 = vstv %s1158
    %v1160 = vmul.f32 %v1159, %v1123
    %v1161 = vmul.f32 %v1159, %v1124
    %v1162 = vmul.f32 %v1159, %v296
    %v1163 = vmul.f32 %v1159, %v297
    %v1164 = vmul.f32 %v1159, %v1125
    %v1165 = vmul.f32 %v1159, %v1126
    %v1172 = vrot.slane %v1160, 4
    %v1173 = vrot.slane %v1162, 4
    %v1174 = vsel %vm1112, %v1172, %v1173
    %v1175 = vrot.slane %v1161, 4
    %v1176 = vrot.slane %v1163, 4
    %v1177 = vsel %vm1112, %v1175, %v1176
    %v1178 = vrot.slane %v1164, 4
    %v1179 = vsel %vm1112, %v1173, %v1178
    %v1180 = vrot.slane %v1165, 4
    %v1181 = vsel %vm1112, %v1176, %v1180
    %v1186 = vadd.f32 %v1056, %v1174
    %v1187 = vadd.f32 %v1057, %v1177
    %v1188 = vadd.f32 %v1058, %v1179
    %v1189 = vadd.f32 %v1059, %v1181
    %s1190 = sld [smem:[#allocation8 + $0x1f]]
    %v1191 = vstv %s1190
    %v1192 = vmul.f32 %v1191, %v1123
    %v1193 = vmul.f32 %v1191, %v1124
    %v1194 = vmul.f32 %v1191, %v296
    %v1195 = vmul.f32 %v1191, %v297
    %v1196 = vmul.f32 %v1191, %v1125
    %v1197 = vmul.f32 %v1191, %v1126
    %v1204 = vrot.slane %v1192, 4
    %v1205 = vrot.slane %v1194, 4
    %v1206 = vsel %vm1112, %v1204, %v1205
    %v1207 = vrot.slane %v1193, 4
    %v1208 = vrot.slane %v1195, 4
    %v1209 = vsel %vm1112, %v1207, %v1208
    %v1210 = vrot.slane %v1196, 4
    %v1211 = vsel %vm1112, %v1205, %v1210
    %v1212 = vrot.slane %v1197, 4
    %v1213 = vsel %vm1112, %v1208, %v1212
    %v1218 = vadd.f32 %v1098, %v1206
    %v1219 = vadd.f32 %v1099, %v1209
    %v1220 = vadd.f32 %v1100, %v1211
    %v1221 = vadd.f32 %v1101, %v1213
    %s1222 = sld [smem:[#allocation8 + $0x20]]
    %v1223 = vstv %s1222
    %v1224 = vmul.f32 %v1223, %v1123
    %v1225 = vmul.f32 %v1223, %v1124
    %v1226 = vmul.f32 %v1223, %v296
    %v1227 = vmul.f32 %v1223, %v297
    %v1228 = vmul.f32 %v1223, %v1125
    %v1229 = vmul.f32 %v1223, %v1126
    %v1236 = vrot.slane %v1224, 4
    %v1237 = vrot.slane %v1226, 4
    %v1238 = vsel %vm1112, %v1236, %v1237
    %v1239 = vrot.slane %v1225, 4
    %v1240 = vrot.slane %v1227, 4
    %v1241 = vsel %vm1112, %v1239, %v1240
    %v1242 = vrot.slane %v1228, 4
    %v1243 = vsel %vm1112, %v1237, %v1242
    %v1244 = vrot.slane %v1229, 4
    %v1245 = vsel %vm1112, %v1240, %v1244
    %1246 = vrot.lane.b32.xlu0 %v1238, 124
    %v1247 = vpop.permute.xlu0 %1246
    %1248 = vrot.lane.b32.xlu0 %v1241, 124
    %v1249 = vpop.permute.xlu0 %1248
    %1250 = vrot.lane.b32.xlu0 %v1243, 124
    %v1251 = vpop.permute.xlu0 %1250
    %1252 = vrot.lane.b32.xlu0 %v1245, 124
    %v1253 = vpop.permute.xlu0 %1252
    %v1254 = vsel %vm203, %v1247, %v1249
    %v1255 = vsel %vm203, %v1251, %v1253
    %v1258 = vadd.f32 %v1120, %v1254
    %v1259 = vadd.f32 %v1121, %v1255
    %s1260 = sld [smem:[#allocation8 + $0x21]]
    %v1261 = vstv %s1260
    %v1262 = vmul.f32 %v1261, %v1123
    %v1263 = vmul.f32 %v1261, %v1124
    %v1264 = vmul.f32 %v1261, %v296
    %v1265 = vmul.f32 %v1261, %v297
    %v1266 = vmul.f32 %v1261, %v1125
    %v1267 = vmul.f32 %v1261, %v1126
    %v1274 = vrot.slane %v1262, 4
    %v1275 = vrot.slane %v1264, 4
    %v1276 = vsel %vm1112, %v1274, %v1275
    %v1277 = vrot.slane %v1263, 4
    %v1278 = vrot.slane %v1265, 4
    %v1279 = vsel %vm1112, %v1277, %v1278
    %v1280 = vrot.slane %v1266, 4
    %v1281 = vsel %vm1112, %v1275, %v1280
    %v1282 = vrot.slane %v1267, 4
    %v1283 = vsel %vm1112, %v1278, %v1282
    %1284 = vrot.lane.b32.xlu0 %v1276, 124
    %v1285 = vpop.permute.xlu0 %1284
    %1286 = vrot.lane.b32.xlu0 %v1279, 124
    %v1287 = vpop.permute.xlu0 %1286
    %1288 = vrot.lane.b32.xlu0 %v1281, 124
    %v1289 = vpop.permute.xlu0 %1288
    %1290 = vrot.lane.b32.xlu0 %v1283, 124
    %v1291 = vpop.permute.xlu0 %1290
    %v1292 = vsel %vm203, %v1285, %v1287
    %v1293 = vsel %vm203, %v1289, %v1291
    %v1298 = vadd.f32 %v1154, %v1292
    %v1299 = vadd.f32 %v1155, %v1287
    %v1300 = vadd.f32 %v1156, %v1293
    %v1301 = vadd.f32 %v1157, %v1291
    %s1302 = sld [smem:[#allocation8 + $0x22]]
    %v1303 = vstv %s1302
    %v1304 = vmul.f32 %v1303, %v1123
    %v1305 = vmul.f32 %v1303, %v1124
    %v1306 = vmul.f32 %v1303, %v296
    %v1307 = vmul.f32 %v1303, %v297
    %v1308 = vmul.f32 %v1303, %v1125
    %v1309 = vmul.f32 %v1303, %v1126
    %v1316 = vrot.slane %v1304, 4
    %v1317 = vrot.slane %v1306, 4
    %v1318 = vsel %vm1112, %v1316, %v1317
    %v1319 = vrot.slane %v1305, 4
    %v1320 = vrot.slane %v1307, 4
    %v1321 = vsel %vm1112, %v1319, %v1320
    %v1322 = vrot.slane %v1308, 4
    %v1323 = vsel %vm1112, %v1317, %v1322
    %v1324 = vrot.slane %v1309, 4
    %v1325 = vsel %vm1112, %v1320, %v1324
    %1326 = vrot.lane.b32.xlu0 %v1318, 124
    %v1327 = vpop.permute.xlu0 %1326
    %1328 = vrot.lane.b32.xlu0 %v1321, 124
    %v1329 = vpop.permute.xlu0 %1328
    %1330 = vrot.lane.b32.xlu0 %v1323, 124
    %v1331 = vpop.permute.xlu0 %1330
    %1332 = vrot.lane.b32.xlu0 %v1325, 124
    %v1333 = vpop.permute.xlu0 %1332
    %v1334 = vsel %vm203, %v1327, %v1329
    %v1335 = vsel %vm203, %v1331, %v1333
    %v1340 = vadd.f32 %v1186, %v1334
    %v1341 = vadd.f32 %v1187, %v1329
    %v1342 = vadd.f32 %v1188, %v1335
    %v1343 = vadd.f32 %v1189, %v1333
    %s1344 = sld [smem:[#allocation8 + $0x23]]
    %v1345 = vld [vmem:[#allocation2] sm:$0xe0]
    %v1346 = vld [vmem:[#allocation2 + $0x20] sm:$0x1f]
    %v1347 = vstv %s1344
    %v1348 = vmul.f32 %v1347, %v1345
    %v1349 = vmul.f32 %v1347, %v268
    %v1350 = vmul.f32 %v1347, %v1346
    %vm1354 = vcmask 1042432
    %v1355 = vrot.slane %v1348, 5
    %v1356 = vrot.slane %v1349, 5
    %v1357 = vsel %vm1354, %v1355, %v1356
    %v1358 = vrot.slane %v1350, 5
    %v1359 = vsel %vm1354, %v1356, %v1358
    %1360 = vrot.lane.b32.xlu0 %v1357, 3
    %v1361 = vpop.permute.xlu0 %1360
    %1362 = vrot.lane.b32.xlu0 %v1359, 3
    %v1363 = vpop.permute.xlu0 %1362
    %v1366 = vadd.f32 %v1218, %v1361
    %v1367 = vadd.f32 %v1219, %v1361
    %v1368 = vadd.f32 %v1220, %v1363
    %v1369 = vadd.f32 %v1221, %v1363
    %s1370 = sld [smem:[#allocation8 + $0x24]]
    %v1371 = vld [vmem:[#allocation2] sm:$0xe0]
    %v1372 = vld [vmem:[#allocation2 + $0x8] sm:$0xe0]
    %v1373 = vld [vmem:[#allocation2 + $0x20] sm:$0x1f]
    %v1374 = vld [vmem:[#allocation2 + $0x28] sm:$0x1f]
    %v1375 = vstv %s1370
    %v1376 = vmul.f32 %v1375, %v1371
    %v1377 = vmul.f32 %v1375, %v1372
    %v1378 = vmul.f32 %v1375, %v296
    %v1379 = vmul.f32 %v1375, %v297
    %v1380 = vmul.f32 %v1375, %v1373
    %v1381 = vmul.f32 %v1375, %v1374
    %v1388 = vrot.slane %v1376, 5
    %v1389 = vrot.slane %v1378, 5
    %v1390 = vsel %vm1354, %v1388, %v1389
    %v1391 = vrot.slane %v1377, 5
    %v1392 = vrot.slane %v1379, 5
    %v1393 = vsel %vm1354, %v1391, %v1392
    %v1394 = vrot.slane %v1380, 5
    %v1395 = vsel %vm1354, %v1389, %v1394
    %v1396 = vrot.slane %v1381, 5
    %v1397 = vsel %vm1354, %v1392, %v1396
    %1398 = vrot.lane.b32.xlu0 %v1390, 127
    %v1399 = vpop.permute.xlu0 %1398
    %1400 = vrot.lane.b32.xlu0 %v1393, 127
    %v1401 = vpop.permute.xlu0 %1400
    %1402 = vrot.lane.b32.xlu0 %v1395, 127
    %v1403 = vpop.permute.xlu0 %1402
    %1404 = vrot.lane.b32.xlu0 %v1397, 127
    %v1405 = vpop.permute.xlu0 %1404
    %v1406 = vsel %vm331, %v1399, %v1401
    %v1407 = vsel %vm331, %v1403, %v1405
    %v1410 = vadd.f32 %v1258, %v1406
    %v1411 = vadd.f32 %v1259, %v1407
    %s1412 = sld [smem:[#allocation8 + $0x25]]
    %v1413 = vstv %s1412
    %v1414 = vmul.f32 %v1413, %v1371
    %v1415 = vmul.f32 %v1413, %v1372
    %v1416 = vmul.f32 %v1413, %v296
    %v1417 = vmul.f32 %v1413, %v297
    %v1418 = vmul.f32 %v1413, %v1373
    %v1419 = vmul.f32 %v1413, %v1374
    %v1426 = vrot.slane %v1414, 5
    %v1427 = vrot.slane %v1416, 5
    %v1428 = vsel %vm1354, %v1426, %v1427
    %v1429 = vrot.slane %v1415, 5
    %v1430 = vrot.slane %v1417, 5
    %v1431 = vsel %vm1354, %v1429, %v1430
    %v1432 = vrot.slane %v1418, 5
    %v1433 = vsel %vm1354, %v1427, %v1432
    %v1434 = vrot.slane %v1419, 5
    %v1435 = vsel %vm1354, %v1430, %v1434
    %1436 = vrot.lane.b32.xlu0 %v1428, 127
    %v1437 = vpop.permute.xlu0 %1436
    %1438 = vrot.lane.b32.xlu0 %v1431, 127
    %v1439 = vpop.permute.xlu0 %1438
    %1440 = vrot.lane.b32.xlu0 %v1433, 127
    %v1441 = vpop.permute.xlu0 %1440
    %1442 = vrot.lane.b32.xlu0 %v1435, 127
    %v1443 = vpop.permute.xlu0 %1442
    %v1444 = vsel %vm331, %v1437, %v1439
    %v1445 = vsel %vm331, %v1441, %v1443
    %v1450 = vadd.f32 %v1298, %v1444
    %v1451 = vadd.f32 %v1299, %v1439
    %v1452 = vadd.f32 %v1300, %v1445
    %v1453 = vadd.f32 %v1301, %v1443
    %s1454 = sld [smem:[#allocation8 + $0x26]]
    %v1455 = vstv %s1454
    %v1456 = vmul.f32 %v1455, %v1371
    %v1457 = vmul.f32 %v1455, %v1372
    %v1458 = vmul.f32 %v1455, %v296
    %v1459 = vmul.f32 %v1455, %v297
    %v1460 = vmul.f32 %v1455, %v1373
    %v1461 = vmul.f32 %v1455, %v1374
    %v1468 = vrot.slane %v1456, 5
    %v1469 = vrot.slane %v1458, 5
    %v1470 = vsel %vm1354, %v1468, %v1469
    %v1471 = vrot.slane %v1457, 5
    %v1472 = vrot.slane %v1459, 5
    %v1473 = vsel %vm1354, %v1471, %v1472
    %v1474 = vrot.slane %v1460, 5
    %v1475 = vsel %vm1354, %v1469, %v1474
    %v1476 = vrot.slane %v1461, 5
    %v1477 = vsel %vm1354, %v1472, %v1476
    %1478 = vrot.lane.b32.xlu0 %v1470, 127
    %v1479 = vpop.permute.xlu0 %1478
    %1480 = vrot.lane.b32.xlu0 %v1473, 127
    %v1481 = vpop.permute.xlu0 %1480
    %1482 = vrot.lane.b32.xlu0 %v1475, 127
    %v1483 = vpop.permute.xlu0 %1482
    %1484 = vrot.lane.b32.xlu0 %v1477, 127
    %v1485 = vpop.permute.xlu0 %1484
    %v1486 = vsel %vm331, %v1479, %v1481
    %v1487 = vsel %vm331, %v1483, %v1485
    %v1492 = vadd.f32 %v1340, %v1486
    %v1493 = vadd.f32 %v1341, %v1481
    %v1494 = vadd.f32 %v1342, %v1487
    %v1495 = vadd.f32 %v1343, %v1485
    %s1496 = sld [smem:[#allocation8 + $0x27]]
    %v1497 = vstv %s1496
    %v1498 = vmul.f32 %v1497, %v1371
    %v1499 = vmul.f32 %v1497, %v1372
    %v1500 = vmul.f32 %v1497, %v296
    %v1501 = vmul.f32 %v1497, %v297
    %v1502 = vmul.f32 %v1497, %v1373
    %v1503 = vmul.f32 %v1497, %v1374
    %v1510 = vrot.slane %v1498, 5
    %v1511 = vrot.slane %v1500, 5
    %v1512 = vsel %vm1354, %v1510, %v1511
    %v1513 = vrot.slane %v1499, 5
    %v1514 = vrot.slane %v1501, 5
    %v1515 = vsel %vm1354, %v1513, %v1514
    %v1516 = vrot.slane %v1502, 5
    %v1517 = vsel %vm1354, %v1511, %v1516
    %v1518 = vrot.slane %v1503, 5
    %v1519 = vsel %vm1354, %v1514, %v1518
    %1520 = vrot.lane.b32.xlu0 %v1512, 127
    %v1521 = vpop.permute.xlu0 %1520
    %1522 = vrot.lane.b32.xlu0 %v1515, 127
    %v1523 = vpop.permute.xlu0 %1522
    %1524 = vrot.lane.b32.xlu0 %v1517, 127
    %v1525 = vpop.permute.xlu0 %1524
    %1526 = vrot.lane.b32.xlu0 %v1519, 127
    %v1527 = vpop.permute.xlu0 %1526
    %v1528 = vsel %vm331, %v1521, %v1523
    %v1529 = vsel %vm331, %v1525, %v1527
    %v1534 = vadd.f32 %v1366, %v1528
    %v1535 = vadd.f32 %v1367, %v1523
    %v1536 = vadd.f32 %v1368, %v1529
    %v1537 = vadd.f32 %v1369, %v1527
    %s1538 = sld [smem:[#allocation8 + $0x28]]
    %v1539 = vstv %s1538
    %v1540 = vmul.f32 %v1539, %v1371
    %v1541 = vmul.f32 %v1539, %v1372
    %v1542 = vmul.f32 %v1539, %v296
    %v1543 = vmul.f32 %v1539, %v297
    %v1544 = vmul.f32 %v1539, %v1373
    %v1545 = vmul.f32 %v1539, %v1374
    %v1552 = vrot.slane %v1540, 5
    %v1553 = vrot.slane %v1542, 5
    %v1554 = vsel %vm1354, %v1552, %v1553
    %v1555 = vrot.slane %v1541, 5
    %v1556 = vrot.slane %v1543, 5
    %v1557 = vsel %vm1354, %v1555, %v1556
    %v1558 = vrot.slane %v1544, 5
    %v1559 = vsel %vm1354, %v1553, %v1558
    %v1560 = vrot.slane %v1545, 5
    %v1561 = vsel %vm1354, %v1556, %v1560
    %1562 = vrot.lane.b32.xlu0 %v1554, 123
    %v1563 = vpop.permute.xlu0 %1562
    %1564 = vrot.lane.b32.xlu0 %v1557, 123
    %v1565 = vpop.permute.xlu0 %1564
    %1566 = vrot.lane.b32.xlu0 %v1559, 123
    %v1567 = vpop.permute.xlu0 %1566
    %1568 = vrot.lane.b32.xlu0 %v1561, 123
    %v1569 = vpop.permute.xlu0 %1568
    %v1570 = vsel %vm496, %v1563, %v1565
    %v1571 = vsel %vm496, %v1567, %v1569
    %v1574 = vadd.f32 %v1410, %v1570
    %v1575 = vadd.f32 %v1411, %v1571
    %s1576 = sld [smem:[#allocation8 + $0x29]]
    %v1577 = vstv %s1576
    %v1578 = vmul.f32 %v1577, %v1371
    %v1579 = vmul.f32 %v1577, %v1372
    %v1580 = vmul.f32 %v1577, %v296
    %v1581 = vmul.f32 %v1577, %v297
    %v1582 = vmul.f32 %v1577, %v1373
    %v1583 = vmul.f32 %v1577, %v1374
    %v1590 = vrot.slane %v1578, 5
    %v1591 = vrot.slane %v1580, 5
    %v1592 = vsel %vm1354, %v1590, %v1591
    %v1593 = vrot.slane %v1579, 5
    %v1594 = vrot.slane %v1581, 5
    %v1595 = vsel %vm1354, %v1593, %v1594
    %v1596 = vrot.slane %v1582, 5
    %v1597 = vsel %vm1354, %v1591, %v1596
    %v1598 = vrot.slane %v1583, 5
    %v1599 = vsel %vm1354, %v1594, %v1598
    %1600 = vrot.lane.b32.xlu0 %v1592, 123
    %v1601 = vpop.permute.xlu0 %1600
    %1602 = vrot.lane.b32.xlu0 %v1595, 123
    %v1603 = vpop.permute.xlu0 %1602
    %1604 = vrot.lane.b32.xlu0 %v1597, 123
    %v1605 = vpop.permute.xlu0 %1604
    %1606 = vrot.lane.b32.xlu0 %v1599, 123
    %v1607 = vpop.permute.xlu0 %1606
    %v1608 = vsel %vm496, %v1601, %v1603
    %v1609 = vsel %vm496, %v1605, %v1607
    %v1614 = vadd.f32 %v1450, %v1608
    %v1615 = vadd.f32 %v1451, %v1603
    %v1616 = vadd.f32 %v1452, %v1609
    %v1617 = vadd.f32 %v1453, %v1607
    %s1618 = sld [smem:[#allocation8 + $0x2a]]
    %v1619 = vld [vmem:[#allocation2] sm:$0xc0]
    %v1620 = vld [vmem:[#allocation2 + $0x20] sm:$0x3f]
    %v1621 = vstv %s1618
    %v1622 = vmul.f32 %v1621, %v1619
    %v1623 = vmul.f32 %v1621, %v268
    %v1624 = vmul.f32 %v1621, %v1620
    %vm1628 = vcmask 1041408
    %v1629 = vrot.slane %v1622, 6
    %v1630 = vrot.slane %v1623, 6
    %v1631 = vsel %vm1628, %v1629, %v1630
    %v1632 = vrot.slane %v1624, 6
    %v1633 = vsel %vm1628, %v1630, %v1632
    %1634 = vrot.lane.b32.xlu0 %v1631, 2
    %v1635 = vpop.permute.xlu0 %1634
    %1636 = vrot.lane.b32.xlu0 %v1633, 2
    %v1637 = vpop.permute.xlu0 %1636
    %v1640 = vadd.f32 %v1492, %v1635
    %v1641 = vadd.f32 %v1493, %v1635
    %v1642 = vadd.f32 %v1494, %v1637
    %v1643 = vadd.f32 %v1495, %v1637
    %s1644 = sld [smem:[#allocation8 + $0x2b]]
    %v1645 = vld [vmem:[#allocation2] sm:$0xc0]
    %v1646 = vld [vmem:[#allocation2 + $0x8] sm:$0xc0]
    %v1647 = vld [vmem:[#allocation2 + $0x20] sm:$0x3f]
    %v1648 = vld [vmem:[#allocation2 + $0x28] sm:$0x3f]
    %v1649 = vstv %s1644
    %v1650 = vmul.f32 %v1649, %v1645
    %v1651 = vmul.f32 %v1649, %v1646
    %v1652 = vmul.f32 %v1649, %v296
    %v1653 = vmul.f32 %v1649, %v297
    %v1654 = vmul.f32 %v1649, %v1647
    %v1655 = vmul.f32 %v1649, %v1648
    %v1662 = vrot.slane %v1650, 6
    %v1663 = vrot.slane %v1652, 6
    %v1664 = vsel %vm1628, %v1662, %v1663
    %v1665 = vrot.slane %v1651, 6
    %v1666 = vrot.slane %v1653, 6
    %v1667 = vsel %vm1628, %v1665, %v1666
    %v1668 = vrot.slane %v1654, 6
    %v1669 = vsel %vm1628, %v1663, %v1668
    %v1670 = vrot.slane %v1655, 6
    %v1671 = vsel %vm1628, %v1666, %v1670
    %1672 = vrot.lane.b32.xlu0 %v1664, 2
    %v1673 = vpop.permute.xlu0 %1672
    %1674 = vrot.lane.b32.xlu0 %v1667, 2
    %v1675 = vpop.permute.xlu0 %1674
    %1676 = vrot.lane.b32.xlu0 %v1669, 2
    %v1677 = vpop.permute.xlu0 %1676
    %1678 = vrot.lane.b32.xlu0 %v1671, 2
    %v1679 = vpop.permute.xlu0 %1678
    %v1680 = vsel %vm607, %v1673, %v1675
    %v1681 = vsel %vm607, %v1677, %v1679
    %v1686 = vadd.f32 %v1534, %v1673
    %v1687 = vadd.f32 %v1535, %v1680
    %v1688 = vadd.f32 %v1536, %v1677
    %v1689 = vadd.f32 %v1537, %v1681
    %s1690 = sld [smem:[#allocation8 + $0x2c]]
    %v1691 = vstv %s1690
    %v1692 = vmul.f32 %v1691, %v1645
    %v1693 = vmul.f32 %v1691, %v1646
    %v1694 = vmul.f32 %v1691, %v296
    %v1695 = vmul.f32 %v1691, %v297
    %v1696 = vmul.f32 %v1691, %v1647
    %v1697 = vmul.f32 %v1691, %v1648
    %v1704 = vrot.slane %v1692, 6
    %v1705 = vrot.slane %v1694, 6
    %v1706 = vsel %vm1628, %v1704, %v1705
    %v1707 = vrot.slane %v1693, 6
    %v1708 = vrot.slane %v1695, 6
    %v1709 = vsel %vm1628, %v1707, %v1708
    %v1710 = vrot.slane %v1696, 6
    %v1711 = vsel %vm1628, %v1705, %v1710
    %v1712 = vrot.slane %v1697, 6
    %v1713 = vsel %vm1628, %v1708, %v1712
    %1714 = vrot.lane.b32.xlu0 %v1706, 126
    %v1715 = vpop.permute.xlu0 %1714
    %1716 = vrot.lane.b32.xlu0 %v1709, 126
    %v1717 = vpop.permute.xlu0 %1716
    %1718 = vrot.lane.b32.xlu0 %v1711, 126
    %v1719 = vpop.permute.xlu0 %1718
    %1720 = vrot.lane.b32.xlu0 %v1713, 126
    %v1721 = vpop.permute.xlu0 %1720
    %v1722 = vsel %vm650, %v1715, %v1717
    %v1723 = vsel %vm650, %v1719, %v1721
    %v1726 = vadd.f32 %v1574, %v1722
    %v1727 = vadd.f32 %v1575, %v1723
    %s1728 = sld [smem:[#allocation8 + $0x2d]]
    %v1729 = vstv %s1728
    %v1730 = vmul.f32 %v1729, %v1645
    %v1731 = vmul.f32 %v1729, %v1646
    %v1732 = vmul.f32 %v1729, %v296
    %v1733 = vmul.f32 %v1729, %v297
    %v1734 = vmul.f32 %v1729, %v1647
    %v1735 = vmul.f32 %v1729, %v1648
    %v1742 = vrot.slane %v1730, 6
    %v1743 = vrot.slane %v1732, 6
    %v1744 = vsel %vm1628, %v1742, %v1743
    %v1745 = vrot.slane %v1731, 6
    %v1746 = vrot.slane %v1733, 6
    %v1747 = vsel %vm1628, %v1745, %v1746
    %v1748 = vrot.slane %v1734, 6
    %v1749 = vsel %vm1628, %v1743, %v1748
    %v1750 = vrot.slane %v1735, 6
    %v1751 = vsel %vm1628, %v1746, %v1750
    %1752 = vrot.lane.b32.xlu0 %v1744, 126
    %v1753 = vpop.permute.xlu0 %1752
    %1754 = vrot.lane.b32.xlu0 %v1747, 126
    %v1755 = vpop.permute.xlu0 %1754
    %1756 = vrot.lane.b32.xlu0 %v1749, 126
    %v1757 = vpop.permute.xlu0 %1756
    %1758 = vrot.lane.b32.xlu0 %v1751, 126
    %v1759 = vpop.permute.xlu0 %1758
    %v1760 = vsel %vm650, %v1753, %v1755
    %v1761 = vsel %vm650, %v1757, %v1759
    %v1766 = vadd.f32 %v1614, %v1760
    %v1767 = vadd.f32 %v1615, %v1755
    %v1768 = vadd.f32 %v1616, %v1761
    %v1769 = vadd.f32 %v1617, %v1759
    %s1770 = sld [smem:[#allocation8 + $0x2e]]
    %v1771 = vstv %s1770
    %v1772 = vmul.f32 %v1771, %v1645
    %v1773 = vmul.f32 %v1771, %v1646
    %v1774 = vmul.f32 %v1771, %v296
    %v1775 = vmul.f32 %v1771, %v297
    %v1776 = vmul.f32 %v1771, %v1647
    %v1777 = vmul.f32 %v1771, %v1648
    %v1784 = vrot.slane %v1772, 6
    %v1785 = vrot.slane %v1774, 6
    %v1786 = vsel %vm1628, %v1784, %v1785
    %v1787 = vrot.slane %v1773, 6
    %v1788 = vrot.slane %v1775, 6
    %v1789 = vsel %vm1628, %v1787, %v1788
    %v1790 = vrot.slane %v1776, 6
    %v1791 = vsel %vm1628, %v1785, %v1790
    %v1792 = vrot.slane %v1777, 6
    %v1793 = vsel %vm1628, %v1788, %v1792
    %1794 = vrot.lane.b32.xlu0 %v1786, 126
    %v1795 = vpop.permute.xlu0 %1794
    %1796 = vrot.lane.b32.xlu0 %v1789, 126
    %v1797 = vpop.permute.xlu0 %1796
    %1798 = vrot.lane.b32.xlu0 %v1791, 126
    %v1799 = vpop.permute.xlu0 %1798
    %1800 = vrot.lane.b32.xlu0 %v1793, 126
    %v1801 = vpop.permute.xlu0 %1800
    %v1802 = vsel %vm650, %v1795, %v1797
    %v1803 = vsel %vm650, %v1799, %v1801
    %v1808 = vadd.f32 %v1640, %v1802
    %v1809 = vadd.f32 %v1641, %v1797
    %v1810 = vadd.f32 %v1642, %v1803
    %v1811 = vadd.f32 %v1643, %v1801
    %s1812 = sld [smem:[#allocation8 + $0x2f]]
    %v1813 = vstv %s1812
    %v1814 = vmul.f32 %v1813, %v1645
    %v1815 = vmul.f32 %v1813, %v1646
    %v1816 = vmul.f32 %v1813, %v296
    %v1817 = vmul.f32 %v1813, %v297
    %v1818 = vmul.f32 %v1813, %v1647
    %v1819 = vmul.f32 %v1813, %v1648
    %v1826 = vrot.slane %v1814, 6
    %v1827 = vrot.slane %v1816, 6
    %v1828 = vsel %vm1628, %v1826, %v1827
    %v1829 = vrot.slane %v1815, 6
    %v1830 = vrot.slane %v1817, 6
    %v1831 = vsel %vm1628, %v1829, %v1830
    %v1832 = vrot.slane %v1818, 6
    %v1833 = vsel %vm1628, %v1827, %v1832
    %v1834 = vrot.slane %v1819, 6
    %v1835 = vsel %vm1628, %v1830, %v1834
    %1836 = vrot.lane.b32.xlu0 %v1828, 126
    %v1837 = vpop.permute.xlu0 %1836
    %1838 = vrot.lane.b32.xlu0 %v1831, 126
    %v1839 = vpop.permute.xlu0 %1838
    %1840 = vrot.lane.b32.xlu0 %v1833, 126
    %v1841 = vpop.permute.xlu0 %1840
    %1842 = vrot.lane.b32.xlu0 %v1835, 126
    %v1843 = vpop.permute.xlu0 %1842
    %v1844 = vsel %vm650, %v1837, %v1839
    %v1845 = vsel %vm650, %v1841, %v1843
    %v1850 = vadd.f32 %v1686, %v1844
    %v1851 = vadd.f32 %v1687, %v1839
    %v1852 = vadd.f32 %v1688, %v1845
    %v1853 = vadd.f32 %v1689, %v1843
    %s1854 = sld [smem:[#allocation8 + $0x30]]
    %v1855 = vstv %s1854
    %v1856 = vmul.f32 %v1855, %v1645
    %v1857 = vmul.f32 %v1855, %v1646
    %v1858 = vmul.f32 %v1855, %v296
    %v1859 = vmul.f32 %v1855, %v297
    %v1860 = vmul.f32 %v1855, %v1647
    %v1861 = vmul.f32 %v1855, %v1648
    %v1868 = vrot.slane %v1856, 6
    %v1869 = vrot.slane %v1858, 6
    %v1870 = vsel %vm1628, %v1868, %v1869
    %v1871 = vrot.slane %v1857, 6
    %v1872 = vrot.slane %v1859, 6
    %v1873 = vsel %vm1628, %v1871, %v1872
    %v1874 = vrot.slane %v1860, 6
    %v1875 = vsel %vm1628, %v1869, %v1874
    %v1876 = vrot.slane %v1861, 6
    %v1877 = vsel %vm1628, %v1872, %v1876
    %1878 = vrot.lane.b32.xlu0 %v1870, 122
    %v1879 = vpop.permute.xlu0 %1878
    %1880 = vrot.lane.b32.xlu0 %v1873, 122
    %v1881 = vpop.permute.xlu0 %1880
    %1882 = vrot.lane.b32.xlu0 %v1875, 122
    %v1883 = vpop.permute.xlu0 %1882
    %1884 = vrot.lane.b32.xlu0 %v1877, 122
    %v1885 = vpop.permute.xlu0 %1884
    %v1886 = vsel %vm815, %v1879, %v1881
    %v1887 = vsel %vm815, %v1883, %v1885
    %v1890 = vadd.f32 %v1726, %v1886
    %v1891 = vadd.f32 %v1727, %v1887
    %s1892 = sld [smem:[#allocation8 + $0x31]]
    %v1893 = vld [vmem:[%s126] sm:$0xff]
    %v1894 = vld [vmem:[%s126 + $0x10] sm:$0xff]
    %v1895 = vstv %s1892
    %v1896 = vmul.f32 %v1895, %v1893
    %v1897 = vmul.f32 %v1895, %v1894
    %1900 = vrot.lane.b32.xlu0 %v1896, 1
    %v1901 = vpop.permute.xlu0 %1900
    %1902 = vrot.lane.b32.xlu0 %v1897, 1
    %v1903 = vpop.permute.xlu0 %1902
    %v1906 = vadd.f32 %v1766, %v1901
    %v1907 = vadd.f32 %v1767, %v1901
    %v1908 = vadd.f32 %v1768, %v1903
    %v1909 = vadd.f32 %v1769, %v1903
    %s1910 = sld [smem:[#allocation8 + $0x32]]
    %v1911 = vld [vmem:[%s126] sm:$0xff]
    %v1912 = vld [vmem:[%s126 + $0x8] sm:$0xff]
    %v1913 = vld [vmem:[%s126 + $0x10] sm:$0xff]
    %v1914 = vld [vmem:[%s126 + $0x18] sm:$0xff]
    %v1915 = vstv %s1910
    %v1916 = vmul.f32 %v1915, %v1911
    %v1917 = vmul.f32 %v1915, %v1912
    %v1918 = vmul.f32 %v1915, %v1913
    %v1919 = vmul.f32 %v1915, %v1914
    %1924 = vrot.lane.b32.xlu0 %v1916, 1
    %v1925 = vpop.permute.xlu0 %1924
    %1926 = vrot.lane.b32.xlu0 %v1917, 1
    %v1927 = vpop.permute.xlu0 %1926
    %1928 = vrot.lane.b32.xlu0 %v1918, 1
    %v1929 = vpop.permute.xlu0 %1928
    %1930 = vrot.lane.b32.xlu0 %v1919, 1
    %v1931 = vpop.permute.xlu0 %1930
    %v1932 = vsel %vm884, %v1925, %v1927
    %v1933 = vsel %vm884, %v1929, %v1931
    %v1938 = vadd.f32 %v1808, %v1925
    %v1939 = vadd.f32 %v1809, %v1932
    %v1940 = vadd.f32 %v1810, %v1929
    %v1941 = vadd.f32 %v1811, %v1933
    %s1942 = sld [smem:[#allocation8 + $0x33]]
    %v1943 = vstv %s1942
    %v1944 = vmul.f32 %v1943, %v1911
    %v1945 = vmul.f32 %v1943, %v1912
    %v1946 = vmul.f32 %v1943, %v1913
    %v1947 = vmul.f32 %v1943, %v1914
    %1952 = vrot.lane.b32.xlu0 %v1944, 1
    %v1953 = vpop.permute.xlu0 %1952
    %1954 = vrot.lane.b32.xlu0 %v1945, 1
    %v1955 = vpop.permute.xlu0 %1954
    %1956 = vrot.lane.b32.xlu0 %v1946, 1
    %v1957 = vpop.permute.xlu0 %1956
    %1958 = vrot.lane.b32.xlu0 %v1947, 1
    %v1959 = vpop.permute.xlu0 %1958
    %v1960 = vsel %vm884, %v1953, %v1955
    %v1961 = vsel %vm884, %v1957, %v1959
    %v1966 = vadd.f32 %v1850, %v1953
    %v1967 = vadd.f32 %v1851, %v1960
    %v1968 = vadd.f32 %v1852, %v1957
    %v1969 = vadd.f32 %v1853, %v1961
    %s1970 = sld [smem:[#allocation8 + $0x34]]
    %v1971 = vstv %s1970
    %v1972 = vmul.f32 %v1971, %v1911
    %v1973 = vmul.f32 %v1971, %v1912
    %v1974 = vmul.f32 %v1971, %v1913
    %v1975 = vmul.f32 %v1971, %v1914
    %1980 = vrot.lane.b32.xlu0 %v1972, 125
    %v1981 = vpop.permute.xlu0 %1980
    %1982 = vrot.lane.b32.xlu0 %v1973, 125
    %v1983 = vpop.permute.xlu0 %1982
    %1984 = vrot.lane.b32.xlu0 %v1974, 125
    %v1985 = vpop.permute.xlu0 %1984
    %1986 = vrot.lane.b32.xlu0 %v1975, 125
    %v1987 = vpop.permute.xlu0 %1986
    %v1988 = vsel %vm969, %v1981, %v1983
    %v1989 = vsel %vm969, %v1985, %v1987
    %v1992 = vadd.f32 %v1890, %v1988
    %v1993 = vadd.f32 %v1891, %v1989
    %s1994 = sld [smem:[#allocation8 + $0x35]]
    %v1995 = vstv %s1994
    %v1996 = vmul.f32 %v1995, %v1911
    %v1997 = vmul.f32 %v1995, %v1912
    %v1998 = vmul.f32 %v1995, %v1913
    %v1999 = vmul.f32 %v1995, %v1914
    %2004 = vrot.lane.b32.xlu0 %v1996, 125
    %v2005 = vpop.permute.xlu0 %2004
    %2006 = vrot.lane.b32.xlu0 %v1997, 125
    %v2007 = vpop.permute.xlu0 %2006
    %2008 = vrot.lane.b32.xlu0 %v1998, 125
    %v2009 = vpop.permute.xlu0 %2008
    %2010 = vrot.lane.b32.xlu0 %v1999, 125
    %v2011 = vpop.permute.xlu0 %2010
    %v2012 = vsel %vm969, %v2005, %v2007
    %v2013 = vsel %vm969, %v2009, %v2011
    %v2018 = vadd.f32 %v1906, %v2012
    %v2019 = vadd.f32 %v1907, %v2007
    %v2020 = vadd.f32 %v1908, %v2013
    %v2021 = vadd.f32 %v1909, %v2011
    %s2022 = sld [smem:[#allocation8 + $0x36]]
    %v2023 = vstv %s2022
    %v2024 = vmul.f32 %v2023, %v1911
    %v2025 = vmul.f32 %v2023, %v1912
    %v2026 = vmul.f32 %v2023, %v1913
    %v2027 = vmul.f32 %v2023, %v1914
    %2032 = vrot.lane.b32.xlu0 %v2024, 125
    %v2033 = vpop.permute.xlu0 %2032
    %2034 = vrot.lane.b32.xlu0 %v2025, 125
    %v2035 = vpop.permute.xlu0 %2034
    %2036 = vrot.lane.b32.xlu0 %v2026, 125
    %v2037 = vpop.permute.xlu0 %2036
    %2038 = vrot.lane.b32.xlu0 %v2027, 125
    %v2039 = vpop.permute.xlu0 %2038
    %v2040 = vsel %vm969, %v2033, %v2035
    %v2041 = vsel %vm969, %v2037, %v2039
    %v2046 = vadd.f32 %v1938, %v2040
    %v2047 = vadd.f32 %v1939, %v2035
    %v2048 = vadd.f32 %v1940, %v2041
    %v2049 = vadd.f32 %v1941, %v2039
    %s2050 = sld [smem:[#allocation8 + $0x37]]
    %v2051 = vstv %s2050
    %v2052 = vmul.f32 %v2051, %v1911
    %v2053 = vmul.f32 %v2051, %v1912
    %v2054 = vmul.f32 %v2051, %v1913
    %v2055 = vmul.f32 %v2051, %v1914
    %2060 = vrot.lane.b32.xlu0 %v2052, 125
    %v2061 = vpop.permute.xlu0 %2060
    %2062 = vrot.lane.b32.xlu0 %v2053, 125
    %v2063 = vpop.permute.xlu0 %2062
    %2064 = vrot.lane.b32.xlu0 %v2054, 125
    %v2065 = vpop.permute.xlu0 %2064
    %2066 = vrot.lane.b32.xlu0 %v2055, 125
    %v2067 = vpop.permute.xlu0 %2066
    %v2068 = vsel %vm969, %v2061, %v2063
    %v2069 = vsel %vm969, %v2065, %v2067
    %v2074 = vadd.f32 %v1966, %v2068
    %v2075 = vadd.f32 %v1967, %v2063
    %v2076 = vadd.f32 %v1968, %v2069
    %v2077 = vadd.f32 %v1969, %v2067
    %s2078 = sld [smem:[#allocation8 + $0x38]]
    %v2079 = vld [vmem:[%s126] sm:$0xfe]
    %v2080 = vld [vmem:[%s126 + $0x10] sm:$0xff]
    %v2081 = vld [vmem:[%s126 + $0x20] sm:$0x1]
    %v2082 = vstv %s2078
    %v2083 = vmul.f32 %v2082, %v2079
    %v2084 = vmul.f32 %v2082, %v2080
    %v2085 = vmul.f32 %v2082, %v2081
    %v2089 = vrot.slane %v2083, 1
    %v2090 = vrot.slane %v2084, 1
    %v2091 = vsel %vm277, %v2089, %v2090
    %v2092 = vrot.slane %v2085, 1
    %v2093 = vsel %vm277, %v2090, %v2092
    %v2096 = vadd.f32 %v1992, %v2091
    %v2097 = vadd.f32 %v1993, %v2093
    %s2098 = sld [smem:[#allocation8 + $0x39]]
    %v2099 = vld [vmem:[%s126] sm:$0xfe]
    %v2100 = vld [vmem:[%s126 + $0x8] sm:$0xfe]
    %v2101 = vld [vmem:[%s126 + $0x10] sm:$0xff]
    %v2102 = vld [vmem:[%s126 + $0x18] sm:$0xff]
    %v2103 = vld [vmem:[%s126 + $0x20] sm:$0x1]
    %v2104 = vld [vmem:[%s126 + $0x28] sm:$0x1]
    %v2105 = vstv %s2098
    %v2106 = vmul.f32 %v2105, %v2099
    %v2107 = vmul.f32 %v2105, %v2100
    %v2108 = vmul.f32 %v2105, %v2101
    %v2109 = vmul.f32 %v2105, %v2102
    %v2110 = vmul.f32 %v2105, %v2103
    %v2111 = vmul.f32 %v2105, %v2104
    %v2118 = vrot.slane %v2106, 1
    %v2119 = vrot.slane %v2108, 1
    %v2120 = vsel %vm277, %v2118, %v2119
    %v2121 = vrot.slane %v2107, 1
    %v2122 = vrot.slane %v2109, 1
    %v2123 = vsel %vm277, %v2121, %v2122
    %v2124 = vrot.slane %v2110, 1
    %v2125 = vsel %vm277, %v2119, %v2124
    %v2126 = vrot.slane %v2111, 1
    %v2127 = vsel %vm277, %v2122, %v2126
    %v2132 = vadd.f32 %v2018, %v2120
    %v2133 = vadd.f32 %v2019, %v2123
    %v2134 = vadd.f32 %v2020, %v2125
    %v2135 = vadd.f32 %v2021, %v2127
    %s2136 = sld [smem:[#allocation8 + $0x3a]]
    %v2137 = vstv %s2136
    %v2138 = vmul.f32 %v2137, %v2099
    %v2139 = vmul.f32 %v2137, %v2100
    %v2140 = vmul.f32 %v2137, %v2101
    %v2141 = vmul.f32 %v2137, %v2102
    %v2142 = vmul.f32 %v2137, %v2103
    %v2143 = vmul.f32 %v2137, %v2104
    %v2150 = vrot.slane %v2138, 1
    %v2151 = vrot.slane %v2140, 1
    %v2152 = vsel %vm277, %v2150, %v2151
    %v2153 = vrot.slane %v2139, 1
    %v2154 = vrot.slane %v2141, 1
    %v2155 = vsel %vm277, %v2153, %v2154
    %v2156 = vrot.slane %v2142, 1
    %v2157 = vsel %vm277, %v2151, %v2156
    %v2158 = vrot.slane %v2143, 1
    %v2159 = vsel %vm277, %v2154, %v2158
    %v2164 = vadd.f32 %v2046, %v2152
    %v2165 = vadd.f32 %v2047, %v2155
    %v2166 = vadd.f32 %v2048, %v2157
    %v2167 = vadd.f32 %v2049, %v2159
    %s2168 = sld [smem:[#allocation8 + $0x3b]]
    %v2169 = vstv %s2168
    %v2170 = vmul.f32 %v2169, %v2099
    %v2171 = vmul.f32 %v2169, %v2100
    %v2172 = vmul.f32 %v2169, %v2101
    %v2173 = vmul.f32 %v2169, %v2102
    %v2174 = vmul.f32 %v2169, %v2103
    %v2175 = vmul.f32 %v2169, %v2104
    %v2182 = vrot.slane %v2170, 1
    %v2183 = vrot.slane %v2172, 1
    %v2184 = vsel %vm277, %v2182, %v2183
    %v2185 = vrot.slane %v2171, 1
    %v2186 = vrot.slane %v2173, 1
    %v2187 = vsel %vm277, %v2185, %v2186
    %v2188 = vrot.slane %v2174, 1
    %v2189 = vsel %vm277, %v2183, %v2188
    %v2190 = vrot.slane %v2175, 1
    %v2191 = vsel %vm277, %v2186, %v2190
    %v2196 = vadd.f32 %v2074, %v2184
    %v2197 = vadd.f32 %v2075, %v2187
    %v2198 = vadd.f32 %v2076, %v2189
    %v2199 = vadd.f32 %v2077, %v2191
    %s2200 = sld [smem:[#allocation8 + $0x3c]]
    %v2201 = vstv %s2200
    %v2202 = vmul.f32 %v2201, %v2099
    %v2203 = vmul.f32 %v2201, %v2100
    %v2204 = vmul.f32 %v2201, %v2101
    %v2205 = vmul.f32 %v2201, %v2102
    %v2206 = vmul.f32 %v2201, %v2103
    %v2207 = vmul.f32 %v2201, %v2104
    %v2214 = vrot.slane %v2202, 1
    %v2215 = vrot.slane %v2204, 1
    %v2216 = vsel %vm277, %v2214, %v2215
    %v2217 = vrot.slane %v2203, 1
    %v2218 = vrot.slane %v2205, 1
    %v2219 = vsel %vm277, %v2217, %v2218
    %v2220 = vrot.slane %v2206, 1
    %v2221 = vsel %vm277, %v2215, %v2220
    %v2222 = vrot.slane %v2207, 1
    %v2223 = vsel %vm277, %v2218, %v2222
    %2224 = vrot.lane.b32.xlu0 %v2216, 124
    %v2225 = vpop.permute.xlu0 %2224
    %2226 = vrot.lane.b32.xlu0 %v2219, 124
    %v2227 = vpop.permute.xlu0 %2226
    %2228 = vrot.lane.b32.xlu0 %v2221, 124
    %v2229 = vpop.permute.xlu0 %2228
    %2230 = vrot.lane.b32.xlu0 %v2223, 124
    %v2231 = vpop.permute.xlu0 %2230
    %v2232 = vsel %vm203, %v2225, %v2227
    %v2233 = vsel %vm203, %v2229, %v2231
    %v2236 = vadd.f32 %v2096, %v2232
    %v2237 = vadd.f32 %v2097, %v2233
    %s2238 = sld [smem:[#allocation8 + $0x3d]]
    %v2239 = vstv %s2238
    %v2240 = vmul.f32 %v2239, %v2099
    %v2241 = vmul.f32 %v2239, %v2100
    %v2242 = vmul.f32 %v2239, %v2101
    %v2243 = vmul.f32 %v2239, %v2102
    %v2244 = vmul.f32 %v2239, %v2103
    %v2245 = vmul.f32 %v2239, %v2104
    %v2252 = vrot.slane %v2240, 1
    %v2253 = vrot.slane %v2242, 1
    %v2254 = vsel %vm277, %v2252, %v2253
    %v2255 = vrot.slane %v2241, 1
    %v2256 = vrot.slane %v2243, 1
    %v2257 = vsel %vm277, %v2255, %v2256
    %v2258 = vrot.slane %v2244, 1
    %v2259 = vsel %vm277, %v2253, %v2258
    %v2260 = vrot.slane %v2245, 1
    %v2261 = vsel %vm277, %v2256, %v2260
    %2262 = vrot.lane.b32.xlu0 %v2254, 124
    %v2263 = vpop.permute.xlu0 %2262
    %2264 = vrot.lane.b32.xlu0 %v2257, 124
    %v2265 = vpop.permute.xlu0 %2264
    %2266 = vrot.lane.b32.xlu0 %v2259, 124
    %v2267 = vpop.permute.xlu0 %2266
    %2268 = vrot.lane.b32.xlu0 %v2261, 124
    %v2269 = vpop.permute.xlu0 %2268
    %v2270 = vsel %vm203, %v2263, %v2265
    %v2271 = vsel %vm203, %v2267, %v2269
    %v2276 = vadd.f32 %v2132, %v2270
    %v2277 = vadd.f32 %v2133, %v2265
    %v2278 = vadd.f32 %v2134, %v2271
    %v2279 = vadd.f32 %v2135, %v2269
    %s2280 = sld [smem:[#allocation8 + $0x3e]]
    %v2281 = vstv %s2280
    %v2282 = vmul.f32 %v2281, %v2099
    %v2283 = vmul.f32 %v2281, %v2100
    %v2284 = vmul.f32 %v2281, %v2101
    %v2285 = vmul.f32 %v2281, %v2102
    %v2286 = vmul.f32 %v2281, %v2103
    %v2287 = vmul.f32 %v2281, %v2104
    %v2294 = vrot.slane %v2282, 1
    %v2295 = vrot.slane %v2284, 1
    %v2296 = vsel %vm277, %v2294, %v2295
    %v2297 = vrot.slane %v2283, 1
    %v2298 = vrot.slane %v2285, 1
    %v2299 = vsel %vm277, %v2297, %v2298
    %v2300 = vrot.slane %v2286, 1
    %v2301 = vsel %vm277, %v2295, %v2300
    %v2302 = vrot.slane %v2287, 1
    %v2303 = vsel %vm277, %v2298, %v2302
    %2304 = vrot.lane.b32.xlu0 %v2296, 124
    %v2305 = vpop.permute.xlu0 %2304
    %2306 = vrot.lane.b32.xlu0 %v2299, 124
    %v2307 = vpop.permute.xlu0 %2306
    %2308 = vrot.lane.b32.xlu0 %v2301, 124
    %v2309 = vpop.permute.xlu0 %2308
    %2310 = vrot.lane.b32.xlu0 %v2303, 124
    %v2311 = vpop.permute.xlu0 %2310
    %v2312 = vsel %vm203, %v2305, %v2307
    %v2313 = vsel %vm203, %v2309, %v2311
    %v2318 = vadd.f32 %v2164, %v2312
    %v2319 = vadd.f32 %v2165, %v2307
    %v2320 = vadd.f32 %v2166, %v2313
    %v2321 = vadd.f32 %v2167, %v2311
    %s2322 = sld [smem:[#allocation8 + $0x3f]]
    %v2323 = vld [vmem:[%s126] sm:$0xfc]
    %v2324 = vld [vmem:[%s126 + $0x20] sm:$0x3]
    %v2325 = vstv %s2322
    %v2326 = vmul.f32 %v2325, %v2323
    %v2327 = vmul.f32 %v2325, %v2080
    %v2328 = vmul.f32 %v2325, %v2324
    %v2332 = vrot.slane %v2326, 2
    %v2333 = vrot.slane %v2327, 2
    %v2334 = vsel %vm555, %v2332, %v2333
    %v2335 = vrot.slane %v2328, 2
    %v2336 = vsel %vm555, %v2333, %v2335
    %2337 = vrot.lane.b32.xlu0 %v2334, 3
    %v2338 = vpop.permute.xlu0 %2337
    %2339 = vrot.lane.b32.xlu0 %v2336, 3
    %v2340 = vpop.permute.xlu0 %2339
    %v2343 = vadd.f32 %v2196, %v2338
    %v2344 = vadd.f32 %v2197, %v2338
    %v2345 = vadd.f32 %v2198, %v2340
    %v2346 = vadd.f32 %v2199, %v2340
    %s2347 = sld [smem:[#allocation8 + $0x40]]
    %v2348 = vld [vmem:[%s126] sm:$0xfc]
    %v2349 = vld [vmem:[%s126 + $0x8] sm:$0xfc]
    %v2350 = vld [vmem:[%s126 + $0x20] sm:$0x3]
    %v2351 = vld [vmem:[%s126 + $0x28] sm:$0x3]
    %v2352 = vstv %s2347
    %v2353 = vmul.f32 %v2352, %v2348
    %v2354 = vmul.f32 %v2352, %v2349
    %v2355 = vmul.f32 %v2352, %v2101
    %v2356 = vmul.f32 %v2352, %v2102
    %v2357 = vmul.f32 %v2352, %v2350
    %v2358 = vmul.f32 %v2352, %v2351
    %v2365 = vrot.slane %v2353, 2
    %v2366 = vrot.slane %v2355, 2
    %v2367 = vsel %vm555, %v2365, %v2366
    %v2368 = vrot.slane %v2354, 2
    %v2369 = vrot.slane %v2356, 2
    %v2370 = vsel %vm555, %v2368, %v2369
    %v2371 = vrot.slane %v2357, 2
    %v2372 = vsel %vm555, %v2366, %v2371
    %v2373 = vrot.slane %v2358, 2
    %v2374 = vsel %vm555, %v2369, %v2373
    %2375 = vrot.lane.b32.xlu0 %v2367, 127
    %v2376 = vpop.permute.xlu0 %2375
    %2377 = vrot.lane.b32.xlu0 %v2370, 127
    %v2378 = vpop.permute.xlu0 %2377
    %2379 = vrot.lane.b32.xlu0 %v2372, 127
    %v2380 = vpop.permute.xlu0 %2379
    %2381 = vrot.lane.b32.xlu0 %v2374, 127
    %v2382 = vpop.permute.xlu0 %2381
    %v2383 = vsel %vm331, %v2376, %v2378
    %v2384 = vsel %vm331, %v2380, %v2382
    %v2387 = vadd.f32 %v2236, %v2383
    %v2388 = vadd.f32 %v2237, %v2384
    %s2389 = sld [smem:[#allocation8 + $0x41]]
    %v2390 = vstv %s2389
    %v2391 = vmul.f32 %v2390, %v2348
    %v2392 = vmul.f32 %v2390, %v2349
    %v2393 = vmul.f32 %v2390, %v2101
    %v2394 = vmul.f32 %v2390, %v2102
    %v2395 = vmul.f32 %v2390, %v2350
    %v2396 = vmul.f32 %v2390, %v2351
    %v2403 = vrot.slane %v2391, 2
    %v2404 = vrot.slane %v2393, 2
    %v2405 = vsel %vm555, %v2403, %v2404
    %v2406 = vrot.slane %v2392, 2
    %v2407 = vrot.slane %v2394, 2
    %v2408 = vsel %vm555, %v2406, %v2407
    %v2409 = vrot.slane %v2395, 2
    %v2410 = vsel %vm555, %v2404, %v2409
    %v2411 = vrot.slane %v2396, 2
    %v2412 = vsel %vm555, %v2407, %v2411
    %2413 = vrot.lane.b32.xlu0 %v2405, 127
    %v2414 = vpop.permute.xlu0 %2413
    %2415 = vrot.lane.b32.xlu0 %v2408, 127
    %v2416 = vpop.permute.xlu0 %2415
    %2417 = vrot.lane.b32.xlu0 %v2410, 127
    %v2418 = vpop.permute.xlu0 %2417
    %2419 = vrot.lane.b32.xlu0 %v2412, 127
    %v2420 = vpop.permute.xlu0 %2419
    %v2421 = vsel %vm331, %v2414, %v2416
    %v2422 = vsel %vm331, %v2418, %v2420
    %v2427 = vadd.f32 %v2276, %v2421
    %v2428 = vadd.f32 %v2277, %v2416
    %v2429 = vadd.f32 %v2278, %v2422
    %v2430 = vadd.f32 %v2279, %v2420
    %s2431 = sld [smem:[#allocation8 + $0x42]]
    %v2432 = vstv %s2431
    %v2433 = vmul.f32 %v2432, %v2348
    %v2434 = vmul.f32 %v2432, %v2349
    %v2435 = vmul.f32 %v2432, %v2101
    %v2436 = vmul.f32 %v2432, %v2102
    %v2437 = vmul.f32 %v2432, %v2350
    %v2438 = vmul.f32 %v2432, %v2351
    %v2445 = vrot.slane %v2433, 2
    %v2446 = vrot.slane %v2435, 2
    %v2447 = vsel %vm555, %v2445, %v2446
    %v2448 = vrot.slane %v2434, 2
    %v2449 = vrot.slane %v2436, 2
    %v2450 = vsel %vm555, %v2448, %v2449
    %v2451 = vrot.slane %v2437, 2
    %v2452 = vsel %vm555, %v2446, %v2451
    %v2453 = vrot.slane %v2438, 2
    %v2454 = vsel %vm555, %v2449, %v2453
    %2455 = vrot.lane.b32.xlu0 %v2447, 127
    %v2456 = vpop.permute.xlu0 %2455
    %2457 = vrot.lane.b32.xlu0 %v2450, 127
    %v2458 = vpop.permute.xlu0 %2457
    %2459 = vrot.lane.b32.xlu0 %v2452, 127
    %v2460 = vpop.permute.xlu0 %2459
    %2461 = vrot.lane.b32.xlu0 %v2454, 127
    %v2462 = vpop.permute.xlu0 %2461
    %v2463 = vsel %vm331, %v2456, %v2458
    %v2464 = vsel %vm331, %v2460, %v2462
    %v2469 = vadd.f32 %v2318, %v2463
    %v2470 = vadd.f32 %v2319, %v2458
    %v2471 = vadd.f32 %v2320, %v2464
    %v2472 = vadd.f32 %v2321, %v2462
    %s2473 = sld [smem:[#allocation8 + $0x43]]
    %v2474 = vstv %s2473
    %v2475 = vmul.f32 %v2474, %v2348
    %v2476 = vmul.f32 %v2474, %v2349
    %v2477 = vmul.f32 %v2474, %v2101
    %v2478 = vmul.f32 %v2474, %v2102
    %v2479 = vmul.f32 %v2474, %v2350
    %v2480 = vmul.f32 %v2474, %v2351
    %v2487 = vrot.slane %v2475, 2
    %v2488 = vrot.slane %v2477, 2
    %v2489 = vsel %vm555, %v2487, %v2488
    %v2490 = vrot.slane %v2476, 2
    %v2491 = vrot.slane %v2478, 2
    %v2492 = vsel %vm555, %v2490, %v2491
    %v2493 = vrot.slane %v2479, 2
    %v2494 = vsel %vm555, %v2488, %v2493
    %v2495 = vrot.slane %v2480, 2
    %v2496 = vsel %vm555, %v2491, %v2495
    %2497 = vrot.lane.b32.xlu0 %v2489, 127
    %v2498 = vpop.permute.xlu0 %2497
    %2499 = vrot.lane.b32.xlu0 %v2492, 127
    %v2500 = vpop.permute.xlu0 %2499
    %2501 = vrot.lane.b32.xlu0 %v2494, 127
    %v2502 = vpop.permute.xlu0 %2501
    %2503 = vrot.lane.b32.xlu0 %v2496, 127
    %v2504 = vpop.permute.xlu0 %2503
    %v2505 = vsel %vm331, %v2498, %v2500
    %v2506 = vsel %vm331, %v2502, %v2504
    %v2511 = vadd.f32 %v2343, %v2505
    %v2512 = vadd.f32 %v2344, %v2500
    %v2513 = vadd.f32 %v2345, %v2506
    %v2514 = vadd.f32 %v2346, %v2504
    %s2515 = sld [smem:[#allocation8 + $0x44]]
    %v2516 = vstv %s2515
    %v2517 = vmul.f32 %v2516, %v2348
    %v2518 = vmul.f32 %v2516, %v2349
    %v2519 = vmul.f32 %v2516, %v2101
    %v2520 = vmul.f32 %v2516, %v2102
    %v2521 = vmul.f32 %v2516, %v2350
    %v2522 = vmul.f32 %v2516, %v2351
    %v2529 = vrot.slane %v2517, 2
    %v2530 = vrot.slane %v2519, 2
    %v2531 = vsel %vm555, %v2529, %v2530
    %v2532 = vrot.slane %v2518, 2
    %v2533 = vrot.slane %v2520, 2
    %v2534 = vsel %vm555, %v2532, %v2533
    %v2535 = vrot.slane %v2521, 2
    %v2536 = vsel %vm555, %v2530, %v2535
    %v2537 = vrot.slane %v2522, 2
    %v2538 = vsel %vm555, %v2533, %v2537
    %2539 = vrot.lane.b32.xlu0 %v2531, 123
    %v2540 = vpop.permute.xlu0 %2539
    %2541 = vrot.lane.b32.xlu0 %v2534, 123
    %v2542 = vpop.permute.xlu0 %2541
    %2543 = vrot.lane.b32.xlu0 %v2536, 123
    %v2544 = vpop.permute.xlu0 %2543
    %2545 = vrot.lane.b32.xlu0 %v2538, 123
    %v2546 = vpop.permute.xlu0 %2545
    %v2547 = vsel %vm496, %v2540, %v2542
    %v2548 = vsel %vm496, %v2544, %v2546
    %v2551 = vadd.f32 %v2387, %v2547
    %v2552 = vadd.f32 %v2388, %v2548
    %s2553 = sld [smem:[#allocation8 + $0x45]]
    %v2554 = vstv %s2553
    %v2555 = vmul.f32 %v2554, %v2348
    %v2556 = vmul.f32 %v2554, %v2349
    %v2557 = vmul.f32 %v2554, %v2101
    %v2558 = vmul.f32 %v2554, %v2102
    %v2559 = vmul.f32 %v2554, %v2350
    %v2560 = vmul.f32 %v2554, %v2351
    %v2567 = vrot.slane %v2555, 2
    %v2568 = vrot.slane %v2557, 2
    %v2569 = vsel %vm555, %v2567, %v2568
    %v2570 = vrot.slane %v2556, 2
    %v2571 = vrot.slane %v2558, 2
    %v2572 = vsel %vm555, %v2570, %v2571
    %v2573 = vrot.slane %v2559, 2
    %v2574 = vsel %vm555, %v2568, %v2573
    %v2575 = vrot.slane %v2560, 2
    %v2576 = vsel %vm555, %v2571, %v2575
    %2577 = vrot.lane.b32.xlu0 %v2569, 123
    %v2578 = vpop.permute.xlu0 %2577
    %2579 = vrot.lane.b32.xlu0 %v2572, 123
    %v2580 = vpop.permute.xlu0 %2579
    %2581 = vrot.lane.b32.xlu0 %v2574, 123
    %v2582 = vpop.permute.xlu0 %2581
    %2583 = vrot.lane.b32.xlu0 %v2576, 123
    %v2584 = vpop.permute.xlu0 %2583
    %v2585 = vsel %vm496, %v2578, %v2580
    %v2586 = vsel %vm496, %v2582, %v2584
    %v2591 = vadd.f32 %v2427, %v2585
    %v2592 = vadd.f32 %v2428, %v2580
    %v2593 = vadd.f32 %v2429, %v2586
    %v2594 = vadd.f32 %v2430, %v2584
    %s2595 = sld [smem:[#allocation8 + $0x46]]
    %v2596 = vld [vmem:[%s126] sm:$0xf8]
    %v2597 = vld [vmem:[%s126 + $0x20] sm:$0x7]
    %v2598 = vstv %s2595
    %v2599 = vmul.f32 %v2598, %v2596
    %v2600 = vmul.f32 %v2598, %v2080
    %v2601 = vmul.f32 %v2598, %v2597
    %v2605 = vrot.slane %v2599, 3
    %v2606 = vrot.slane %v2600, 3
    %v2607 = vsel %vm832, %v2605, %v2606
    %v2608 = vrot.slane %v2601, 3
    %v2609 = vsel %vm832, %v2606, %v2608
    %2610 = vrot.lane.b32.xlu0 %v2607, 2
    %v2611 = vpop.permute.xlu0 %2610
    %2612 = vrot.lane.b32.xlu0 %v2609, 2
    %v2613 = vpop.permute.xlu0 %2612
    %v2616 = vadd.f32 %v2469, %v2611
    %v2617 = vadd.f32 %v2470, %v2611
    %v2618 = vadd.f32 %v2471, %v2613
    %v2619 = vadd.f32 %v2472, %v2613
    %s2620 = sld [smem:[#allocation8 + $0x47]]
    %v2621 = vld [vmem:[%s126] sm:$0xf8]
    %v2622 = vld [vmem:[%s126 + $0x8] sm:$0xf8]
    %v2623 = vld [vmem:[%s126 + $0x20] sm:$0x7]
    %v2624 = vld [vmem:[%s126 + $0x28] sm:$0x7]
    %v2625 = vstv %s2620
    %v2626 = vmul.f32 %v2625, %v2621
    %v2627 = vmul.f32 %v2625, %v2622
    %v2628 = vmul.f32 %v2625, %v2101
    %v2629 = vmul.f32 %v2625, %v2102
    %v2630 = vmul.f32 %v2625, %v2623
    %v2631 = vmul.f32 %v2625, %v2624
    %v2638 = vrot.slane %v2626, 3
    %v2639 = vrot.slane %v2628, 3
    %v2640 = vsel %vm832, %v2638, %v2639
    %v2641 = vrot.slane %v2627, 3
    %v2642 = vrot.slane %v2629, 3
    %v2643 = vsel %vm832, %v2641, %v2642
    %v2644 = vrot.slane %v2630, 3
    %v2645 = vsel %vm832, %v2639, %v2644
    %v2646 = vrot.slane %v2631, 3
    %v2647 = vsel %vm832, %v2642, %v2646
    %2648 = vrot.lane.b32.xlu0 %v2640, 2
    %v2649 = vpop.permute.xlu0 %2648
    %2650 = vrot.lane.b32.xlu0 %v2643, 2
    %v2651 = vpop.permute.xlu0 %2650
    %2652 = vrot.lane.b32.xlu0 %v2645, 2
    %v2653 = vpop.permute.xlu0 %2652
    %2654 = vrot.lane.b32.xlu0 %v2647, 2
    %v2655 = vpop.permute.xlu0 %2654
    %v2656 = vsel %vm607, %v2649, %v2651
    %v2657 = vsel %vm607, %v2653, %v2655
    %v2662 = vadd.f32 %v2511, %v2649
    %v2663 = vadd.f32 %v2512, %v2656
    %v2664 = vadd.f32 %v2513, %v2653
    %v2665 = vadd.f32 %v2514, %v2657
    %s2666 = sld [smem:[#allocation8 + $0x48]]
    %v2667 = vstv %s2666
    %v2668 = vmul.f32 %v2667, %v2621
    %v2669 = vmul.f32 %v2667, %v2622
    %v2670 = vmul.f32 %v2667, %v2101
    %v2671 = vmul.f32 %v2667, %v2102
    %v2672 = vmul.f32 %v2667, %v2623
    %v2673 = vmul.f32 %v2667, %v2624
    %v2680 = vrot.slane %v2668, 3
    %v2681 = vrot.slane %v2670, 3
    %v2682 = vsel %vm832, %v2680, %v2681
    %v2683 = vrot.slane %v2669, 3
    %v2684 = vrot.slane %v2671, 3
    %v2685 = vsel %vm832, %v2683, %v2684
    %v2686 = vrot.slane %v2672, 3
    %v2687 = vsel %vm832, %v2681, %v2686
    %v2688 = vrot.slane %v2673, 3
    %v2689 = vsel %vm832, %v2684, %v2688
    %2690 = vrot.lane.b32.xlu0 %v2682, 126
    %v2691 = vpop.permute.xlu0 %2690
    %2692 = vrot.lane.b32.xlu0 %v2685, 126
    %v2693 = vpop.permute.xlu0 %2692
    %2694 = vrot.lane.b32.xlu0 %v2687, 126
    %v2695 = vpop.permute.xlu0 %2694
    %2696 = vrot.lane.b32.xlu0 %v2689, 126
    %v2697 = vpop.permute.xlu0 %2696
    %v2698 = vsel %vm650, %v2691, %v2693
    %v2699 = vsel %vm650, %v2695, %v2697
    %v2702 = vadd.f32 %v2551, %v2698
    %v2703 = vadd.f32 %v2552, %v2699
    %s2704 = sld [smem:[#allocation8 + $0x49]]
    %v2705 = vstv %s2704
    %v2706 = vmul.f32 %v2705, %v2621
    %v2707 = vmul.f32 %v2705, %v2622
    %v2708 = vmul.f32 %v2705, %v2101
    %v2709 = vmul.f32 %v2705, %v2102
    %v2710 = vmul.f32 %v2705, %v2623
    %v2711 = vmul.f32 %v2705, %v2624
    %v2718 = vrot.slane %v2706, 3
    %v2719 = vrot.slane %v2708, 3
    %v2720 = vsel %vm832, %v2718, %v2719
    %v2721 = vrot.slane %v2707, 3
    %v2722 = vrot.slane %v2709, 3
    %v2723 = vsel %vm832, %v2721, %v2722
    %v2724 = vrot.slane %v2710, 3
    %v2725 = vsel %vm832, %v2719, %v2724
    %v2726 = vrot.slane %v2711, 3
    %v2727 = vsel %vm832, %v2722, %v2726
    %2728 = vrot.lane.b32.xlu0 %v2720, 126
    %v2729 = vpop.permute.xlu0 %2728
    %2730 = vrot.lane.b32.xlu0 %v2723, 126
    %v2731 = vpop.permute.xlu0 %2730
    %2732 = vrot.lane.b32.xlu0 %v2725, 126
    %v2733 = vpop.permute.xlu0 %2732
    %2734 = vrot.lane.b32.xlu0 %v2727, 126
    %v2735 = vpop.permute.xlu0 %2734
    %v2736 = vsel %vm650, %v2729, %v2731
    %v2737 = vsel %vm650, %v2733, %v2735
    %v2742 = vadd.f32 %v2591, %v2736
    %v2743 = vadd.f32 %v2592, %v2731
    %v2744 = vadd.f32 %v2593, %v2737
    %v2745 = vadd.f32 %v2594, %v2735
    %s2746 = sld [smem:[#allocation8 + $0x4a]]
    %v2747 = vstv %s2746
    %v2748 = vmul.f32 %v2747, %v2621
    %v2749 = vmul.f32 %v2747, %v2622
    %v2750 = vmul.f32 %v2747, %v2101
    %v2751 = vmul.f32 %v2747, %v2102
    %v2752 = vmul.f32 %v2747, %v2623
    %v2753 = vmul.f32 %v2747, %v2624
    %v2760 = vrot.slane %v2748, 3
    %v2761 = vrot.slane %v2750, 3
    %v2762 = vsel %vm832, %v2760, %v2761
    %v2763 = vrot.slane %v2749, 3
    %v2764 = vrot.slane %v2751, 3
    %v2765 = vsel %vm832, %v2763, %v2764
    %v2766 = vrot.slane %v2752, 3
    %v2767 = vsel %vm832, %v2761, %v2766
    %v2768 = vrot.slane %v2753, 3
    %v2769 = vsel %vm832, %v2764, %v2768
    %2770 = vrot.lane.b32.xlu0 %v2762, 126
    %v2771 = vpop.permute.xlu0 %2770
    %2772 = vrot.lane.b32.xlu0 %v2765, 126
    %v2773 = vpop.permute.xlu0 %2772
    %2774 = vrot.lane.b32.xlu0 %v2767, 126
    %v2775 = vpop.permute.xlu0 %2774
    %2776 = vrot.lane.b32.xlu0 %v2769, 126
    %v2777 = vpop.permute.xlu0 %2776
    %v2778 = vsel %vm650, %v2771, %v2773
    %v2779 = vsel %vm650, %v2775, %v2777
    %v2784 = vadd.f32 %v2616, %v2778
    %v2785 = vadd.f32 %v2617, %v2773
    %v2786 = vadd.f32 %v2618, %v2779
    %v2787 = vadd.f32 %v2619, %v2777
    %s2788 = sld [smem:[#allocation8 + $0x4b]]
    %v2789 = vstv %s2788
    %v2790 = vmul.f32 %v2789, %v2621
    %v2791 = vmul.f32 %v2789, %v2622
    %v2792 = vmul.f32 %v2789, %v2101
    %v2793 = vmul.f32 %v2789, %v2102
    %v2794 = vmul.f32 %v2789, %v2623
    %v2795 = vmul.f32 %v2789, %v2624
    %v2802 = vrot.slane %v2790, 3
    %v2803 = vrot.slane %v2792, 3
    %v2804 = vsel %vm832, %v2802, %v2803
    %v2805 = vrot.slane %v2791, 3
    %v2806 = vrot.slane %v2793, 3
    %v2807 = vsel %vm832, %v2805, %v2806
    %v2808 = vrot.slane %v2794, 3
    %v2809 = vsel %vm832, %v2803, %v2808
    %v2810 = vrot.slane %v2795, 3
    %v2811 = vsel %vm832, %v2806, %v2810
    %2812 = vrot.lane.b32.xlu0 %v2804, 126
    %v2813 = vpop.permute.xlu0 %2812
    %2814 = vrot.lane.b32.xlu0 %v2807, 126
    %v2815 = vpop.permute.xlu0 %2814
    %2816 = vrot.lane.b32.xlu0 %v2809, 126
    %v2817 = vpop.permute.xlu0 %2816
    %2818 = vrot.lane.b32.xlu0 %v2811, 126
    %v2819 = vpop.permute.xlu0 %2818
    %v2820 = vsel %vm650, %v2813, %v2815
    %v2821 = vsel %vm650, %v2817, %v2819
    %v2826 = vadd.f32 %v2662, %v2820
    %v2827 = vadd.f32 %v2663, %v2815
    %v2828 = vadd.f32 %v2664, %v2821
    %v2829 = vadd.f32 %v2665, %v2819
    %s2830 = sld [smem:[#allocation8 + $0x4c]]
    %v2831 = vstv %s2830
    %v2832 = vmul.f32 %v2831, %v2621
    %v2833 = vmul.f32 %v2831, %v2622
    %v2834 = vmul.f32 %v2831, %v2101
    %v2835 = vmul.f32 %v2831, %v2102
    %v2836 = vmul.f32 %v2831, %v2623
    %v2837 = vmul.f32 %v2831, %v2624
    %v2844 = vrot.slane %v2832, 3
    %v2845 = vrot.slane %v2834, 3
    %v2846 = vsel %vm832, %v2844, %v2845
    %v2847 = vrot.slane %v2833, 3
    %v2848 = vrot.slane %v2835, 3
    %v2849 = vsel %vm832, %v2847, %v2848
    %v2850 = vrot.slane %v2836, 3
    %v2851 = vsel %vm832, %v2845, %v2850
    %v2852 = vrot.slane %v2837, 3
    %v2853 = vsel %vm832, %v2848, %v2852
    %2854 = vrot.lane.b32.xlu0 %v2846, 122
    %v2855 = vpop.permute.xlu0 %2854
    %2856 = vrot.lane.b32.xlu0 %v2849, 122
    %v2857 = vpop.permute.xlu0 %2856
    %2858 = vrot.lane.b32.xlu0 %v2851, 122
    %v2859 = vpop.permute.xlu0 %2858
    %2860 = vrot.lane.b32.xlu0 %v2853, 122
    %v2861 = vpop.permute.xlu0 %2860
    %v2862 = vsel %vm815, %v2855, %v2857
    %v2863 = vsel %vm815, %v2859, %v2861
    %v2866 = vadd.f32 %v2702, %v2862
    %v2867 = vadd.f32 %v2703, %v2863
    %s2868 = sld [smem:[#allocation8 + $0x4d]]
    %v2869 = vld [vmem:[%s126] sm:$0xf0]
    %v2870 = vld [vmem:[%s126 + $0x20] sm:$0xf]
    %v2871 = vstv %s2868
    %v2872 = vmul.f32 %v2871, %v2869
    %v2873 = vmul.f32 %v2871, %v2080
    %v2874 = vmul.f32 %v2871, %v2870
    %v2878 = vrot.slane %v2872, 4
    %v2879 = vrot.slane %v2873, 4
    %v2880 = vsel %vm1112, %v2878, %v2879
    %v2881 = vrot.slane %v2874, 4
    %v2882 = vsel %vm1112, %v2879, %v2881
    %2883 = vrot.lane.b32.xlu0 %v2880, 1
    %v2884 = vpop.permute.xlu0 %2883
    %2885 = vrot.lane.b32.xlu0 %v2882, 1
    %v2886 = vpop.permute.xlu0 %2885
    %v2889 = vadd.f32 %v2742, %v2884
    %v2890 = vadd.f32 %v2743, %v2884
    %v2891 = vadd.f32 %v2744, %v2886
    %v2892 = vadd.f32 %v2745, %v2886
    %s2893 = sld [smem:[#allocation8 + $0x4e]]
    %v2894 = vld [vmem:[%s126] sm:$0xf0]
    %v2895 = vld [vmem:[%s126 + $0x8] sm:$0xf0]
    %v2896 = vld [vmem:[%s126 + $0x20] sm:$0xf]
    %v2897 = vld [vmem:[%s126 + $0x28] sm:$0xf]
    %v2898 = vstv %s2893
    %v2899 = vmul.f32 %v2898, %v2894
    %v2900 = vmul.f32 %v2898, %v2895
    %v2901 = vmul.f32 %v2898, %v2101
    %v2902 = vmul.f32 %v2898, %v2102
    %v2903 = vmul.f32 %v2898, %v2896
    %v2904 = vmul.f32 %v2898, %v2897
    %v2911 = vrot.slane %v2899, 4
    %v2912 = vrot.slane %v2901, 4
    %v2913 = vsel %vm1112, %v2911, %v2912
    %v2914 = vrot.slane %v2900, 4
    %v2915 = vrot.slane %v2902, 4
    %v2916 = vsel %vm1112, %v2914, %v2915
    %v2917 = vrot.slane %v2903, 4
    %v2918 = vsel %vm1112, %v2912, %v2917
    %v2919 = vrot.slane %v2904, 4
    %v2920 = vsel %vm1112, %v2915, %v2919
    %2921 = vrot.lane.b32.xlu0 %v2913, 1
    %v2922 = vpop.permute.xlu0 %2921
    %2923 = vrot.lane.b32.xlu0 %v2916, 1
    %v2924 = vpop.permute.xlu0 %2923
    %2925 = vrot.lane.b32.xlu0 %v2918, 1
    %v2926 = vpop.permute.xlu0 %2925
    %2927 = vrot.lane.b32.xlu0 %v2920, 1
    %v2928 = vpop.permute.xlu0 %2927
    %v2929 = vsel %vm884, %v2922, %v2924
    %v2930 = vsel %vm884, %v2926, %v2928
    %v2935 = vadd.f32 %v2784, %v2922
    %v2936 = vadd.f32 %v2785, %v2929
    %v2937 = vadd.f32 %v2786, %v2926
    %v2938 = vadd.f32 %v2787, %v2930
    %s2939 = sld [smem:[#allocation8 + $0x4f]]
    %v2940 = vstv %s2939
    %v2941 = vmul.f32 %v2940, %v2894
    %v2942 = vmul.f32 %v2940, %v2895
    %v2943 = vmul.f32 %v2940, %v2101
    %v2944 = vmul.f32 %v2940, %v2102
    %v2945 = vmul.f32 %v2940, %v2896
    %v2946 = vmul.f32 %v2940, %v2897
    %v2953 = vrot.slane %v2941, 4
    %v2954 = vrot.slane %v2943, 4
    %v2955 = vsel %vm1112, %v2953, %v2954
    %v2956 = vrot.slane %v2942, 4
    %v2957 = vrot.slane %v2944, 4
    %v2958 = vsel %vm1112, %v2956, %v2957
    %v2959 = vrot.slane %v2945, 4
    %v2960 = vsel %vm1112, %v2954, %v2959
    %v2961 = vrot.slane %v2946, 4
    %v2962 = vsel %vm1112, %v2957, %v2961
    %2963 = vrot.lane.b32.xlu0 %v2955, 1
    %v2964 = vpop.permute.xlu0 %2963
    %2965 = vrot.lane.b32.xlu0 %v2958, 1
    %v2966 = vpop.permute.xlu0 %2965
    %2967 = vrot.lane.b32.xlu0 %v2960, 1
    %v2968 = vpop.permute.xlu0 %2967
    %2969 = vrot.lane.b32.xlu0 %v2962, 1
    %v2970 = vpop.permute.xlu0 %2969
    %v2971 = vsel %vm884, %v2964, %v2966
    %v2972 = vsel %vm884, %v2968, %v2970
    %v2977 = vadd.f32 %v2826, %v2964
    %v2978 = vadd.f32 %v2827, %v2971
    %v2979 = vadd.f32 %v2828, %v2968
    %v2980 = vadd.f32 %v2829, %v2972
    %s2981 = sld [smem:[#allocation8 + $0x50]]
    %v2982 = vstv %s2981
    %v2983 = vmul.f32 %v2982, %v2894
    %v2984 = vmul.f32 %v2982, %v2895
    %v2985 = vmul.f32 %v2982, %v2101
    %v2986 = vmul.f32 %v2982, %v2102
    %v2987 = vmul.f32 %v2982, %v2896
    %v2988 = vmul.f32 %v2982, %v2897
    %v2995 = vrot.slane %v2983, 4
    %v2996 = vrot.slane %v2985, 4
    %v2997 = vsel %vm1112, %v2995, %v2996
    %v2998 = vrot.slane %v2984, 4
    %v2999 = vrot.slane %v2986, 4
    %v3000 = vsel %vm1112, %v2998, %v2999
    %v3001 = vrot.slane %v2987, 4
    %v3002 = vsel %vm1112, %v2996, %v3001
    %v3003 = vrot.slane %v2988, 4
    %v3004 = vsel %vm1112, %v2999, %v3003
    %3005 = vrot.lane.b32.xlu0 %v2997, 125
    %v3006 = vpop.permute.xlu0 %3005
    %3007 = vrot.lane.b32.xlu0 %v3000, 125
    %v3008 = vpop.permute.xlu0 %3007
    %3009 = vrot.lane.b32.xlu0 %v3002, 125
    %v3010 = vpop.permute.xlu0 %3009
    %3011 = vrot.lane.b32.xlu0 %v3004, 125
    %v3012 = vpop.permute.xlu0 %3011
    %v3013 = vsel %vm969, %v3006, %v3008
    %v3014 = vsel %vm969, %v3010, %v3012
    %v3017 = vadd.f32 %v2866, %v3013
    %v3018 = vadd.f32 %v2867, %v3014
    %s3019 = sld [smem:[#allocation8 + $0x51]]
    %v3020 = vstv %s3019
    %v3021 = vmul.f32 %v3020, %v2894
    %v3022 = vmul.f32 %v3020, %v2895
    %v3023 = vmul.f32 %v3020, %v2101
    %v3024 = vmul.f32 %v3020, %v2102
    %v3025 = vmul.f32 %v3020, %v2896
    %v3026 = vmul.f32 %v3020, %v2897
    %v3033 = vrot.slane %v3021, 4
    %v3034 = vrot.slane %v3023, 4
    %v3035 = vsel %vm1112, %v3033, %v3034
    %v3036 = vrot.slane %v3022, 4
    %v3037 = vrot.slane %v3024, 4
    %v3038 = vsel %vm1112, %v3036, %v3037
    %v3039 = vrot.slane %v3025, 4
    %v3040 = vsel %vm1112, %v3034, %v3039
    %v3041 = vrot.slane %v3026, 4
    %v3042 = vsel %vm1112, %v3037, %v3041
    %3043 = vrot.lane.b32.xlu0 %v3035, 125
    %v3044 = vpop.permute.xlu0 %3043
    %3045 = vrot.lane.b32.xlu0 %v3038, 125
    %v3046 = vpop.permute.xlu0 %3045
    %3047 = vrot.lane.b32.xlu0 %v3040, 125
    %v3048 = vpop.permute.xlu0 %3047
    %3049 = vrot.lane.b32.xlu0 %v3042, 125
    %v3050 = vpop.permute.xlu0 %3049
    %v3051 = vsel %vm969, %v3044, %v3046
    %v3052 = vsel %vm969, %v3048, %v3050
    %v3057 = vadd.f32 %v2889, %v3051
    %v3058 = vadd.f32 %v2890, %v3046
    %v3059 = vadd.f32 %v2891, %v3052
    %v3060 = vadd.f32 %v2892, %v3050
    %s3061 = sld [smem:[#allocation8 + $0x52]]
    %v3062 = vstv %s3061
    %v3063 = vmul.f32 %v3062, %v2894
    %v3064 = vmul.f32 %v3062, %v2895
    %v3065 = vmul.f32 %v3062, %v2101
    %v3066 = vmul.f32 %v3062, %v2102
    %v3067 = vmul.f32 %v3062, %v2896
    %v3068 = vmul.f32 %v3062, %v2897
    %v3075 = vrot.slane %v3063, 4
    %v3076 = vrot.slane %v3065, 4
    %v3077 = vsel %vm1112, %v3075, %v3076
    %v3078 = vrot.slane %v3064, 4
    %v3079 = vrot.slane %v3066, 4
    %v3080 = vsel %vm1112, %v3078, %v3079
    %v3081 = vrot.slane %v3067, 4
    %v3082 = vsel %vm1112, %v3076, %v3081
    %v3083 = vrot.slane %v3068, 4
    %v3084 = vsel %vm1112, %v3079, %v3083
    %3085 = vrot.lane.b32.xlu0 %v3077, 125
    %v3086 = vpop.permute.xlu0 %3085
    %3087 = vrot.lane.b32.xlu0 %v3080, 125
    %v3088 = vpop.permute.xlu0 %3087
    %3089 = vrot.lane.b32.xlu0 %v3082, 125
    %v3090 = vpop.permute.xlu0 %3089
    %3091 = vrot.lane.b32.xlu0 %v3084, 125
    %v3092 = vpop.permute.xlu0 %3091
    %v3093 = vsel %vm969, %v3086, %v3088
    %v3094 = vsel %vm969, %v3090, %v3092
    %v3099 = vadd.f32 %v2935, %v3093
    %v3100 = vadd.f32 %v2936, %v3088
    %v3101 = vadd.f32 %v2937, %v3094
    %v3102 = vadd.f32 %v2938, %v3092
    %s3103 = sld [smem:[#allocation8 + $0x53]]
    %v3104 = vstv %s3103
    %v3105 = vmul.f32 %v3104, %v2894
    %v3106 = vmul.f32 %v3104, %v2895
    %v3107 = vmul.f32 %v3104, %v2101
    %v3108 = vmul.f32 %v3104, %v2102
    %v3109 = vmul.f32 %v3104, %v2896
    %v3110 = vmul.f32 %v3104, %v2897
    %v3117 = vrot.slane %v3105, 4
    %v3118 = vrot.slane %v3107, 4
    %v3119 = vsel %vm1112, %v3117, %v3118
    %v3120 = vrot.slane %v3106, 4
    %v3121 = vrot.slane %v3108, 4
    %v3122 = vsel %vm1112, %v3120, %v3121
    %v3123 = vrot.slane %v3109, 4
    %v3124 = vsel %vm1112, %v3118, %v3123
    %v3125 = vrot.slane %v3110, 4
    %v3126 = vsel %vm1112, %v3121, %v3125
    %3127 = vrot.lane.b32.xlu0 %v3119, 125
    %v3128 = vpop.permute.xlu0 %3127
    %3129 = vrot.lane.b32.xlu0 %v3122, 125
    %v3130 = vpop.permute.xlu0 %3129
    %3131 = vrot.lane.b32.xlu0 %v3124, 125
    %v3132 = vpop.permute.xlu0 %3131
    %3133 = vrot.lane.b32.xlu0 %v3126, 125
    %v3134 = vpop.permute.xlu0 %3133
    %v3135 = vsel %vm969, %v3128, %v3130
    %v3136 = vsel %vm969, %v3132, %v3134
    %v3141 = vadd.f32 %v2977, %v3135
    %v3142 = vadd.f32 %v2978, %v3130
    %v3143 = vadd.f32 %v2979, %v3136
    %v3144 = vadd.f32 %v2980, %v3134
    %s3145 = sld [smem:[#allocation8 + $0x54]]
    %v3146 = vld [vmem:[%s126] sm:$0xe0]
    %v3147 = vld [vmem:[%s126 + $0x20] sm:$0x1f]
    %v3148 = vstv %s3145
    %v3149 = vmul.f32 %v3148, %v3146
    %v3150 = vmul.f32 %v3148, %v2080
    %v3151 = vmul.f32 %v3148, %v3147
    %v3155 = vrot.slane %v3149, 5
    %v3156 = vrot.slane %v3150, 5
    %v3157 = vsel %vm1354, %v3155, %v3156
    %v3158 = vrot.slane %v3151, 5
    %v3159 = vsel %vm1354, %v3156, %v3158
    %v3162 = vadd.f32 %v3017, %v3157
    %v3163 = vadd.f32 %v3018, %v3159
    %s3164 = sld [smem:[#allocation8 + $0x55]]
    %v3165 = vld [vmem:[%s126] sm:$0xe0]
    %v3166 = vld [vmem:[%s126 + $0x8] sm:$0xe0]
    %v3167 = vld [vmem:[%s126 + $0x20] sm:$0x1f]
    %v3168 = vld [vmem:[%s126 + $0x28] sm:$0x1f]
    %v3169 = vstv %s3164
    %v3170 = vmul.f32 %v3169, %v3165
    %v3171 = vmul.f32 %v3169, %v3166
    %v3172 = vmul.f32 %v3169, %v2101
    %v3173 = vmul.f32 %v3169, %v2102
    %v3174 = vmul.f32 %v3169, %v3167
    %v3175 = vmul.f32 %v3169, %v3168
    %v3182 = vrot.slane %v3170, 5
    %v3183 = vrot.slane %v3172, 5
    %v3184 = vsel %vm1354, %v3182, %v3183
    %v3185 = vrot.slane %v3171, 5
    %v3186 = vrot.slane %v3173, 5
    %v3187 = vsel %vm1354, %v3185, %v3186
    %v3188 = vrot.slane %v3174, 5
    %v3189 = vsel %vm1354, %v3183, %v3188
    %v3190 = vrot.slane %v3175, 5
    %v3191 = vsel %vm1354, %v3186, %v3190
    %v3196 = vadd.f32 %v3057, %v3184
    %v3197 = vadd.f32 %v3058, %v3187
    %v3198 = vadd.f32 %v3059, %v3189
    %v3199 = vadd.f32 %v3060, %v3191
    %s3200 = sld [smem:[#allocation8 + $0x56]]
    %v3201 = vstv %s3200
    %v3202 = vmul.f32 %v3201, %v3165
    %v3203 = vmul.f32 %v3201, %v3166
    %v3204 = vmul.f32 %v3201, %v2101
    %v3205 = vmul.f32 %v3201, %v2102
    %v3206 = vmul.f32 %v3201, %v3167
    %v3207 = vmul.f32 %v3201, %v3168
    %v3214 = vrot.slane %v3202, 5
    %v3215 = vrot.slane %v3204, 5
    %v3216 = vsel %vm1354, %v3214, %v3215
    %v3217 = vrot.slane %v3203, 5
    %v3218 = vrot.slane %v3205, 5
    %v3219 = vsel %vm1354, %v3217, %v3218
    %v3220 = vrot.slane %v3206, 5
    %v3221 = vsel %vm1354, %v3215, %v3220
    %v3222 = vrot.slane %v3207, 5
    %v3223 = vsel %vm1354, %v3218, %v3222
    %v3228 = vadd.f32 %v3099, %v3216
    %v3229 = vadd.f32 %v3100, %v3219
    %v3230 = vadd.f32 %v3101, %v3221
    %v3231 = vadd.f32 %v3102, %v3223
    %s3232 = sld [smem:[#allocation8 + $0x57]]
    %v3233 = vstv %s3232
    %v3234 = vmul.f32 %v3233, %v3165
    %v3235 = vmul.f32 %v3233, %v3166
    %v3236 = vmul.f32 %v3233, %v2101
    %v3237 = vmul.f32 %v3233, %v2102
    %v3238 = vmul.f32 %v3233, %v3167
    %v3239 = vmul.f32 %v3233, %v3168
    %v3246 = vrot.slane %v3234, 5
    %v3247 = vrot.slane %v3236, 5
    %v3248 = vsel %vm1354, %v3246, %v3247
    %v3249 = vrot.slane %v3235, 5
    %v3250 = vrot.slane %v3237, 5
    %v3251 = vsel %vm1354, %v3249, %v3250
    %v3252 = vrot.slane %v3238, 5
    %v3253 = vsel %vm1354, %v3247, %v3252
    %v3254 = vrot.slane %v3239, 5
    %v3255 = vsel %vm1354, %v3250, %v3254
    %v3260 = vadd.f32 %v3141, %v3248
    %v3261 = vadd.f32 %v3142, %v3251
    %v3262 = vadd.f32 %v3143, %v3253
    %v3263 = vadd.f32 %v3144, %v3255
    %s3264 = sld [smem:[#allocation8 + $0x58]]
    %v3265 = vstv %s3264
    %v3266 = vmul.f32 %v3265, %v3165
    %v3267 = vmul.f32 %v3265, %v3166
    %v3268 = vmul.f32 %v3265, %v2101
    %v3269 = vmul.f32 %v3265, %v2102
    %v3270 = vmul.f32 %v3265, %v3167
    %v3271 = vmul.f32 %v3265, %v3168
    %v3278 = vrot.slane %v3266, 5
    %v3279 = vrot.slane %v3268, 5
    %v3280 = vsel %vm1354, %v3278, %v3279
    %v3281 = vrot.slane %v3267, 5
    %v3282 = vrot.slane %v3269, 5
    %v3283 = vsel %vm1354, %v3281, %v3282
    %v3284 = vrot.slane %v3270, 5
    %v3285 = vsel %vm1354, %v3279, %v3284
    %v3286 = vrot.slane %v3271, 5
    %v3287 = vsel %vm1354, %v3282, %v3286
    %3288 = vrot.lane.b32.xlu0 %v3280, 124
    %v3289 = vpop.permute.xlu0 %3288
    %3290 = vrot.lane.b32.xlu0 %v3283, 124
    %v3291 = vpop.permute.xlu0 %3290
    %3292 = vrot.lane.b32.xlu0 %v3285, 124
    %v3293 = vpop.permute.xlu0 %3292
    %3294 = vrot.lane.b32.xlu0 %v3287, 124
    %v3295 = vpop.permute.xlu0 %3294
    %v3296 = vsel %vm203, %v3289, %v3291
    %v3297 = vsel %vm203, %v3293, %v3295
    %v3300 = vadd.f32 %v3162, %v3296
    %v3301 = vadd.f32 %v3163, %v3297
    %s3302 = sld [smem:[#allocation8 + $0x59]]
    %v3303 = vstv %s3302
    %v3304 = vmul.f32 %v3303, %v3165
    %v3305 = vmul.f32 %v3303, %v3166
    %v3306 = vmul.f32 %v3303, %v2101
    %v3307 = vmul.f32 %v3303, %v2102
    %v3308 = vmul.f32 %v3303, %v3167
    %v3309 = vmul.f32 %v3303, %v3168
    %v3316 = vrot.slane %v3304, 5
    %v3317 = vrot.slane %v3306, 5
    %v3318 = vsel %vm1354, %v3316, %v3317
    %v3319 = vrot.slane %v3305, 5
    %v3320 = vrot.slane %v3307, 5
    %v3321 = vsel %vm1354, %v3319, %v3320
    %v3322 = vrot.slane %v3308, 5
    %v3323 = vsel %vm1354, %v3317, %v3322
    %v3324 = vrot.slane %v3309, 5
    %v3325 = vsel %vm1354, %v3320, %v3324
    %3326 = vrot.lane.b32.xlu0 %v3318, 124
    %v3327 = vpop.permute.xlu0 %3326
    %3328 = vrot.lane.b32.xlu0 %v3321, 124
    %v3329 = vpop.permute.xlu0 %3328
    %3330 = vrot.lane.b32.xlu0 %v3323, 124
    %v3331 = vpop.permute.xlu0 %3330
    %3332 = vrot.lane.b32.xlu0 %v3325, 124
    %v3333 = vpop.permute.xlu0 %3332
    %v3334 = vsel %vm203, %v3327, %v3329
    %v3335 = vsel %vm203, %v3331, %v3333
    %v3340 = vadd.f32 %v3196, %v3334
    %v3341 = vadd.f32 %v3197, %v3329
    %v3342 = vadd.f32 %v3198, %v3335
    %v3343 = vadd.f32 %v3199, %v3333
    %s3344 = sld [smem:[#allocation8 + $0x5a]]
    %v3345 = vstv %s3344
    %v3346 = vmul.f32 %v3345, %v3165
    %v3347 = vmul.f32 %v3345, %v3166
    %v3348 = vmul.f32 %v3345, %v2101
    %v3349 = vmul.f32 %v3345, %v2102
    %v3350 = vmul.f32 %v3345, %v3167
    %v3351 = vmul.f32 %v3345, %v3168
    %v3358 = vrot.slane %v3346, 5
    %v3359 = vrot.slane %v3348, 5
    %v3360 = vsel %vm1354, %v3358, %v3359
    %v3361 = vrot.slane %v3347, 5
    %v3362 = vrot.slane %v3349, 5
    %v3363 = vsel %vm1354, %v3361, %v3362
    %v3364 = vrot.slane %v3350, 5
    %v3365 = vsel %vm1354, %v3359, %v3364
    %v3366 = vrot.slane %v3351, 5
    %v3367 = vsel %vm1354, %v3362, %v3366
    %3368 = vrot.lane.b32.xlu0 %v3360, 124
    %v3369 = vpop.permute.xlu0 %3368
    %3370 = vrot.lane.b32.xlu0 %v3363, 124
    %v3371 = vpop.permute.xlu0 %3370
    %3372 = vrot.lane.b32.xlu0 %v3365, 124
    %v3373 = vpop.permute.xlu0 %3372
    %3374 = vrot.lane.b32.xlu0 %v3367, 124
    %v3375 = vpop.permute.xlu0 %3374
    %v3376 = vsel %vm203, %v3369, %v3371
    %v3377 = vsel %vm203, %v3373, %v3375
    %v3382 = vadd.f32 %v3228, %v3376
    %v3383 = vadd.f32 %v3229, %v3371
    %v3384 = vadd.f32 %v3230, %v3377
    %v3385 = vadd.f32 %v3231, %v3375
    %s3386 = sld [smem:[#allocation8 + $0x5b]]
    %v3387 = vld [vmem:[%s126] sm:$0xc0]
    %v3388 = vld [vmem:[%s126 + $0x20] sm:$0x3f]
    %v3389 = vstv %s3386
    %v3390 = vmul.f32 %v3389, %v3387
    %v3391 = vmul.f32 %v3389, %v2080
    %v3392 = vmul.f32 %v3389, %v3388
    %v3396 = vrot.slane %v3390, 6
    %v3397 = vrot.slane %v3391, 6
    %v3398 = vsel %vm1628, %v3396, %v3397
    %v3399 = vrot.slane %v3392, 6
    %v3400 = vsel %vm1628, %v3397, %v3399
    %3401 = vrot.lane.b32.xlu0 %v3398, 3
    %v3402 = vpop.permute.xlu0 %3401
    %3403 = vrot.lane.b32.xlu0 %v3400, 3
    %v3404 = vpop.permute.xlu0 %3403
    %v3407 = vadd.f32 %v3260, %v3402
    %v3408 = vadd.f32 %v3261, %v3402
    %v3409 = vadd.f32 %v3262, %v3404
    %v3410 = vadd.f32 %v3263, %v3404
    %s3411 = sld [smem:[#allocation8 + $0x5c]]
    %v3412 = vld [vmem:[%s126] sm:$0xc0]
    %v3413 = vld [vmem:[%s126 + $0x8] sm:$0xc0]
    %v3414 = vld [vmem:[%s126 + $0x20] sm:$0x3f]
    %v3415 = vld [vmem:[%s126 + $0x28] sm:$0x3f]
    %v3416 = vstv %s3411
    %v3417 = vmul.f32 %v3416, %v3412
    %v3418 = vmul.f32 %v3416, %v3413
    %v3419 = vmul.f32 %v3416, %v2101
    %v3420 = vmul.f32 %v3416, %v2102
    %v3421 = vmul.f32 %v3416, %v3414
    %v3422 = vmul.f32 %v3416, %v3415
    %v3429 = vrot.slane %v3417, 6
    %v3430 = vrot.slane %v3419, 6
    %v3431 = vsel %vm1628, %v3429, %v3430
    %v3432 = vrot.slane %v3418, 6
    %v3433 = vrot.slane %v3420, 6
    %v3434 = vsel %vm1628, %v3432, %v3433
    %v3435 = vrot.slane %v3421, 6
    %v3436 = vsel %vm1628, %v3430, %v3435
    %v3437 = vrot.slane %v3422, 6
    %v3438 = vsel %vm1628, %v3433, %v3437
    %3439 = vrot.lane.b32.xlu0 %v3431, 127
    %v3440 = vpop.permute.xlu0 %3439
    %3441 = vrot.lane.b32.xlu0 %v3434, 127
    %v3442 = vpop.permute.xlu0 %3441
    %3443 = vrot.lane.b32.xlu0 %v3436, 127
    %v3444 = vpop.permute.xlu0 %3443
    %3445 = vrot.lane.b32.xlu0 %v3438, 127
    %v3446 = vpop.permute.xlu0 %3445
    %v3447 = vsel %vm331, %v3440, %v3442
    %v3448 = vsel %vm331, %v3444, %v3446
    %v3451 = vadd.f32 %v3300, %v3447
    %v3452 = vadd.f32 %v3301, %v3448
    %s3453 = sld [smem:[#allocation8 + $0x5d]]
    %v3454 = vstv %s3453
    %v3455 = vmul.f32 %v3454, %v3412
    %v3456 = vmul.f32 %v3454, %v3413
    %v3457 = vmul.f32 %v3454, %v2101
    %v3458 = vmul.f32 %v3454, %v2102
    %v3459 = vmul.f32 %v3454, %v3414
    %v3460 = vmul.f32 %v3454, %v3415
    %v3467 = vrot.slane %v3455, 6
    %v3468 = vrot.slane %v3457, 6
    %v3469 = vsel %vm1628, %v3467, %v3468
    %v3470 = vrot.slane %v3456, 6
    %v3471 = vrot.slane %v3458, 6
    %v3472 = vsel %vm1628, %v3470, %v3471
    %v3473 = vrot.slane %v3459, 6
    %v3474 = vsel %vm1628, %v3468, %v3473
    %v3475 = vrot.slane %v3460, 6
    %v3476 = vsel %vm1628, %v3471, %v3475
    %3477 = vrot.lane.b32.xlu0 %v3469, 127
    %v3478 = vpop.permute.xlu0 %3477
    %3479 = vrot.lane.b32.xlu0 %v3472, 127
    %v3480 = vpop.permute.xlu0 %3479
    %3481 = vrot.lane.b32.xlu0 %v3474, 127
    %v3482 = vpop.permute.xlu0 %3481
    %3483 = vrot.lane.b32.xlu0 %v3476, 127
    %v3484 = vpop.permute.xlu0 %3483
    %v3485 = vsel %vm331, %v3478, %v3480
    %v3486 = vsel %vm331, %v3482, %v3484
    %v3491 = vadd.f32 %v3340, %v3485
    %v3492 = vadd.f32 %v3341, %v3480
    %v3493 = vadd.f32 %v3342, %v3486
    %v3494 = vadd.f32 %v3343, %v3484
    %s3495 = sld [smem:[#allocation8 + $0x5e]]
    %v3496 = vstv %s3495
    %v3497 = vmul.f32 %v3496, %v3412
    %v3498 = vmul.f32 %v3496, %v3413
    %v3499 = vmul.f32 %v3496, %v2101
    %v3500 = vmul.f32 %v3496, %v2102
    %v3501 = vmul.f32 %v3496, %v3414
    %v3502 = vmul.f32 %v3496, %v3415
    %v3509 = vrot.slane %v3497, 6
    %v3510 = vrot.slane %v3499, 6
    %v3511 = vsel %vm1628, %v3509, %v3510
    %v3512 = vrot.slane %v3498, 6
    %v3513 = vrot.slane %v3500, 6
    %v3514 = vsel %vm1628, %v3512, %v3513
    %v3515 = vrot.slane %v3501, 6
    %v3516 = vsel %vm1628, %v3510, %v3515
    %v3517 = vrot.slane %v3502, 6
    %v3518 = vsel %vm1628, %v3513, %v3517
    %3519 = vrot.lane.b32.xlu0 %v3511, 127
    %v3520 = vpop.permute.xlu0 %3519
    %3521 = vrot.lane.b32.xlu0 %v3514, 127
    %v3522 = vpop.permute.xlu0 %3521
    %3523 = vrot.lane.b32.xlu0 %v3516, 127
    %v3524 = vpop.permute.xlu0 %3523
    %3525 = vrot.lane.b32.xlu0 %v3518, 127
    %v3526 = vpop.permute.xlu0 %3525
    %v3527 = vsel %vm331, %v3520, %v3522
    %v3528 = vsel %vm331, %v3524, %v3526
    %v3533 = vadd.f32 %v3382, %v3527
    %v3534 = vadd.f32 %v3383, %v3522
    %v3535 = vadd.f32 %v3384, %v3528
    %v3536 = vadd.f32 %v3385, %v3526
    %s3537 = sld [smem:[#allocation8 + $0x5f]]
    %v3538 = vstv %s3537
    %v3539 = vmul.f32 %v3538, %v3412
    %v3540 = vmul.f32 %v3538, %v3413
    %v3541 = vmul.f32 %v3538, %v2101
    %v3542 = vmul.f32 %v3538, %v2102
    %v3543 = vmul.f32 %v3538, %v3414
    %v3544 = vmul.f32 %v3538, %v3415
    %v3551 = vrot.slane %v3539, 6
    %v3552 = vrot.slane %v3541, 6
    %v3553 = vsel %vm1628, %v3551, %v3552
    %v3554 = vrot.slane %v3540, 6
    %v3555 = vrot.slane %v3542, 6
    %v3556 = vsel %vm1628, %v3554, %v3555
    %v3557 = vrot.slane %v3543, 6
    %v3558 = vsel %vm1628, %v3552, %v3557
    %v3559 = vrot.slane %v3544, 6
    %v3560 = vsel %vm1628, %v3555, %v3559
    %3561 = vrot.lane.b32.xlu0 %v3553, 127
    %v3562 = vpop.permute.xlu0 %3561
    %3563 = vrot.lane.b32.xlu0 %v3556, 127
    %v3564 = vpop.permute.xlu0 %3563
    %3565 = vrot.lane.b32.xlu0 %v3558, 127
    %v3566 = vpop.permute.xlu0 %3565
    %3567 = vrot.lane.b32.xlu0 %v3560, 127
    %v3568 = vpop.permute.xlu0 %3567
    %v3569 = vsel %vm331, %v3562, %v3564
    %v3570 = vsel %vm331, %v3566, %v3568
    %v3575 = vadd.f32 %v3407, %v3569
    %v3576 = vadd.f32 %v3408, %v3564
    %v3577 = vadd.f32 %v3409, %v3570
    %v3578 = vadd.f32 %v3410, %v3568
    %s3579 = sld [smem:[#allocation8 + $0x60]]
    %v3580 = vstv %s3579
    %v3581 = vmul.f32 %v3580, %v3412
    %v3582 = vmul.f32 %v3580, %v3413
    %v3583 = vmul.f32 %v3580, %v2101
    %v3584 = vmul.f32 %v3580, %v2102
    %v3585 = vmul.f32 %v3580, %v3414
    %v3586 = vmul.f32 %v3580, %v3415
    %v3593 = vrot.slane %v3581, 6
    %v3594 = vrot.slane %v3583, 6
    %v3595 = vsel %vm1628, %v3593, %v3594
    %v3596 = vrot.slane %v3582, 6
    %v3597 = vrot.slane %v3584, 6
    %v3598 = vsel %vm1628, %v3596, %v3597
    %v3599 = vrot.slane %v3585, 6
    %v3600 = vsel %vm1628, %v3594, %v3599
    %v3601 = vrot.slane %v3586, 6
    %v3602 = vsel %vm1628, %v3597, %v3601
    %3603 = vrot.lane.b32.xlu0 %v3595, 123
    %v3604 = vpop.permute.xlu0 %3603
    %3605 = vrot.lane.b32.xlu0 %v3598, 123
    %v3606 = vpop.permute.xlu0 %3605
    %3607 = vrot.lane.b32.xlu0 %v3600, 123
    %v3608 = vpop.permute.xlu0 %3607
    %3609 = vrot.lane.b32.xlu0 %v3602, 123
    %v3610 = vpop.permute.xlu0 %3609
    %v3611 = vsel %vm496, %v3604, %v3606
    %v3612 = vsel %vm496, %v3608, %v3610
    %v3615 = vadd.f32 %v3451, %v3611
    %v3616 = vadd.f32 %v3452, %v3612
    %s3617 = sld [smem:[#allocation8 + $0x61]]
    %v3618 = vstv %s3617
    %v3619 = vmul.f32 %v3618, %v3412
    %v3620 = vmul.f32 %v3618, %v3413
    %v3621 = vmul.f32 %v3618, %v2101
    %v3622 = vmul.f32 %v3618, %v2102
    %v3623 = vmul.f32 %v3618, %v3414
    %v3624 = vmul.f32 %v3618, %v3415
    %v3631 = vrot.slane %v3619, 6
    %v3632 = vrot.slane %v3621, 6
    %v3633 = vsel %vm1628, %v3631, %v3632
    %v3634 = vrot.slane %v3620, 6
    %v3635 = vrot.slane %v3622, 6
    %v3636 = vsel %vm1628, %v3634, %v3635
    %v3637 = vrot.slane %v3623, 6
    %v3638 = vsel %vm1628, %v3632, %v3637
    %v3639 = vrot.slane %v3624, 6
    %v3640 = vsel %vm1628, %v3635, %v3639
    %3641 = vrot.lane.b32.xlu0 %v3633, 123
    %v3642 = vpop.permute.xlu0 %3641
    %3643 = vrot.lane.b32.xlu0 %v3636, 123
    %v3644 = vpop.permute.xlu0 %3643
    %3645 = vrot.lane.b32.xlu0 %v3638, 123
    %v3646 = vpop.permute.xlu0 %3645
    %3647 = vrot.lane.b32.xlu0 %v3640, 123
    %v3648 = vpop.permute.xlu0 %3647
    %v3649 = vsel %vm496, %v3642, %v3644
    %v3650 = vsel %vm496, %v3646, %v3648
    %v3655 = vadd.f32 %v3491, %v3649
    %v3656 = vadd.f32 %v3492, %v3644
    %v3657 = vadd.f32 %v3493, %v3650
    %v3658 = vadd.f32 %v3494, %v3648
    %s3659 = sld [smem:[#allocation8 + $0x62]]
    %v3660 = vld [vmem:[%s130] sm:$0xff]
    %v3661 = vld [vmem:[%s130 + $0x10] sm:$0xff]
    %v3662 = vstv %s3659
    %v3663 = vmul.f32 %v3662, %v3660
    %v3664 = vmul.f32 %v3662, %v3661
    %3667 = vrot.lane.b32.xlu0 %v3663, 2
    %v3668 = vpop.permute.xlu0 %3667
    %3669 = vrot.lane.b32.xlu0 %v3664, 2
    %v3670 = vpop.permute.xlu0 %3669
    %v3673 = vadd.f32 %v3533, %v3668
    %v3674 = vadd.f32 %v3534, %v3668
    %v3675 = vadd.f32 %v3535, %v3670
    %v3676 = vadd.f32 %v3536, %v3670
    %s3677 = sld [smem:[#allocation8 + $0x63]]
    %v3678 = vld [vmem:[%s130] sm:$0xff]
    %v3679 = vld [vmem:[%s130 + $0x8] sm:$0xff]
    %v3680 = vld [vmem:[%s130 + $0x10] sm:$0xff]
    %v3681 = vld [vmem:[%s130 + $0x18] sm:$0xff]
    %v3682 = vstv %s3677
    %v3683 = vmul.f32 %v3682, %v3678
    %v3684 = vmul.f32 %v3682, %v3679
    %v3685 = vmul.f32 %v3682, %v3680
    %v3686 = vmul.f32 %v3682, %v3681
    %3691 = vrot.lane.b32.xlu0 %v3683, 2
    %v3692 = vpop.permute.xlu0 %3691
    %3693 = vrot.lane.b32.xlu0 %v3684, 2
    %v3694 = vpop.permute.xlu0 %3693
    %3695 = vrot.lane.b32.xlu0 %v3685, 2
    %v3696 = vpop.permute.xlu0 %3695
    %3697 = vrot.lane.b32.xlu0 %v3686, 2
    %v3698 = vpop.permute.xlu0 %3697
    %v3699 = vsel %vm607, %v3692, %v3694
    %v3700 = vsel %vm607, %v3696, %v3698
    %v3705 = vadd.f32 %v3575, %v3692
    %v3706 = vadd.f32 %v3576, %v3699
    %v3707 = vadd.f32 %v3577, %v3696
    %v3708 = vadd.f32 %v3578, %v3700
    %s3709 = sld [smem:[#allocation8 + $0x64]]
    %v3710 = vstv %s3709
    %v3711 = vmul.f32 %v3710, %v3678
    %v3712 = vmul.f32 %v3710, %v3679
    %v3713 = vmul.f32 %v3710, %v3680
    %v3714 = vmul.f32 %v3710, %v3681
    %3719 = vrot.lane.b32.xlu0 %v3711, 126
    %v3720 = vpop.permute.xlu0 %3719
    %3721 = vrot.lane.b32.xlu0 %v3712, 126
    %v3722 = vpop.permute.xlu0 %3721
    %3723 = vrot.lane.b32.xlu0 %v3713, 126
    %v3724 = vpop.permute.xlu0 %3723
    %3725 = vrot.lane.b32.xlu0 %v3714, 126
    %v3726 = vpop.permute.xlu0 %3725
    %v3727 = vsel %vm650, %v3720, %v3722
    %v3728 = vsel %vm650, %v3724, %v3726
    %v3731 = vadd.f32 %v3615, %v3727
    %v3732 = vadd.f32 %v3616, %v3728
    %s3733 = sld [smem:[#allocation8 + $0x65]]
    %v3734 = vstv %s3733
    %v3735 = vmul.f32 %v3734, %v3678
    %v3736 = vmul.f32 %v3734, %v3679
    %v3737 = vmul.f32 %v3734, %v3680
    %v3738 = vmul.f32 %v3734, %v3681
    %3743 = vrot.lane.b32.xlu0 %v3735, 126
    %v3744 = vpop.permute.xlu0 %3743
    %3745 = vrot.lane.b32.xlu0 %v3736, 126
    %v3746 = vpop.permute.xlu0 %3745
    %3747 = vrot.lane.b32.xlu0 %v3737, 126
    %v3748 = vpop.permute.xlu0 %3747
    %3749 = vrot.lane.b32.xlu0 %v3738, 126
    %v3750 = vpop.permute.xlu0 %3749
    %v3751 = vsel %vm650, %v3744, %v3746
    %v3752 = vsel %vm650, %v3748, %v3750
    %v3757 = vadd.f32 %v3655, %v3751
    %v3758 = vadd.f32 %v3656, %v3746
    %v3759 = vadd.f32 %v3657, %v3752
    %v3760 = vadd.f32 %v3658, %v3750
    %s3761 = sld [smem:[#allocation8 + $0x66]]
    %v3762 = vstv %s3761
    %v3763 = vmul.f32 %v3762, %v3678
    %v3764 = vmul.f32 %v3762, %v3679
    %v3765 = vmul.f32 %v3762, %v3680
    %v3766 = vmul.f32 %v3762, %v3681
    %3771 = vrot.lane.b32.xlu0 %v3763, 126
    %v3772 = vpop.permute.xlu0 %3771
    %3773 = vrot.lane.b32.xlu0 %v3764, 126
    %v3774 = vpop.permute.xlu0 %3773
    %3775 = vrot.lane.b32.xlu0 %v3765, 126
    %v3776 = vpop.permute.xlu0 %3775
    %3777 = vrot.lane.b32.xlu0 %v3766, 126
    %v3778 = vpop.permute.xlu0 %3777
    %v3779 = vsel %vm650, %v3772, %v3774
    %v3780 = vsel %vm650, %v3776, %v3778
    %v3785 = vadd.f32 %v3673, %v3779
    %v3786 = vadd.f32 %v3674, %v3774
    %v3787 = vadd.f32 %v3675, %v3780
    %v3788 = vadd.f32 %v3676, %v3778
    %s3789 = sld [smem:[#allocation8 + $0x67]]
    %v3790 = vstv %s3789
    %v3791 = vmul.f32 %v3790, %v3678
    %v3792 = vmul.f32 %v3790, %v3679
    %v3793 = vmul.f32 %v3790, %v3680
    %v3794 = vmul.f32 %v3790, %v3681
    %3799 = vrot.lane.b32.xlu0 %v3791, 126
    %v3800 = vpop.permute.xlu0 %3799
    %3801 = vrot.lane.b32.xlu0 %v3792, 126
    %v3802 = vpop.permute.xlu0 %3801
    %3803 = vrot.lane.b32.xlu0 %v3793, 126
    %v3804 = vpop.permute.xlu0 %3803
    %3805 = vrot.lane.b32.xlu0 %v3794, 126
    %v3806 = vpop.permute.xlu0 %3805
    %v3807 = vsel %vm650, %v3800, %v3802
    %v3808 = vsel %vm650, %v3804, %v3806
    %v3813 = vadd.f32 %v3705, %v3807
    %v3814 = vadd.f32 %v3706, %v3802
    %v3815 = vadd.f32 %v3707, %v3808
    %v3816 = vadd.f32 %v3708, %v3806
    %s3817 = sld [smem:[#allocation8 + $0x68]]
    %v3818 = vstv %s3817
    %v3819 = vmul.f32 %v3818, %v3678
    %v3820 = vmul.f32 %v3818, %v3679
    %v3821 = vmul.f32 %v3818, %v3680
    %v3822 = vmul.f32 %v3818, %v3681
    %3827 = vrot.lane.b32.xlu0 %v3819, 122
    %v3828 = vpop.permute.xlu0 %3827
    %3829 = vrot.lane.b32.xlu0 %v3820, 122
    %v3830 = vpop.permute.xlu0 %3829
    %3831 = vrot.lane.b32.xlu0 %v3821, 122
    %v3832 = vpop.permute.xlu0 %3831
    %3833 = vrot.lane.b32.xlu0 %v3822, 122
    %v3834 = vpop.permute.xlu0 %3833
    %v3835 = vsel %vm815, %v3828, %v3830
    %v3836 = vsel %vm815, %v3832, %v3834
    %v3839 = vadd.f32 %v3731, %v3835
    %v3840 = vadd.f32 %v3732, %v3836
    %s3841 = sld [smem:[#allocation8 + $0x69]]
    %v3842 = vld [vmem:[%s130] sm:$0xfe]
    %v3843 = vld [vmem:[%s130 + $0x10] sm:$0xff]
    %v3844 = vld [vmem:[%s130 + $0x20] sm:$0x1]
    %v3845 = vstv %s3841
    %v3846 = vmul.f32 %v3845, %v3842
    %v3847 = vmul.f32 %v3845, %v3843
    %v3848 = vmul.f32 %v3845, %v3844
    %v3852 = vrot.slane %v3846, 1
    %v3853 = vrot.slane %v3847, 1
    %v3854 = vsel %vm277, %v3852, %v3853
    %v3855 = vrot.slane %v3848, 1
    %v3856 = vsel %vm277, %v3853, %v3855
    %3857 = vrot.lane.b32.xlu0 %v3854, 1
    %v3858 = vpop.permute.xlu0 %3857
    %3859 = vrot.lane.b32.xlu0 %v3856, 1
    %v3860 = vpop.permute.xlu0 %3859
    %v3863 = vadd.f32 %v3757, %v3858
    %v3864 = vadd.f32 %v3758, %v3858
    %v3865 = vadd.f32 %v3759, %v3860
    %v3866 = vadd.f32 %v3760, %v3860
    %s3867 = sld [smem:[#allocation8 + $0x6a]]
    %v3868 = vld [vmem:[%s130] sm:$0xfe]
    %v3869 = vld [vmem:[%s130 + $0x8] sm:$0xfe]
    %v3870 = vld [vmem:[%s130 + $0x10] sm:$0xff]
    %v3871 = vld [vmem:[%s130 + $0x18] sm:$0xff]
    %v3872 = vld [vmem:[%s130 + $0x20] sm:$0x1]
    %v3873 = vld [vmem:[%s130 + $0x28] sm:$0x1]
    %v3874 = vstv %s3867
    %v3875 = vmul.f32 %v3874, %v3868
    %v3876 = vmul.f32 %v3874, %v3869
    %v3877 = vmul.f32 %v3874, %v3870
    %v3878 = vmul.f32 %v3874, %v3871
    %v3879 = vmul.f32 %v3874, %v3872
    %v3880 = vmul.f32 %v3874, %v3873
    %v3887 = vrot.slane %v3875, 1
    %v3888 = vrot.slane %v3877, 1
    %v3889 = vsel %vm277, %v3887, %v3888
    %v3890 = vrot.slane %v3876, 1
    %v3891 = vrot.slane %v3878, 1
    %v3892 = vsel %vm277, %v3890, %v3891
    %v3893 = vrot.slane %v3879, 1
    %v3894 = vsel %vm277, %v3888, %v3893
    %v3895 = vrot.slane %v3880, 1
    %v3896 = vsel %vm277, %v3891, %v3895
    %3897 = vrot.lane.b32.xlu0 %v3889, 1
    %v3898 = vpop.permute.xlu0 %3897
    %3899 = vrot.lane.b32.xlu0 %v3892, 1
    %v3900 = vpop.permute.xlu0 %3899
    %3901 = vrot.lane.b32.xlu0 %v3894, 1
    %v3902 = vpop.permute.xlu0 %3901
    %3903 = vrot.lane.b32.xlu0 %v3896, 1
    %v3904 = vpop.permute.xlu0 %3903
    %v3905 = vsel %vm884, %v3898, %v3900
    %v3906 = vsel %vm884, %v3902, %v3904
    %v3911 = vadd.f32 %v3785, %v3898
    %v3912 = vadd.f32 %v3786, %v3905
    %v3913 = vadd.f32 %v3787, %v3902
    %v3914 = vadd.f32 %v3788, %v3906
    %s3915 = sld [smem:[#allocation8 + $0x6b]]
    %v3916 = vstv %s3915
    %v3917 = vmul.f32 %v3916, %v3868
    %v3918 = vmul.f32 %v3916, %v3869
    %v3919 = vmul.f32 %v3916, %v3870
    %v3920 = vmul.f32 %v3916, %v3871
    %v3921 = vmul.f32 %v3916, %v3872
    %v3922 = vmul.f32 %v3916, %v3873
    %v3929 = vrot.slane %v3917, 1
    %v3930 = vrot.slane %v3919, 1
    %v3931 = vsel %vm277, %v3929, %v3930
    %v3932 = vrot.slane %v3918, 1
    %v3933 = vrot.slane %v3920, 1
    %v3934 = vsel %vm277, %v3932, %v3933
    %v3935 = vrot.slane %v3921, 1
    %v3936 = vsel %vm277, %v3930, %v3935
    %v3937 = vrot.slane %v3922, 1
    %v3938 = vsel %vm277, %v3933, %v3937
    %3939 = vrot.lane.b32.xlu0 %v3931, 1
    %v3940 = vpop.permute.xlu0 %3939
    %3941 = vrot.lane.b32.xlu0 %v3934, 1
    %v3942 = vpop.permute.xlu0 %3941
    %3943 = vrot.lane.b32.xlu0 %v3936, 1
    %v3944 = vpop.permute.xlu0 %3943
    %3945 = vrot.lane.b32.xlu0 %v3938, 1
    %v3946 = vpop.permute.xlu0 %3945
    %v3947 = vsel %vm884, %v3940, %v3942
    %v3948 = vsel %vm884, %v3944, %v3946
    %v3953 = vadd.f32 %v3813, %v3940
    %v3954 = vadd.f32 %v3814, %v3947
    %v3955 = vadd.f32 %v3815, %v3944
    %v3956 = vadd.f32 %v3816, %v3948
    %s3957 = sld [smem:[#allocation8 + $0x6c]]
    %v3958 = vstv %s3957
    %v3959 = vmul.f32 %v3958, %v3868
    %v3960 = vmul.f32 %v3958, %v3869
    %v3961 = vmul.f32 %v3958, %v3870
    %v3962 = vmul.f32 %v3958, %v3871
    %v3963 = vmul.f32 %v3958, %v3872
    %v3964 = vmul.f32 %v3958, %v3873
    %v3971 = vrot.slane %v3959, 1
    %v3972 = vrot.slane %v3961, 1
    %v3973 = vsel %vm277, %v3971, %v3972
    %v3974 = vrot.slane %v3960, 1
    %v3975 = vrot.slane %v3962, 1
    %v3976 = vsel %vm277, %v3974, %v3975
    %v3977 = vrot.slane %v3963, 1
    %v3978 = vsel %vm277, %v3972, %v3977
    %v3979 = vrot.slane %v3964, 1
    %v3980 = vsel %vm277, %v3975, %v3979
    %3981 = vrot.lane.b32.xlu0 %v3973, 125
    %v3982 = vpop.permute.xlu0 %3981
    %3983 = vrot.lane.b32.xlu0 %v3976, 125
    %v3984 = vpop.permute.xlu0 %3983
    %3985 = vrot.lane.b32.xlu0 %v3978, 125
    %v3986 = vpop.permute.xlu0 %3985
    %3987 = vrot.lane.b32.xlu0 %v3980, 125
    %v3988 = vpop.permute.xlu0 %3987
    %v3989 = vsel %vm969, %v3982, %v3984
    %v3990 = vsel %vm969, %v3986, %v3988
    %v3993 = vadd.f32 %v3839, %v3989
    %v3994 = vadd.f32 %v3840, %v3990
    %s3995 = sld [smem:[#allocation8 + $0x6d]]
    %v3996 = vstv %s3995
    %v3997 = vmul.f32 %v3996, %v3868
    %v3998 = vmul.f32 %v3996, %v3869
    %v3999 = vmul.f32 %v3996, %v3870
    %v4000 = vmul.f32 %v3996, %v3871
    %v4001 = vmul.f32 %v3996, %v3872
    %v4002 = vmul.f32 %v3996, %v3873
    %v4009 = vrot.slane %v3997, 1
    %v4010 = vrot.slane %v3999, 1
    %v4011 = vsel %vm277, %v4009, %v4010
    %v4012 = vrot.slane %v3998, 1
    %v4013 = vrot.slane %v4000, 1
    %v4014 = vsel %vm277, %v4012, %v4013
    %v4015 = vrot.slane %v4001, 1
    %v4016 = vsel %vm277, %v4010, %v4015
    %v4017 = vrot.slane %v4002, 1
    %v4018 = vsel %vm277, %v4013, %v4017
    %4019 = vrot.lane.b32.xlu0 %v4011, 125
    %v4020 = vpop.permute.xlu0 %4019
    %4021 = vrot.lane.b32.xlu0 %v4014, 125
    %v4022 = vpop.permute.xlu0 %4021
    %4023 = vrot.lane.b32.xlu0 %v4016, 125
    %v4024 = vpop.permute.xlu0 %4023
    %4025 = vrot.lane.b32.xlu0 %v4018, 125
    %v4026 = vpop.permute.xlu0 %4025
    %v4027 = vsel %vm969, %v4020, %v4022
    %v4028 = vsel %vm969, %v4024, %v4026
    %v4033 = vadd.f32 %v3863, %v4027
    %v4034 = vadd.f32 %v3864, %v4022
    %v4035 = vadd.f32 %v3865, %v4028
    %v4036 = vadd.f32 %v3866, %v4026
    %s4037 = sld [smem:[#allocation8 + $0x6e]]
    %v4038 = vstv %s4037
    %v4039 = vmul.f32 %v4038, %v3868
    %v4040 = vmul.f32 %v4038, %v3869
    %v4041 = vmul.f32 %v4038, %v3870
    %v4042 = vmul.f32 %v4038, %v3871
    %v4043 = vmul.f32 %v4038, %v3872
    %v4044 = vmul.f32 %v4038, %v3873
    %v4051 = vrot.slane %v4039, 1
    %v4052 = vrot.slane %v4041, 1
    %v4053 = vsel %vm277, %v4051, %v4052
    %v4054 = vrot.slane %v4040, 1
    %v4055 = vrot.slane %v4042, 1
    %v4056 = vsel %vm277, %v4054, %v4055
    %v4057 = vrot.slane %v4043, 1
    %v4058 = vsel %vm277, %v4052, %v4057
    %v4059 = vrot.slane %v4044, 1
    %v4060 = vsel %vm277, %v4055, %v4059
    %4061 = vrot.lane.b32.xlu0 %v4053, 125
    %v4062 = vpop.permute.xlu0 %4061
    %4063 = vrot.lane.b32.xlu0 %v4056, 125
    %v4064 = vpop.permute.xlu0 %4063
    %4065 = vrot.lane.b32.xlu0 %v4058, 125
    %v4066 = vpop.permute.xlu0 %4065
    %4067 = vrot.lane.b32.xlu0 %v4060, 125
    %v4068 = vpop.permute.xlu0 %4067
    %v4069 = vsel %vm969, %v4062, %v4064
    %v4070 = vsel %vm969, %v4066, %v4068
    %v4075 = vadd.f32 %v3911, %v4069
    %v4076 = vadd.f32 %v3912, %v4064
    %v4077 = vadd.f32 %v3913, %v4070
    %v4078 = vadd.f32 %v3914, %v4068
    %s4079 = sld [smem:[#allocation8 + $0x6f]]
    %v4080 = vstv %s4079
    %v4081 = vmul.f32 %v4080, %v3868
    %v4082 = vmul.f32 %v4080, %v3869
    %v4083 = vmul.f32 %v4080, %v3870
    %v4084 = vmul.f32 %v4080, %v3871
    %v4085 = vmul.f32 %v4080, %v3872
    %v4086 = vmul.f32 %v4080, %v3873
    %v4093 = vrot.slane %v4081, 1
    %v4094 = vrot.slane %v4083, 1
    %v4095 = vsel %vm277, %v4093, %v4094
    %v4096 = vrot.slane %v4082, 1
    %v4097 = vrot.slane %v4084, 1
    %v4098 = vsel %vm277, %v4096, %v4097
    %v4099 = vrot.slane %v4085, 1
    %v4100 = vsel %vm277, %v4094, %v4099
    %v4101 = vrot.slane %v4086, 1
    %v4102 = vsel %vm277, %v4097, %v4101
    %4103 = vrot.lane.b32.xlu0 %v4095, 125
    %v4104 = vpop.permute.xlu0 %4103
    %4105 = vrot.lane.b32.xlu0 %v4098, 125
    %v4106 = vpop.permute.xlu0 %4105
    %4107 = vrot.lane.b32.xlu0 %v4100, 125
    %v4108 = vpop.permute.xlu0 %4107
    %4109 = vrot.lane.b32.xlu0 %v4102, 125
    %v4110 = vpop.permute.xlu0 %4109
    %v4111 = vsel %vm969, %v4104, %v4106
    %v4112 = vsel %vm969, %v4108, %v4110
    %v4117 = vadd.f32 %v3953, %v4111
    %v4118 = vadd.f32 %v3954, %v4106
    %v4119 = vadd.f32 %v3955, %v4112
    %v4120 = vadd.f32 %v3956, %v4110
    %s4121 = sld [smem:[#allocation8 + $0x70]]
    %v4122 = vld [vmem:[%s130] sm:$0xfc]
    %v4123 = vld [vmem:[%s130 + $0x20] sm:$0x3]
    %v4124 = vstv %s4121
    %v4125 = vmul.f32 %v4124, %v4122
    %v4126 = vmul.f32 %v4124, %v3843
    %v4127 = vmul.f32 %v4124, %v4123
    %v4131 = vrot.slane %v4125, 2
    %v4132 = vrot.slane %v4126, 2
    %v4133 = vsel %vm555, %v4131, %v4132
    %v4134 = vrot.slane %v4127, 2
    %v4135 = vsel %vm555, %v4132, %v4134
    %v4138 = vadd.f32 %v3993, %v4133
    %v4139 = vadd.f32 %v3994, %v4135
    %s4140 = sld [smem:[#allocation8 + $0x71]]
    %v4141 = vld [vmem:[%s130] sm:$0xfc]
    %v4142 = vld [vmem:[%s130 + $0x8] sm:$0xfc]
    %v4143 = vld [vmem:[%s130 + $0x20] sm:$0x3]
    %v4144 = vld [vmem:[%s130 + $0x28] sm:$0x3]
    %v4145 = vstv %s4140
    %v4146 = vmul.f32 %v4145, %v4141
    %v4147 = vmul.f32 %v4145, %v4142
    %v4148 = vmul.f32 %v4145, %v3870
    %v4149 = vmul.f32 %v4145, %v3871
    %v4150 = vmul.f32 %v4145, %v4143
    %v4151 = vmul.f32 %v4145, %v4144
    %v4158 = vrot.slane %v4146, 2
    %v4159 = vrot.slane %v4148, 2
    %v4160 = vsel %vm555, %v4158, %v4159
    %v4161 = vrot.slane %v4147, 2
    %v4162 = vrot.slane %v4149, 2
    %v4163 = vsel %vm555, %v4161, %v4162
    %v4164 = vrot.slane %v4150, 2
    %v4165 = vsel %vm555, %v4159, %v4164
    %v4166 = vrot.slane %v4151, 2
    %v4167 = vsel %vm555, %v4162, %v4166
    %v4172 = vadd.f32 %v4033, %v4160
    %v4173 = vadd.f32 %v4034, %v4163
    %v4174 = vadd.f32 %v4035, %v4165
    %v4175 = vadd.f32 %v4036, %v4167
    %s4176 = sld [smem:[#allocation8 + $0x72]]
    %v4177 = vstv %s4176
    %v4178 = vmul.f32 %v4177, %v4141
    %v4179 = vmul.f32 %v4177, %v4142
    %v4180 = vmul.f32 %v4177, %v3870
    %v4181 = vmul.f32 %v4177, %v3871
    %v4182 = vmul.f32 %v4177, %v4143
    %v4183 = vmul.f32 %v4177, %v4144
    %v4190 = vrot.slane %v4178, 2
    %v4191 = vrot.slane %v4180, 2
    %v4192 = vsel %vm555, %v4190, %v4191
    %v4193 = vrot.slane %v4179, 2
    %v4194 = vrot.slane %v4181, 2
    %v4195 = vsel %vm555, %v4193, %v4194
    %v4196 = vrot.slane %v4182, 2
    %v4197 = vsel %vm555, %v4191, %v4196
    %v4198 = vrot.slane %v4183, 2
    %v4199 = vsel %vm555, %v4194, %v4198
    %v4204 = vadd.f32 %v4075, %v4192
    %v4205 = vadd.f32 %v4076, %v4195
    %v4206 = vadd.f32 %v4077, %v4197
    %v4207 = vadd.f32 %v4078, %v4199
    %s4208 = sld [smem:[#allocation8 + $0x73]]
    %v4209 = vstv %s4208
    %v4210 = vmul.f32 %v4209, %v4141
    %v4211 = vmul.f32 %v4209, %v4142
    %v4212 = vmul.f32 %v4209, %v3870
    %v4213 = vmul.f32 %v4209, %v3871
    %v4214 = vmul.f32 %v4209, %v4143
    %v4215 = vmul.f32 %v4209, %v4144
    %v4222 = vrot.slane %v4210, 2
    %v4223 = vrot.slane %v4212, 2
    %v4224 = vsel %vm555, %v4222, %v4223
    %v4225 = vrot.slane %v4211, 2
    %v4226 = vrot.slane %v4213, 2
    %v4227 = vsel %vm555, %v4225, %v4226
    %v4228 = vrot.slane %v4214, 2
    %v4229 = vsel %vm555, %v4223, %v4228
    %v4230 = vrot.slane %v4215, 2
    %v4231 = vsel %vm555, %v4226, %v4230
    %v4236 = vadd.f32 %v4117, %v4224
    %v4237 = vadd.f32 %v4118, %v4227
    %v4238 = vadd.f32 %v4119, %v4229
    %v4239 = vadd.f32 %v4120, %v4231
    %s4240 = sld [smem:[#allocation8 + $0x74]]
    %v4241 = vstv %s4240
    %v4242 = vmul.f32 %v4241, %v4141
    %v4243 = vmul.f32 %v4241, %v4142
    %v4244 = vmul.f32 %v4241, %v3870
    %v4245 = vmul.f32 %v4241, %v3871
    %v4246 = vmul.f32 %v4241, %v4143
    %v4247 = vmul.f32 %v4241, %v4144
    %v4254 = vrot.slane %v4242, 2
    %v4255 = vrot.slane %v4244, 2
    %v4256 = vsel %vm555, %v4254, %v4255
    %v4257 = vrot.slane %v4243, 2
    %v4258 = vrot.slane %v4245, 2
    %v4259 = vsel %vm555, %v4257, %v4258
    %v4260 = vrot.slane %v4246, 2
    %v4261 = vsel %vm555, %v4255, %v4260
    %v4262 = vrot.slane %v4247, 2
    %v4263 = vsel %vm555, %v4258, %v4262
    %4264 = vrot.lane.b32.xlu0 %v4256, 124
    %v4265 = vpop.permute.xlu0 %4264
    %4266 = vrot.lane.b32.xlu0 %v4259, 124
    %v4267 = vpop.permute.xlu0 %4266
    %4268 = vrot.lane.b32.xlu0 %v4261, 124
    %v4269 = vpop.permute.xlu0 %4268
    %4270 = vrot.lane.b32.xlu0 %v4263, 124
    %v4271 = vpop.permute.xlu0 %4270
    %v4272 = vsel %vm203, %v4265, %v4267
    %v4273 = vsel %vm203, %v4269, %v4271
    %v4276 = vadd.f32 %v4138, %v4272
    %v4277 = vadd.f32 %v4139, %v4273
    %s4278 = sld [smem:[#allocation8 + $0x75]]
    %v4279 = vstv %s4278
    %v4280 = vmul.f32 %v4279, %v4141
    %v4281 = vmul.f32 %v4279, %v4142
    %v4282 = vmul.f32 %v4279, %v3870
    %v4283 = vmul.f32 %v4279, %v3871
    %v4284 = vmul.f32 %v4279, %v4143
    %v4285 = vmul.f32 %v4279, %v4144
    %v4292 = vrot.slane %v4280, 2
    %v4293 = vrot.slane %v4282, 2
    %v4294 = vsel %vm555, %v4292, %v4293
    %v4295 = vrot.slane %v4281, 2
    %v4296 = vrot.slane %v4283, 2
    %v4297 = vsel %vm555, %v4295, %v4296
    %v4298 = vrot.slane %v4284, 2
    %v4299 = vsel %vm555, %v4293, %v4298
    %v4300 = vrot.slane %v4285, 2
    %v4301 = vsel %vm555, %v4296, %v4300
    %4302 = vrot.lane.b32.xlu0 %v4294, 124
    %v4303 = vpop.permute.xlu0 %4302
    %4304 = vrot.lane.b32.xlu0 %v4297, 124
    %v4305 = vpop.permute.xlu0 %4304
    %4306 = vrot.lane.b32.xlu0 %v4299, 124
    %v4307 = vpop.permute.xlu0 %4306
    %4308 = vrot.lane.b32.xlu0 %v4301, 124
    %v4309 = vpop.permute.xlu0 %4308
    %v4310 = vsel %vm203, %v4303, %v4305
    %v4311 = vsel %vm203, %v4307, %v4309
    %v4316 = vadd.f32 %v4172, %v4310
    %v4317 = vadd.f32 %v4173, %v4305
    %v4318 = vadd.f32 %v4174, %v4311
    %v4319 = vadd.f32 %v4175, %v4309
    %s4320 = sld [smem:[#allocation8 + $0x76]]
    %v4321 = vstv %s4320
    %v4322 = vmul.f32 %v4321, %v4141
    %v4323 = vmul.f32 %v4321, %v4142
    %v4324 = vmul.f32 %v4321, %v3870
    %v4325 = vmul.f32 %v4321, %v3871
    %v4326 = vmul.f32 %v4321, %v4143
    %v4327 = vmul.f32 %v4321, %v4144
    %v4334 = vrot.slane %v4322, 2
    %v4335 = vrot.slane %v4324, 2
    %v4336 = vsel %vm555, %v4334, %v4335
    %v4337 = vrot.slane %v4323, 2
    %v4338 = vrot.slane %v4325, 2
    %v4339 = vsel %vm555, %v4337, %v4338
    %v4340 = vrot.slane %v4326, 2
    %v4341 = vsel %vm555, %v4335, %v4340
    %v4342 = vrot.slane %v4327, 2
    %v4343 = vsel %vm555, %v4338, %v4342
    %4344 = vrot.lane.b32.xlu0 %v4336, 124
    %v4345 = vpop.permute.xlu0 %4344
    %4346 = vrot.lane.b32.xlu0 %v4339, 124
    %v4347 = vpop.permute.xlu0 %4346
    %4348 = vrot.lane.b32.xlu0 %v4341, 124
    %v4349 = vpop.permute.xlu0 %4348
    %4350 = vrot.lane.b32.xlu0 %v4343, 124
    %v4351 = vpop.permute.xlu0 %4350
    %v4352 = vsel %vm203, %v4345, %v4347
    %v4353 = vsel %vm203, %v4349, %v4351
    %v4358 = vadd.f32 %v4204, %v4352
    %v4359 = vadd.f32 %v4205, %v4347
    %v4360 = vadd.f32 %v4206, %v4353
    %v4361 = vadd.f32 %v4207, %v4351
    %s4362 = sld [smem:[#allocation8 + $0x77]]
    %v4363 = vld [vmem:[%s130] sm:$0xf8]
    %v4364 = vld [vmem:[%s130 + $0x20] sm:$0x7]
    %v4365 = vstv %s4362
    %v4366 = vmul.f32 %v4365, %v4363
    %v4367 = vmul.f32 %v4365, %v3843
    %v4368 = vmul.f32 %v4365, %v4364
    %v4372 = vrot.slane %v4366, 3
    %v4373 = vrot.slane %v4367, 3
    %v4374 = vsel %vm832, %v4372, %v4373
    %v4375 = vrot.slane %v4368, 3
    %v4376 = vsel %vm832, %v4373, %v4375
    %4377 = vrot.lane.b32.xlu0 %v4374, 3
    %v4378 = vpop.permute.xlu0 %4377
    %4379 = vrot.lane.b32.xlu0 %v4376, 3
    %v4380 = vpop.permute.xlu0 %4379
    %v4383 = vadd.f32 %v4236, %v4378
    %v4384 = vadd.f32 %v4237, %v4378
    %v4385 = vadd.f32 %v4238, %v4380
    %v4386 = vadd.f32 %v4239, %v4380
    %s4387 = sld [smem:[#allocation8 + $0x78]]
    %v4388 = vld [vmem:[%s130] sm:$0xf8]
    %v4389 = vld [vmem:[%s130 + $0x8] sm:$0xf8]
    %v4390 = vld [vmem:[%s130 + $0x20] sm:$0x7]
    %v4391 = vld [vmem:[%s130 + $0x28] sm:$0x7]
    %v4392 = vstv %s4387
    %v4393 = vmul.f32 %v4392, %v4388
    %v4394 = vmul.f32 %v4392, %v4389
    %v4395 = vmul.f32 %v4392, %v3870
    %v4396 = vmul.f32 %v4392, %v3871
    %v4397 = vmul.f32 %v4392, %v4390
    %v4398 = vmul.f32 %v4392, %v4391
    %v4405 = vrot.slane %v4393, 3
    %v4406 = vrot.slane %v4395, 3
    %v4407 = vsel %vm832, %v4405, %v4406
    %v4408 = vrot.slane %v4394, 3
    %v4409 = vrot.slane %v4396, 3
    %v4410 = vsel %vm832, %v4408, %v4409
    %v4411 = vrot.slane %v4397, 3
    %v4412 = vsel %vm832, %v4406, %v4411
    %v4413 = vrot.slane %v4398, 3
    %v4414 = vsel %vm832, %v4409, %v4413
    %4415 = vrot.lane.b32.xlu0 %v4407, 127
    %v4416 = vpop.permute.xlu0 %4415
    %4417 = vrot.lane.b32.xlu0 %v4410, 127
    %v4418 = vpop.permute.xlu0 %4417
    %4419 = vrot.lane.b32.xlu0 %v4412, 127
    %v4420 = vpop.permute.xlu0 %4419
    %4421 = vrot.lane.b32.xlu0 %v4414, 127
    %v4422 = vpop.permute.xlu0 %4421
    %v4423 = vsel %vm331, %v4416, %v4418
    %v4424 = vsel %vm331, %v4420, %v4422
    %v4427 = vadd.f32 %v4276, %v4423
    %v4428 = vadd.f32 %v4277, %v4424
    %s4429 = sld [smem:[#allocation8 + $0x79]]
    %v4430 = vstv %s4429
    %v4431 = vmul.f32 %v4430, %v4388
    %v4432 = vmul.f32 %v4430, %v4389
    %v4433 = vmul.f32 %v4430, %v3870
    %v4434 = vmul.f32 %v4430, %v3871
    %v4435 = vmul.f32 %v4430, %v4390
    %v4436 = vmul.f32 %v4430, %v4391
    %v4443 = vrot.slane %v4431, 3
    %v4444 = vrot.slane %v4433, 3
    %v4445 = vsel %vm832, %v4443, %v4444
    %v4446 = vrot.slane %v4432, 3
    %v4447 = vrot.slane %v4434, 3
    %v4448 = vsel %vm832, %v4446, %v4447
    %v4449 = vrot.slane %v4435, 3
    %v4450 = vsel %vm832, %v4444, %v4449
    %v4451 = vrot.slane %v4436, 3
    %v4452 = vsel %vm832, %v4447, %v4451
    %4453 = vrot.lane.b32.xlu0 %v4445, 127
    %v4454 = vpop.permute.xlu0 %4453
    %4455 = vrot.lane.b32.xlu0 %v4448, 127
    %v4456 = vpop.permute.xlu0 %4455
    %4457 = vrot.lane.b32.xlu0 %v4450, 127
    %v4458 = vpop.permute.xlu0 %4457
    %4459 = vrot.lane.b32.xlu0 %v4452, 127
    %v4460 = vpop.permute.xlu0 %4459
    %v4461 = vsel %vm331, %v4454, %v4456
    %v4462 = vsel %vm331, %v4458, %v4460
    %v4467 = vadd.f32 %v4316, %v4461
    %v4468 = vadd.f32 %v4317, %v4456
    %v4469 = vadd.f32 %v4318, %v4462
    %v4470 = vadd.f32 %v4319, %v4460
    %s4471 = sld [smem:[#allocation8 + $0x7a]]
    %v4472 = vstv %s4471
    %v4473 = vmul.f32 %v4472, %v4388
    %v4474 = vmul.f32 %v4472, %v4389
    %v4475 = vmul.f32 %v4472, %v3870
    %v4476 = vmul.f32 %v4472, %v3871
    %v4477 = vmul.f32 %v4472, %v4390
    %v4478 = vmul.f32 %v4472, %v4391
    %v4485 = vrot.slane %v4473, 3
    %v4486 = vrot.slane %v4475, 3
    %v4487 = vsel %vm832, %v4485, %v4486
    %v4488 = vrot.slane %v4474, 3
    %v4489 = vrot.slane %v4476, 3
    %v4490 = vsel %vm832, %v4488, %v4489
    %v4491 = vrot.slane %v4477, 3
    %v4492 = vsel %vm832, %v4486, %v4491
    %v4493 = vrot.slane %v4478, 3
    %v4494 = vsel %vm832, %v4489, %v4493
    %4495 = vrot.lane.b32.xlu0 %v4487, 127
    %v4496 = vpop.permute.xlu0 %4495
    %4497 = vrot.lane.b32.xlu0 %v4490, 127
    %v4498 = vpop.permute.xlu0 %4497
    %4499 = vrot.lane.b32.xlu0 %v4492, 127
    %v4500 = vpop.permute.xlu0 %4499
    %4501 = vrot.lane.b32.xlu0 %v4494, 127
    %v4502 = vpop.permute.xlu0 %4501
    %v4503 = vsel %vm331, %v4496, %v4498
    %v4504 = vsel %vm331, %v4500, %v4502
    %v4509 = vadd.f32 %v4358, %v4503
    %v4510 = vadd.f32 %v4359, %v4498
    %v4511 = vadd.f32 %v4360, %v4504
    %v4512 = vadd.f32 %v4361, %v4502
    %s4513 = sld [smem:[#allocation8 + $0x7b]]
    %v4514 = vstv %s4513
    %v4515 = vmul.f32 %v4514, %v4388
    %v4516 = vmul.f32 %v4514, %v4389
    %v4517 = vmul.f32 %v4514, %v3870
    %v4518 = vmul.f32 %v4514, %v3871
    %v4519 = vmul.f32 %v4514, %v4390
    %v4520 = vmul.f32 %v4514, %v4391
    %v4527 = vrot.slane %v4515, 3
    %v4528 = vrot.slane %v4517, 3
    %v4529 = vsel %vm832, %v4527, %v4528
    %v4530 = vrot.slane %v4516, 3
    %v4531 = vrot.slane %v4518, 3
    %v4532 = vsel %vm832, %v4530, %v4531
    %v4533 = vrot.slane %v4519, 3
    %v4534 = vsel %vm832, %v4528, %v4533
    %v4535 = vrot.slane %v4520, 3
    %v4536 = vsel %vm832, %v4531, %v4535
    %4537 = vrot.lane.b32.xlu0 %v4529, 127
    %v4538 = vpop.permute.xlu0 %4537
    %4539 = vrot.lane.b32.xlu0 %v4532, 127
    %v4540 = vpop.permute.xlu0 %4539
    %4541 = vrot.lane.b32.xlu0 %v4534, 127
    %v4542 = vpop.permute.xlu0 %4541
    %4543 = vrot.lane.b32.xlu0 %v4536, 127
    %v4544 = vpop.permute.xlu0 %4543
    %v4545 = vsel %vm331, %v4538, %v4540
    %v4546 = vsel %vm331, %v4542, %v4544
    %v4551 = vadd.f32 %v4383, %v4545
    %v4552 = vadd.f32 %v4384, %v4540
    %v4553 = vadd.f32 %v4385, %v4546
    %v4554 = vadd.f32 %v4386, %v4544
    %s4555 = sld [smem:[#allocation8 + $0x7c]]
    %v4556 = vstv %s4555
    %v4557 = vmul.f32 %v4556, %v4388
    %v4558 = vmul.f32 %v4556, %v4389
    %v4559 = vmul.f32 %v4556, %v3870
    %v4560 = vmul.f32 %v4556, %v3871
    %v4561 = vmul.f32 %v4556, %v4390
    %v4562 = vmul.f32 %v4556, %v4391
    %v4569 = vrot.slane %v4557, 3
    %v4570 = vrot.slane %v4559, 3
    %v4571 = vsel %vm832, %v4569, %v4570
    %v4572 = vrot.slane %v4558, 3
    %v4573 = vrot.slane %v4560, 3
    %v4574 = vsel %vm832, %v4572, %v4573
    %v4575 = vrot.slane %v4561, 3
    %v4576 = vsel %vm832, %v4570, %v4575
    %v4577 = vrot.slane %v4562, 3
    %v4578 = vsel %vm832, %v4573, %v4577
    %4579 = vrot.lane.b32.xlu0 %v4571, 123
    %v4580 = vpop.permute.xlu0 %4579
    %4581 = vrot.lane.b32.xlu0 %v4574, 123
    %v4582 = vpop.permute.xlu0 %4581
    %4583 = vrot.lane.b32.xlu0 %v4576, 123
    %v4584 = vpop.permute.xlu0 %4583
    %4585 = vrot.lane.b32.xlu0 %v4578, 123
    %v4586 = vpop.permute.xlu0 %4585
    %v4587 = vsel %vm496, %v4580, %v4582
    %v4588 = vsel %vm496, %v4584, %v4586
    %v4591 = vadd.f32 %v4427, %v4587
    %v4592 = vadd.f32 %v4428, %v4588
    %s4593 = sld [smem:[#allocation8 + $0x7d]]
    %v4594 = vstv %s4593
    %v4595 = vmul.f32 %v4594, %v4388
    %v4596 = vmul.f32 %v4594, %v4389
    %v4597 = vmul.f32 %v4594, %v3870
    %v4598 = vmul.f32 %v4594, %v3871
    %v4599 = vmul.f32 %v4594, %v4390
    %v4600 = vmul.f32 %v4594, %v4391
    %v4607 = vrot.slane %v4595, 3
    %v4608 = vrot.slane %v4597, 3
    %v4609 = vsel %vm832, %v4607, %v4608
    %v4610 = vrot.slane %v4596, 3
    %v4611 = vrot.slane %v4598, 3
    %v4612 = vsel %vm832, %v4610, %v4611
    %v4613 = vrot.slane %v4599, 3
    %v4614 = vsel %vm832, %v4608, %v4613
    %v4615 = vrot.slane %v4600, 3
    %v4616 = vsel %vm832, %v4611, %v4615
    %4617 = vrot.lane.b32.xlu0 %v4609, 123
    %v4618 = vpop.permute.xlu0 %4617
    %4619 = vrot.lane.b32.xlu0 %v4612, 123
    %v4620 = vpop.permute.xlu0 %4619
    %4621 = vrot.lane.b32.xlu0 %v4614, 123
    %v4622 = vpop.permute.xlu0 %4621
    %4623 = vrot.lane.b32.xlu0 %v4616, 123
    %v4624 = vpop.permute.xlu0 %4623
    %v4625 = vsel %vm496, %v4618, %v4620
    %v4626 = vsel %vm496, %v4622, %v4624
    %v4631 = vadd.f32 %v4467, %v4625
    %v4632 = vadd.f32 %v4468, %v4620
    %v4633 = vadd.f32 %v4469, %v4626
    %v4634 = vadd.f32 %v4470, %v4624
    %s4635 = sld [smem:[#allocation8 + $0x7e]]
    %v4636 = vld [vmem:[%s130] sm:$0xf0]
    %v4637 = vld [vmem:[%s130 + $0x20] sm:$0xf]
    %v4638 = vstv %s4635
    %v4639 = vmul.f32 %v4638, %v4636
    %v4640 = vmul.f32 %v4638, %v3843
    %v4641 = vmul.f32 %v4638, %v4637
    %v4645 = vrot.slane %v4639, 4
    %v4646 = vrot.slane %v4640, 4
    %v4647 = vsel %vm1112, %v4645, %v4646
    %v4648 = vrot.slane %v4641, 4
    %v4649 = vsel %vm1112, %v4646, %v4648
    %4650 = vrot.lane.b32.xlu0 %v4647, 2
    %v4651 = vpop.permute.xlu0 %4650
    %4652 = vrot.lane.b32.xlu0 %v4649, 2
    %v4653 = vpop.permute.xlu0 %4652
    %v4656 = vadd.f32 %v4509, %v4651
    %v4657 = vadd.f32 %v4510, %v4651
    %v4658 = vadd.f32 %v4511, %v4653
    %v4659 = vadd.f32 %v4512, %v4653
    %s4660 = sld [smem:[#allocation8 + $0x7f]]
    %v4661 = vld [vmem:[%s130] sm:$0xf0]
    %v4662 = vld [vmem:[%s130 + $0x8] sm:$0xf0]
    %v4663 = vld [vmem:[%s130 + $0x20] sm:$0xf]
    %v4664 = vld [vmem:[%s130 + $0x28] sm:$0xf]
    %v4665 = vstv %s4660
    %v4666 = vmul.f32 %v4665, %v4661
    %v4667 = vmul.f32 %v4665, %v4662
    %v4668 = vmul.f32 %v4665, %v3870
    %v4669 = vmul.f32 %v4665, %v3871
    %v4670 = vmul.f32 %v4665, %v4663
    %v4671 = vmul.f32 %v4665, %v4664
    %v4678 = vrot.slane %v4666, 4
    %v4679 = vrot.slane %v4668, 4
    %v4680 = vsel %vm1112, %v4678, %v4679
    %v4681 = vrot.slane %v4667, 4
    %v4682 = vrot.slane %v4669, 4
    %v4683 = vsel %vm1112, %v4681, %v4682
    %v4684 = vrot.slane %v4670, 4
    %v4685 = vsel %vm1112, %v4679, %v4684
    %v4686 = vrot.slane %v4671, 4
    %v4687 = vsel %vm1112, %v4682, %v4686
    %4688 = vrot.lane.b32.xlu0 %v4680, 2
    %v4689 = vpop.permute.xlu0 %4688
    %4690 = vrot.lane.b32.xlu0 %v4683, 2
    %v4691 = vpop.permute.xlu0 %4690
    %4692 = vrot.lane.b32.xlu0 %v4685, 2
    %v4693 = vpop.permute.xlu0 %4692
    %4694 = vrot.lane.b32.xlu0 %v4687, 2
    %v4695 = vpop.permute.xlu0 %4694
    %v4696 = vsel %vm607, %v4689, %v4691
    %v4697 = vsel %vm607, %v4693, %v4695
    %v4702 = vadd.f32 %v4551, %v4689
    %v4703 = vadd.f32 %v4552, %v4696
    %v4704 = vadd.f32 %v4553, %v4693
    %v4705 = vadd.f32 %v4554, %v4697
    %s4706 = sld [smem:[#allocation8 + $0x80]]
    %v4707 = vstv %s4706
    %v4708 = vmul.f32 %v4707, %v4661
    %v4709 = vmul.f32 %v4707, %v4662
    %v4710 = vmul.f32 %v4707, %v3870
    %v4711 = vmul.f32 %v4707, %v3871
    %v4712 = vmul.f32 %v4707, %v4663
    %v4713 = vmul.f32 %v4707, %v4664
    %v4720 = vrot.slane %v4708, 4
    %v4721 = vrot.slane %v4710, 4
    %v4722 = vsel %vm1112, %v4720, %v4721
    %v4723 = vrot.slane %v4709, 4
    %v4724 = vrot.slane %v4711, 4
    %v4725 = vsel %vm1112, %v4723, %v4724
    %v4726 = vrot.slane %v4712, 4
    %v4727 = vsel %vm1112, %v4721, %v4726
    %v4728 = vrot.slane %v4713, 4
    %v4729 = vsel %vm1112, %v4724, %v4728
    %4730 = vrot.lane.b32.xlu0 %v4722, 126
    %v4731 = vpop.permute.xlu0 %4730
    %4732 = vrot.lane.b32.xlu0 %v4725, 126
    %v4733 = vpop.permute.xlu0 %4732
    %4734 = vrot.lane.b32.xlu0 %v4727, 126
    %v4735 = vpop.permute.xlu0 %4734
    %4736 = vrot.lane.b32.xlu0 %v4729, 126
    %v4737 = vpop.permute.xlu0 %4736
    %v4738 = vsel %vm650, %v4731, %v4733
    %v4739 = vsel %vm650, %v4735, %v4737
    %v4742 = vadd.f32 %v4591, %v4738
    %v4743 = vadd.f32 %v4592, %v4739
    %s4744 = sld [smem:[#allocation8 + $0x81]]
    %v4745 = vstv %s4744
    %v4746 = vmul.f32 %v4745, %v4661
    %v4747 = vmul.f32 %v4745, %v4662
    %v4748 = vmul.f32 %v4745, %v3870
    %v4749 = vmul.f32 %v4745, %v3871
    %v4750 = vmul.f32 %v4745, %v4663
    %v4751 = vmul.f32 %v4745, %v4664
    %v4758 = vrot.slane %v4746, 4
    %v4759 = vrot.slane %v4748, 4
    %v4760 = vsel %vm1112, %v4758, %v4759
    %v4761 = vrot.slane %v4747, 4
    %v4762 = vrot.slane %v4749, 4
    %v4763 = vsel %vm1112, %v4761, %v4762
    %v4764 = vrot.slane %v4750, 4
    %v4765 = vsel %vm1112, %v4759, %v4764
    %v4766 = vrot.slane %v4751, 4
    %v4767 = vsel %vm1112, %v4762, %v4766
    %4768 = vrot.lane.b32.xlu0 %v4760, 126
    %v4769 = vpop.permute.xlu0 %4768
    %4770 = vrot.lane.b32.xlu0 %v4763, 126
    %v4771 = vpop.permute.xlu0 %4770
    %4772 = vrot.lane.b32.xlu0 %v4765, 126
    %v4773 = vpop.permute.xlu0 %4772
    %4774 = vrot.lane.b32.xlu0 %v4767, 126
    %v4775 = vpop.permute.xlu0 %4774
    %v4776 = vsel %vm650, %v4769, %v4771
    %v4777 = vsel %vm650, %v4773, %v4775
    %v4782 = vadd.f32 %v4631, %v4776
    %v4783 = vadd.f32 %v4632, %v4771
    %v4784 = vadd.f32 %v4633, %v4777
    %v4785 = vadd.f32 %v4634, %v4775
    %s4786 = sld [smem:[#allocation8 + $0x82]]
    %v4787 = vstv %s4786
    %v4788 = vmul.f32 %v4787, %v4661
    %v4789 = vmul.f32 %v4787, %v4662
    %v4790 = vmul.f32 %v4787, %v3870
    %v4791 = vmul.f32 %v4787, %v3871
    %v4792 = vmul.f32 %v4787, %v4663
    %v4793 = vmul.f32 %v4787, %v4664
    %v4800 = vrot.slane %v4788, 4
    %v4801 = vrot.slane %v4790, 4
    %v4802 = vsel %vm1112, %v4800, %v4801
    %v4803 = vrot.slane %v4789, 4
    %v4804 = vrot.slane %v4791, 4
    %v4805 = vsel %vm1112, %v4803, %v4804
    %v4806 = vrot.slane %v4792, 4
    %v4807 = vsel %vm1112, %v4801, %v4806
    %v4808 = vrot.slane %v4793, 4
    %v4809 = vsel %vm1112, %v4804, %v4808
    %4810 = vrot.lane.b32.xlu0 %v4802, 126
    %v4811 = vpop.permute.xlu0 %4810
    %4812 = vrot.lane.b32.xlu0 %v4805, 126
    %v4813 = vpop.permute.xlu0 %4812
    %4814 = vrot.lane.b32.xlu0 %v4807, 126
    %v4815 = vpop.permute.xlu0 %4814
    %4816 = vrot.lane.b32.xlu0 %v4809, 126
    %v4817 = vpop.permute.xlu0 %4816
    %v4818 = vsel %vm650, %v4811, %v4813
    %v4819 = vsel %vm650, %v4815, %v4817
    %v4824 = vadd.f32 %v4656, %v4818
    %v4825 = vadd.f32 %v4657, %v4813
    %v4826 = vadd.f32 %v4658, %v4819
    %v4827 = vadd.f32 %v4659, %v4817
    %s4828 = sld [smem:[#allocation8 + $0x83]]
    %v4829 = vstv %s4828
    %v4830 = vmul.f32 %v4829, %v4661
    %v4831 = vmul.f32 %v4829, %v4662
    %v4832 = vmul.f32 %v4829, %v3870
    %v4833 = vmul.f32 %v4829, %v3871
    %v4834 = vmul.f32 %v4829, %v4663
    %v4835 = vmul.f32 %v4829, %v4664
    %v4842 = vrot.slane %v4830, 4
    %v4843 = vrot.slane %v4832, 4
    %v4844 = vsel %vm1112, %v4842, %v4843
    %v4845 = vrot.slane %v4831, 4
    %v4846 = vrot.slane %v4833, 4
    %v4847 = vsel %vm1112, %v4845, %v4846
    %v4848 = vrot.slane %v4834, 4
    %v4849 = vsel %vm1112, %v4843, %v4848
    %v4850 = vrot.slane %v4835, 4
    %v4851 = vsel %vm1112, %v4846, %v4850
    %4852 = vrot.lane.b32.xlu0 %v4844, 126
    %v4853 = vpop.permute.xlu0 %4852
    %4854 = vrot.lane.b32.xlu0 %v4847, 126
    %v4855 = vpop.permute.xlu0 %4854
    %4856 = vrot.lane.b32.xlu0 %v4849, 126
    %v4857 = vpop.permute.xlu0 %4856
    %4858 = vrot.lane.b32.xlu0 %v4851, 126
    %v4859 = vpop.permute.xlu0 %4858
    %v4860 = vsel %vm650, %v4853, %v4855
    %v4861 = vsel %vm650, %v4857, %v4859
    %v4866 = vadd.f32 %v4702, %v4860
    %v4867 = vadd.f32 %v4703, %v4855
    %v4868 = vadd.f32 %v4704, %v4861
    %v4869 = vadd.f32 %v4705, %v4859
    %s4870 = sld [smem:[#allocation8 + $0x84]]
    %v4871 = vstv %s4870
    %v4872 = vmul.f32 %v4871, %v4661
    %v4873 = vmul.f32 %v4871, %v4662
    %v4874 = vmul.f32 %v4871, %v3870
    %v4875 = vmul.f32 %v4871, %v3871
    %v4876 = vmul.f32 %v4871, %v4663
    %v4877 = vmul.f32 %v4871, %v4664
    %v4884 = vrot.slane %v4872, 4
    %v4885 = vrot.slane %v4874, 4
    %v4886 = vsel %vm1112, %v4884, %v4885
    %v4887 = vrot.slane %v4873, 4
    %v4888 = vrot.slane %v4875, 4
    %v4889 = vsel %vm1112, %v4887, %v4888
    %v4890 = vrot.slane %v4876, 4
    %v4891 = vsel %vm1112, %v4885, %v4890
    %v4892 = vrot.slane %v4877, 4
    %v4893 = vsel %vm1112, %v4888, %v4892
    %4894 = vrot.lane.b32.xlu0 %v4886, 122
    %v4895 = vpop.permute.xlu0 %4894
    %4896 = vrot.lane.b32.xlu0 %v4889, 122
    %v4897 = vpop.permute.xlu0 %4896
    %4898 = vrot.lane.b32.xlu0 %v4891, 122
    %v4899 = vpop.permute.xlu0 %4898
    %4900 = vrot.lane.b32.xlu0 %v4893, 122
    %v4901 = vpop.permute.xlu0 %4900
    %v4902 = vsel %vm815, %v4895, %v4897
    %v4903 = vsel %vm815, %v4899, %v4901
    %v4906 = vadd.f32 %v4742, %v4902
    %v4907 = vadd.f32 %v4743, %v4903
    %s4908 = sld [smem:[#allocation8 + $0x85]]
    %v4909 = vld [vmem:[%s130] sm:$0xe0]
    %v4910 = vld [vmem:[%s130 + $0x20] sm:$0x1f]
    %v4911 = vstv %s4908
    %v4912 = vmul.f32 %v4911, %v4909
    %v4913 = vmul.f32 %v4911, %v3843
    %v4914 = vmul.f32 %v4911, %v4910
    %v4918 = vrot.slane %v4912, 5
    %v4919 = vrot.slane %v4913, 5
    %v4920 = vsel %vm1354, %v4918, %v4919
    %v4921 = vrot.slane %v4914, 5
    %v4922 = vsel %vm1354, %v4919, %v4921
    %4923 = vrot.lane.b32.xlu0 %v4920, 1
    %v4924 = vpop.permute.xlu0 %4923
    %4925 = vrot.lane.b32.xlu0 %v4922, 1
    %v4926 = vpop.permute.xlu0 %4925
    %v4929 = vadd.f32 %v4782, %v4924
    %v4930 = vadd.f32 %v4783, %v4924
    %v4931 = vadd.f32 %v4784, %v4926
    %v4932 = vadd.f32 %v4785, %v4926
    %s4933 = sld [smem:[#allocation8 + $0x86]]
    %v4934 = vld [vmem:[%s130] sm:$0xe0]
    %v4935 = vld [vmem:[%s130 + $0x8] sm:$0xe0]
    %v4936 = vld [vmem:[%s130 + $0x20] sm:$0x1f]
    %v4937 = vld [vmem:[%s130 + $0x28] sm:$0x1f]
    %v4938 = vstv %s4933
    %v4939 = vmul.f32 %v4938, %v4934
    %v4940 = vmul.f32 %v4938, %v4935
    %v4941 = vmul.f32 %v4938, %v3870
    %v4942 = vmul.f32 %v4938, %v3871
    %v4943 = vmul.f32 %v4938, %v4936
    %v4944 = vmul.f32 %v4938, %v4937
    %v4951 = vrot.slane %v4939, 5
    %v4952 = vrot.slane %v4941, 5
    %v4953 = vsel %vm1354, %v4951, %v4952
    %v4954 = vrot.slane %v4940, 5
    %v4955 = vrot.slane %v4942, 5
    %v4956 = vsel %vm1354, %v4954, %v4955
    %v4957 = vrot.slane %v4943, 5
    %v4958 = vsel %vm1354, %v4952, %v4957
    %v4959 = vrot.slane %v4944, 5
    %v4960 = vsel %vm1354, %v4955, %v4959
    %4961 = vrot.lane.b32.xlu0 %v4953, 1
    %v4962 = vpop.permute.xlu0 %4961
    %4963 = vrot.lane.b32.xlu0 %v4956, 1
    %v4964 = vpop.permute.xlu0 %4963
    %4965 = vrot.lane.b32.xlu0 %v4958, 1
    %v4966 = vpop.permute.xlu0 %4965
    %4967 = vrot.lane.b32.xlu0 %v4960, 1
    %v4968 = vpop.permute.xlu0 %4967
    %v4969 = vsel %vm884, %v4962, %v4964
    %v4970 = vsel %vm884, %v4966, %v4968
    %v4975 = vadd.f32 %v4824, %v4962
    %v4976 = vadd.f32 %v4825, %v4969
    %v4977 = vadd.f32 %v4826, %v4966
    %v4978 = vadd.f32 %v4827, %v4970
    %s4979 = sld [smem:[#allocation8 + $0x87]]
    %v4980 = vstv %s4979
    %v4981 = vmul.f32 %v4980, %v4934
    %v4982 = vmul.f32 %v4980, %v4935
    %v4983 = vmul.f32 %v4980, %v3870
    %v4984 = vmul.f32 %v4980, %v3871
    %v4985 = vmul.f32 %v4980, %v4936
    %v4986 = vmul.f32 %v4980, %v4937
    %v4993 = vrot.slane %v4981, 5
    %v4994 = vrot.slane %v4983, 5
    %v4995 = vsel %vm1354, %v4993, %v4994
    %v4996 = vrot.slane %v4982, 5
    %v4997 = vrot.slane %v4984, 5
    %v4998 = vsel %vm1354, %v4996, %v4997
    %v4999 = vrot.slane %v4985, 5
    %v5000 = vsel %vm1354, %v4994, %v4999
    %v5001 = vrot.slane %v4986, 5
    %v5002 = vsel %vm1354, %v4997, %v5001
    %5003 = vrot.lane.b32.xlu0 %v4995, 1
    %v5004 = vpop.permute.xlu0 %5003
    %5005 = vrot.lane.b32.xlu0 %v4998, 1
    %v5006 = vpop.permute.xlu0 %5005
    %5007 = vrot.lane.b32.xlu0 %v5000, 1
    %v5008 = vpop.permute.xlu0 %5007
    %5009 = vrot.lane.b32.xlu0 %v5002, 1
    %v5010 = vpop.permute.xlu0 %5009
    %v5011 = vsel %vm884, %v5004, %v5006
    %v5012 = vsel %vm884, %v5008, %v5010
    %v5017 = vadd.f32 %v4866, %v5004
    %v5018 = vadd.f32 %v4867, %v5011
    %v5019 = vadd.f32 %v4868, %v5008
    %v5020 = vadd.f32 %v4869, %v5012
    %s5021 = sld [smem:[#allocation8 + $0x88]]
    %v5022 = vstv %s5021
    %v5023 = vmul.f32 %v5022, %v4934
    %v5024 = vmul.f32 %v5022, %v4935
    %v5025 = vmul.f32 %v5022, %v3870
    %v5026 = vmul.f32 %v5022, %v3871
    %v5027 = vmul.f32 %v5022, %v4936
    %v5028 = vmul.f32 %v5022, %v4937
    %v5035 = vrot.slane %v5023, 5
    %v5036 = vrot.slane %v5025, 5
    %v5037 = vsel %vm1354, %v5035, %v5036
    %v5038 = vrot.slane %v5024, 5
    %v5039 = vrot.slane %v5026, 5
    %v5040 = vsel %vm1354, %v5038, %v5039
    %v5041 = vrot.slane %v5027, 5
    %v5042 = vsel %vm1354, %v5036, %v5041
    %v5043 = vrot.slane %v5028, 5
    %v5044 = vsel %vm1354, %v5039, %v5043
    %5045 = vrot.lane.b32.xlu0 %v5037, 125
    %v5046 = vpop.permute.xlu0 %5045
    %5047 = vrot.lane.b32.xlu0 %v5040, 125
    %v5048 = vpop.permute.xlu0 %5047
    %5049 = vrot.lane.b32.xlu0 %v5042, 125
    %v5050 = vpop.permute.xlu0 %5049
    %5051 = vrot.lane.b32.xlu0 %v5044, 125
    %v5052 = vpop.permute.xlu0 %5051
    %v5053 = vsel %vm969, %v5046, %v5048
    %v5054 = vsel %vm969, %v5050, %v5052
    %v5057 = vadd.f32 %v4906, %v5053
    %v5058 = vadd.f32 %v4907, %v5054
    %s5059 = sld [smem:[#allocation8 + $0x89]]
    %v5060 = vstv %s5059
    %v5061 = vmul.f32 %v5060, %v4934
    %v5062 = vmul.f32 %v5060, %v4935
    %v5063 = vmul.f32 %v5060, %v3870
    %v5064 = vmul.f32 %v5060, %v3871
    %v5065 = vmul.f32 %v5060, %v4936
    %v5066 = vmul.f32 %v5060, %v4937
    %v5073 = vrot.slane %v5061, 5
    %v5074 = vrot.slane %v5063, 5
    %v5075 = vsel %vm1354, %v5073, %v5074
    %v5076 = vrot.slane %v5062, 5
    %v5077 = vrot.slane %v5064, 5
    %v5078 = vsel %vm1354, %v5076, %v5077
    %v5079 = vrot.slane %v5065, 5
    %v5080 = vsel %vm1354, %v5074, %v5079
    %v5081 = vrot.slane %v5066, 5
    %v5082 = vsel %vm1354, %v5077, %v5081
    %5083 = vrot.lane.b32.xlu0 %v5075, 125
    %v5084 = vpop.permute.xlu0 %5083
    %5085 = vrot.lane.b32.xlu0 %v5078, 125
    %v5086 = vpop.permute.xlu0 %5085
    %5087 = vrot.lane.b32.xlu0 %v5080, 125
    %v5088 = vpop.permute.xlu0 %5087
    %5089 = vrot.lane.b32.xlu0 %v5082, 125
    %v5090 = vpop.permute.xlu0 %5089
    %v5091 = vsel %vm969, %v5084, %v5086
    %v5092 = vsel %vm969, %v5088, %v5090
    %v5097 = vadd.f32 %v4929, %v5091
    %v5098 = vadd.f32 %v4930, %v5086
    %v5099 = vadd.f32 %v4931, %v5092
    %v5100 = vadd.f32 %v4932, %v5090
    %s5101 = sld [smem:[#allocation8 + $0x8a]]
    %v5102 = vstv %s5101
    %v5103 = vmul.f32 %v5102, %v4934
    %v5104 = vmul.f32 %v5102, %v4935
    %v5105 = vmul.f32 %v5102, %v3870
    %v5106 = vmul.f32 %v5102, %v3871
    %v5107 = vmul.f32 %v5102, %v4936
    %v5108 = vmul.f32 %v5102, %v4937
    %v5115 = vrot.slane %v5103, 5
    %v5116 = vrot.slane %v5105, 5
    %v5117 = vsel %vm1354, %v5115, %v5116
    %v5118 = vrot.slane %v5104, 5
    %v5119 = vrot.slane %v5106, 5
    %v5120 = vsel %vm1354, %v5118, %v5119
    %v5121 = vrot.slane %v5107, 5
    %v5122 = vsel %vm1354, %v5116, %v5121
    %v5123 = vrot.slane %v5108, 5
    %v5124 = vsel %vm1354, %v5119, %v5123
    %5125 = vrot.lane.b32.xlu0 %v5117, 125
    %v5126 = vpop.permute.xlu0 %5125
    %5127 = vrot.lane.b32.xlu0 %v5120, 125
    %v5128 = vpop.permute.xlu0 %5127
    %5129 = vrot.lane.b32.xlu0 %v5122, 125
    %v5130 = vpop.permute.xlu0 %5129
    %5131 = vrot.lane.b32.xlu0 %v5124, 125
    %v5132 = vpop.permute.xlu0 %5131
    %v5133 = vsel %vm969, %v5126, %v5128
    %v5134 = vsel %vm969, %v5130, %v5132
    %v5139 = vadd.f32 %v4975, %v5133
    %v5140 = vadd.f32 %v4976, %v5128
    %v5141 = vadd.f32 %v4977, %v5134
    %v5142 = vadd.f32 %v4978, %v5132
    %s5143 = sld [smem:[#allocation8 + $0x8b]]
    %v5144 = vstv %s5143
    %v5145 = vmul.f32 %v5144, %v4934
    %v5146 = vmul.f32 %v5144, %v4935
    %v5147 = vmul.f32 %v5144, %v3870
    %v5148 = vmul.f32 %v5144, %v3871
    %v5149 = vmul.f32 %v5144, %v4936
    %v5150 = vmul.f32 %v5144, %v4937
    %v5157 = vrot.slane %v5145, 5
    %v5158 = vrot.slane %v5147, 5
    %v5159 = vsel %vm1354, %v5157, %v5158
    %v5160 = vrot.slane %v5146, 5
    %v5161 = vrot.slane %v5148, 5
    %v5162 = vsel %vm1354, %v5160, %v5161
    %v5163 = vrot.slane %v5149, 5
    %v5164 = vsel %vm1354, %v5158, %v5163
    %v5165 = vrot.slane %v5150, 5
    %v5166 = vsel %vm1354, %v5161, %v5165
    %5167 = vrot.lane.b32.xlu0 %v5159, 125
    %v5168 = vpop.permute.xlu0 %5167
    %5169 = vrot.lane.b32.xlu0 %v5162, 125
    %v5170 = vpop.permute.xlu0 %5169
    %5171 = vrot.lane.b32.xlu0 %v5164, 125
    %v5172 = vpop.permute.xlu0 %5171
    %5173 = vrot.lane.b32.xlu0 %v5166, 125
    %v5174 = vpop.permute.xlu0 %5173
    %v5175 = vsel %vm969, %v5168, %v5170
    %v5176 = vsel %vm969, %v5172, %v5174
    %v5181 = vadd.f32 %v5017, %v5175
    %v5182 = vadd.f32 %v5018, %v5170
    %v5183 = vadd.f32 %v5019, %v5176
    %v5184 = vadd.f32 %v5020, %v5174
    %s5185 = sld [smem:[#allocation8 + $0x8c]]
    %v5186 = vld [vmem:[%s130] sm:$0xc0]
    %v5187 = vld [vmem:[%s130 + $0x20] sm:$0x3f]
    %v5188 = vstv %s5185
    %v5189 = vmul.f32 %v5188, %v5186
    %v5190 = vmul.f32 %v5188, %v3843
    %v5191 = vmul.f32 %v5188, %v5187
    %v5195 = vrot.slane %v5189, 6
    %v5196 = vrot.slane %v5190, 6
    %v5197 = vsel %vm1628, %v5195, %v5196
    %v5198 = vrot.slane %v5191, 6
    %v5199 = vsel %vm1628, %v5196, %v5198
    %v5202 = vadd.f32 %v5057, %v5197
    %v5203 = vadd.f32 %v5058, %v5199
    %s5204 = sld [smem:[#allocation8 + $0x8d]]
    %v5205 = vld [vmem:[%s130] sm:$0xc0]
    %v5206 = vld [vmem:[%s130 + $0x8] sm:$0xc0]
    %v5207 = vld [vmem:[%s130 + $0x20] sm:$0x3f]
    %v5208 = vld [vmem:[%s130 + $0x28] sm:$0x3f]
    %v5209 = vstv %s5204
    %v5210 = vmul.f32 %v5209, %v5205
    %v5211 = vmul.f32 %v5209, %v5206
    %v5212 = vmul.f32 %v5209, %v3870
    %v5213 = vmul.f32 %v5209, %v3871
    %v5214 = vmul.f32 %v5209, %v5207
    %v5215 = vmul.f32 %v5209, %v5208
    %v5222 = vrot.slane %v5210, 6
    %v5223 = vrot.slane %v5212, 6
    %v5224 = vsel %vm1628, %v5222, %v5223
    %v5225 = vrot.slane %v5211, 6
    %v5226 = vrot.slane %v5213, 6
    %v5227 = vsel %vm1628, %v5225, %v5226
    %v5228 = vrot.slane %v5214, 6
    %v5229 = vsel %vm1628, %v5223, %v5228
    %v5230 = vrot.slane %v5215, 6
    %v5231 = vsel %vm1628, %v5226, %v5230
    %v5236 = vadd.f32 %v5097, %v5224
    %v5237 = vadd.f32 %v5098, %v5227
    %v5238 = vadd.f32 %v5099, %v5229
    %v5239 = vadd.f32 %v5100, %v5231
    %s5240 = sld [smem:[#allocation8 + $0x8e]]
    %v5241 = vstv %s5240
    %v5242 = vmul.f32 %v5241, %v5205
    %v5243 = vmul.f32 %v5241, %v5206
    %v5244 = vmul.f32 %v5241, %v3870
    %v5245 = vmul.f32 %v5241, %v3871
    %v5246 = vmul.f32 %v5241, %v5207
    %v5247 = vmul.f32 %v5241, %v5208
    %v5254 = vrot.slane %v5242, 6
    %v5255 = vrot.slane %v5244, 6
    %v5256 = vsel %vm1628, %v5254, %v5255
    %v5257 = vrot.slane %v5243, 6
    %v5258 = vrot.slane %v5245, 6
    %v5259 = vsel %vm1628, %v5257, %v5258
    %v5260 = vrot.slane %v5246, 6
    %v5261 = vsel %vm1628, %v5255, %v5260
    %v5262 = vrot.slane %v5247, 6
    %v5263 = vsel %vm1628, %v5258, %v5262
    %v5268 = vadd.f32 %v5139, %v5256
    %v5269 = vadd.f32 %v5140, %v5259
    %v5270 = vadd.f32 %v5141, %v5261
    %v5271 = vadd.f32 %v5142, %v5263
    %s5272 = sld [smem:[#allocation8 + $0x8f]]
    %v5273 = vstv %s5272
    %v5274 = vmul.f32 %v5273, %v5205
    %v5275 = vmul.f32 %v5273, %v5206
    %v5276 = vmul.f32 %v5273, %v3870
    %v5277 = vmul.f32 %v5273, %v3871
    %v5278 = vmul.f32 %v5273, %v5207
    %v5279 = vmul.f32 %v5273, %v5208
    %v5286 = vrot.slane %v5274, 6
    %v5287 = vrot.slane %v5276, 6
    %v5288 = vsel %vm1628, %v5286, %v5287
    %v5289 = vrot.slane %v5275, 6
    %v5290 = vrot.slane %v5277, 6
    %v5291 = vsel %vm1628, %v5289, %v5290
    %v5292 = vrot.slane %v5278, 6
    %v5293 = vsel %vm1628, %v5287, %v5292
    %v5294 = vrot.slane %v5279, 6
    %v5295 = vsel %vm1628, %v5290, %v5294
    %v5300 = vadd.f32 %v5181, %v5288
    %v5301 = vadd.f32 %v5182, %v5291
    %v5302 = vadd.f32 %v5183, %v5293
    %v5303 = vadd.f32 %v5184, %v5295
    %s5304 = sld [smem:[#allocation8 + $0x90]]
    %v5305 = vstv %s5304
    %v5306 = vmul.f32 %v5305, %v5205
    %v5307 = vmul.f32 %v5305, %v5206
    %v5308 = vmul.f32 %v5305, %v3870
    %v5309 = vmul.f32 %v5305, %v3871
    %v5310 = vmul.f32 %v5305, %v5207
    %v5311 = vmul.f32 %v5305, %v5208
    %v5318 = vrot.slane %v5306, 6
    %v5319 = vrot.slane %v5308, 6
    %v5320 = vsel %vm1628, %v5318, %v5319
    %v5321 = vrot.slane %v5307, 6
    %v5322 = vrot.slane %v5309, 6
    %v5323 = vsel %vm1628, %v5321, %v5322
    %v5324 = vrot.slane %v5310, 6
    %v5325 = vsel %vm1628, %v5319, %v5324
    %v5326 = vrot.slane %v5311, 6
    %v5327 = vsel %vm1628, %v5322, %v5326
    %5328 = vrot.lane.b32.xlu0 %v5320, 124
    %v5329 = vpop.permute.xlu0 %5328
    %5330 = vrot.lane.b32.xlu0 %v5323, 124
    %v5331 = vpop.permute.xlu0 %5330
    %5332 = vrot.lane.b32.xlu0 %v5325, 124
    %v5333 = vpop.permute.xlu0 %5332
    %5334 = vrot.lane.b32.xlu0 %v5327, 124
    %v5335 = vpop.permute.xlu0 %5334
    %v5336 = vsel %vm203, %v5329, %v5331
    %v5337 = vsel %vm203, %v5333, %v5335
    %v5340 = vadd.f32 %v5202, %v5336
    %v5341 = vadd.f32 %v5203, %v5337
    %s5342 = sld [smem:[#allocation8 + $0x91]]
    %v5343 = vstv %s5342
    %v5344 = vmul.f32 %v5343, %v5205
    %v5345 = vmul.f32 %v5343, %v5206
    %v5346 = vmul.f32 %v5343, %v3870
    %v5347 = vmul.f32 %v5343, %v3871
    %v5348 = vmul.f32 %v5343, %v5207
    %v5349 = vmul.f32 %v5343, %v5208
    %v5356 = vrot.slane %v5344, 6
    %v5357 = vrot.slane %v5346, 6
    %v5358 = vsel %vm1628, %v5356, %v5357
    %v5359 = vrot.slane %v5345, 6
    %v5360 = vrot.slane %v5347, 6
    %v5361 = vsel %vm1628, %v5359, %v5360
    %v5362 = vrot.slane %v5348, 6
    %v5363 = vsel %vm1628, %v5357, %v5362
    %v5364 = vrot.slane %v5349, 6
    %v5365 = vsel %vm1628, %v5360, %v5364
    %5366 = vrot.lane.b32.xlu0 %v5358, 124
    %v5367 = vpop.permute.xlu0 %5366
    %5368 = vrot.lane.b32.xlu0 %v5361, 124
    %v5369 = vpop.permute.xlu0 %5368
    %5370 = vrot.lane.b32.xlu0 %v5363, 124
    %v5371 = vpop.permute.xlu0 %5370
    %5372 = vrot.lane.b32.xlu0 %v5365, 124
    %v5373 = vpop.permute.xlu0 %5372
    %v5374 = vsel %vm203, %v5367, %v5369
    %v5375 = vsel %vm203, %v5371, %v5373
    %v5380 = vadd.f32 %v5236, %v5374
    %v5381 = vadd.f32 %v5237, %v5369
    %v5382 = vadd.f32 %v5238, %v5375
    %v5383 = vadd.f32 %v5239, %v5373
    %s5384 = sld [smem:[#allocation8 + $0x92]]
    %v5385 = vstv %s5384
    %v5386 = vmul.f32 %v5385, %v5205
    %v5387 = vmul.f32 %v5385, %v5206
    %v5388 = vmul.f32 %v5385, %v3870
    %v5389 = vmul.f32 %v5385, %v3871
    %v5390 = vmul.f32 %v5385, %v5207
    %v5391 = vmul.f32 %v5385, %v5208
    %v5398 = vrot.slane %v5386, 6
    %v5399 = vrot.slane %v5388, 6
    %v5400 = vsel %vm1628, %v5398, %v5399
    %v5401 = vrot.slane %v5387, 6
    %v5402 = vrot.slane %v5389, 6
    %v5403 = vsel %vm1628, %v5401, %v5402
    %v5404 = vrot.slane %v5390, 6
    %v5405 = vsel %vm1628, %v5399, %v5404
    %v5406 = vrot.slane %v5391, 6
    %v5407 = vsel %vm1628, %v5402, %v5406
    %5408 = vrot.lane.b32.xlu0 %v5400, 124
    %v5409 = vpop.permute.xlu0 %5408
    %5410 = vrot.lane.b32.xlu0 %v5403, 124
    %v5411 = vpop.permute.xlu0 %5410
    %5412 = vrot.lane.b32.xlu0 %v5405, 124
    %v5413 = vpop.permute.xlu0 %5412
    %5414 = vrot.lane.b32.xlu0 %v5407, 124
    %v5415 = vpop.permute.xlu0 %5414
    %v5416 = vsel %vm203, %v5409, %v5411
    %v5417 = vsel %vm203, %v5413, %v5415
    %v5422 = vadd.f32 %v5268, %v5416
    %v5423 = vadd.f32 %v5269, %v5411
    %v5424 = vadd.f32 %v5270, %v5417
    %v5425 = vadd.f32 %v5271, %v5415
    %5430 = vrot.lane.b32.xlu0 %v5380, 127
    %v5431 = vpop.permute.xlu0 %5430
    %5432 = vrot.lane.b32.xlu0 %v5381, 127
    %v5433 = vpop.permute.xlu0 %5432
    %5434 = vrot.lane.b32.xlu0 %v5382, 127
    %v5435 = vpop.permute.xlu0 %5434
    %5436 = vrot.lane.b32.xlu0 %v5383, 127
    %v5437 = vpop.permute.xlu0 %5436
    %v5438 = vsel %vm331, %v5431, %v5433
    %v5439 = vsel %vm331, %v5435, %v5437
    %v5442 = vadd.f32 %v5340, %v5438
    %v5443 = vadd.f32 %v5341, %v5439
    %5448 = vrot.lane.b32.xlu0 %v5300, 127
    %v5449 = vpop.permute.xlu0 %5448
    %5450 = vrot.lane.b32.xlu0 %v5301, 127
    %v5451 = vpop.permute.xlu0 %5450
    %5452 = vrot.lane.b32.xlu0 %v5302, 127
    %v5453 = vpop.permute.xlu0 %5452
    %5454 = vrot.lane.b32.xlu0 %v5303, 127
    %v5455 = vpop.permute.xlu0 %5454
    %v5456 = vsel %vm331, %v5449, %v5451
    %v5457 = vsel %vm331, %v5453, %v5455
    %v5462 = vadd.f32 %v5422, %v5456
    %v5463 = vadd.f32 %v5423, %v5451
    %v5464 = vadd.f32 %v5424, %v5457
    %v5465 = vadd.f32 %v5425, %v5455
    %5470 = vrot.lane.b32.xlu0 %v5462, 126
    %v5471 = vpop.permute.xlu0 %5470
    %5472 = vrot.lane.b32.xlu0 %v5463, 126
    %v5473 = vpop.permute.xlu0 %5472
    %5474 = vrot.lane.b32.xlu0 %v5464, 126
    %v5475 = vpop.permute.xlu0 %5474
    %5476 = vrot.lane.b32.xlu0 %v5465, 126
    %v5477 = vpop.permute.xlu0 %5476
    %v5478 = vsel %vm650, %v5471, %v5473
    %v5479 = vsel %vm650, %v5475, %v5477
    %v5482 = vadd.f32 %v5442, %v5478
    %v5483 = vadd.f32 %v5443, %v5479
    %5484 = vst [vmem:[#allocation10] sm:$0xff] %v5482
    %5485 = vst [vmem:[#allocation10 + $0x8] sm:$0xff] %v5483
    // Predicated region
    $region26: #{tpu_custom_call.1} parent=1 // pred_check
      _
    $region27: #{tpu_custom_call.1} parent=1 // pred_check_branch
      %5487 = sbr.rel (0) target = $region29
    $region28: #{tpu_custom_call.1} parent=1 // pred_region
      %s5489 = ssub.s32 256, 256
      %5490 = vsyncadd [#allocation5], %s5489
      %s5491 = sshll.u32 [#allocation10], 4
      %s5492 = int_to_ptr.vmem [resolvable:$true] %s5491
      %5497 = dma.vmem_to_hbm [thread:$0]  %s5492, 256, %s3, [#allocation5], 128, 128, 8
    $region29: #{tpu_custom_call.1} parent=1 // pred_fallthru
      _
    // Predicated region
    $region30: #{tpu_custom_call.1} parent=1 // pred_check
      _
    $region31: #{tpu_custom_call.1} parent=1 // pred_check_branch
      %5499 = sbr.rel (0) target = $region33
    $region32: #{tpu_custom_call.1} parent=1 // pred_region
      %5500 = dma.done [#allocation5], 256
    $region33: #{tpu_custom_call.1} parent=1 // pred_fallthru
      _
    %5501 = vsyncpa [#allocation4], 1
    %5502 = vsyncpa [#allocation5], 1
    %5503 = vsyncpa [#allocation6], 1
    %5504 = vsyncpa [#allocation7], 1

</llo_original>
